<compile_context>
chip_gen: v7x
topology: tpu7x:2x2x1
jax: 0.10.0
libtpu: 0.0.40
codegen_flags: <defaults>
</compile_context>

<pallas_src>
import functools

import jax
import jax.numpy as jnp
from jax.experimental import pallas as pl
from jax.experimental.pallas import tpu as pltpu


def _round_up(v, m):
    return -(-v // m) * m


# ----------------------------------------------------------------------------
# Fused kernel: stacked GRU layers + final Linear, everything resident in VMEM.
# Gate order follows PyTorch nn.GRU: [r, z, n]
#   r = sigmoid(x W_ir + b_ir + h W_hr + b_hr)
#   z = sigmoid(x W_iz + b_iz + h W_hz + b_hz)
#   n = tanh  (x W_in + b_in + r * (h W_hn + b_hn))
#   h = (1 - z) * n + z * h_prev
# Padding invariants (set up by the wrapper): padded weight/bias columns and
# padded input rows are zero, so padded hidden lanes stay exactly 0 through the
# recurrence (z=r=0.5, n=0 -> h_pad stays 0) and never contaminate real lanes.
# ----------------------------------------------------------------------------
def _make_fused_gru_kernel(T, Bp, padded_hidden, unroll):
    L = len(padded_hidden)

    def kernel(*refs):
        # Inputs : x_ref, then per layer (wih, whh, b_gi, b_hn), then w_out, b_out.
        # Outputs: out_ref.
        # Scratch: per layer [gi_scr (T,Bp,3Hp) f32, seq_scr (T,Bp,Hp) bf16].
        x_ref = refs[0]
        layer_refs = [refs[1 + 4 * l: 1 + 4 * (l + 1)] for l in range(L)]
        w_out_ref = refs[1 + 4 * L]
        b_out_ref = refs[2 + 4 * L]
        out_ref = refs[3 + 4 * L]
        scratch = refs[4 + 4 * L:]

        seq_in_ref = x_ref                                    # (T, Bp, Fp) bf16
        for l in range(L):
            wih_ref, whh_ref, bgi_ref, bhn_ref = layer_refs[l]
            gi_scr = scratch[2 * l]                           # (T, Bp, 3*Hp) f32
            seq_scr = scratch[2 * l + 1]                      # (T, Bp, Hp) bf16
            Hp = padded_hidden[l]
            Fin = seq_in_ref.shape[-1]

            # Hoisted input->hidden projection for ALL gates and ALL timesteps:
            # one (T*Bp, Fin)@(Fin, 3*Hp) bf16 matmul, f32 accumulate, biases
            # (b_ih + b_hh for r/z, b_in for n) pre-folded in bgi. Stored to a
            # VMEM scratch so it is not a live traced value across the loop.
            seq2d = seq_in_ref[...].reshape(T * Bp, Fin)
            gi = jnp.dot(seq2d, wih_ref[...],
                         preferred_element_type=jnp.float32) + bgi_ref[...]
            gi_scr[...] = gi.reshape(T, Bp, 3 * Hp)

            whh = whh_ref[...]                                # (Hp, 3*Hp) bf16
            b_hn = bhn_ref[...]                               # (1, Hp)     f32

            def step(t, h, *, gi_scr=gi_scr, seq_scr=seq_scr,
                     whh=whh, b_hn=b_hn, Hp=Hp):
                gi_t = gi_scr[t]                              # (Bp, 3*Hp) f32
                # Single fused recurrent matmul; gate blocks are 128-aligned.
                gh = jnp.dot(h.astype(jnp.bfloat16), whh,
                             preferred_element_type=jnp.float32)
                r = jax.nn.sigmoid(gi_t[:, 0:Hp] + gh[:, 0:Hp])
                z = jax.nn.sigmoid(gi_t[:, Hp:2 * Hp] + gh[:, Hp:2 * Hp])
                n = jnp.tanh(gi_t[:, 2 * Hp:3 * Hp]
                             + r * (gh[:, 2 * Hp:3 * Hp] + b_hn))
                h_new = (1.0 - z) * n + z * h
                seq_scr[t] = h_new.astype(seq_scr.dtype)
                return h_new

            h0 = jnp.zeros((Bp, Hp), jnp.float32)
            jax.lax.fori_loop(0, T, step, h0, unroll=unroll)

            # nn.Dropout in eval mode == identity.
            seq_in_ref = seq_scr                              # next layer input

        # Fused final Linear epilogue over the resident (T*Bp, Hp_last) slab,
        # written to a 128-lane-padded output (unmasked vst).
        Hl = padded_hidden[-1]
        y = jnp.dot(seq_in_ref[...].reshape(T * Bp, Hl), w_out_ref[...],
                    preferred_element_type=jnp.float32) + b_out_ref[...]
        out_ref[...] = y.astype(out_ref.dtype)

    return kernel


# ----------------------------------------------------------------------------
# Public wrapper: x is (B, T, F) batch-first (PyTorch batch_first=True).
# Pads B->mult of 8 (sublanes), F/H/O->mult of 128 (lanes), fuses/pads weights
# into gate-blocked bf16 slabs, and sets an explicit VMEM limit.
# ----------------------------------------------------------------------------
def gru_nn_forward(x, params):
    """x: (B, T, F). Returns (B, T, output_size)."""
    B, T, F = x.shape
    hidden = [int(l["whh"].shape[-1]) for l in params["gru_layers"]]
    O = int(params["w_out"].shape[-1])

    Bp = max(8, _round_up(B, 8))
    Fp = _round_up(F, 128)
    Hp = [_round_up(h, 128) for h in hidden]
    Op = _round_up(O, 128)

    # Time-major, batch/feature zero-padded, bf16 for the MXU.
    x_tm = jnp.transpose(x, (1, 0, 2)).astype(jnp.float32)
    x_pad = (jnp.zeros((T, Bp, Fp), jnp.float32)
             .at[:, :B, :F].set(x_tm).astype(jnp.bfloat16))

    args = [x_pad]
    fin, fin_p = F, Fp
    for l, layer in enumerate(params["gru_layers"]):
        H, Hpl = hidden[l], Hp[l]
        wih, whh = layer["wih"], layer["whh"]          # (3,fin,H), (3,H,H)
        b_ih, b_hh = layer["b_ih"], layer["b_hh"]      # (3,1,H)
        wih_f = jnp.zeros((fin_p, 3 * Hpl), jnp.float32)
        whh_f = jnp.zeros((Hpl, 3 * Hpl), jnp.float32)
        bgi_f = jnp.zeros((1, 3 * Hpl), jnp.float32)
        for g in range(3):
            wih_f = wih_f.at[:fin, g * Hpl:g * Hpl + H].set(wih[g])
            whh_f = whh_f.at[:H, g * Hpl:g * Hpl + H].set(whh[g])
        # Fold biases once (outside the serial path): r/z get b_ih+b_hh, the n
        # gate gets only b_in; b_hn stays inside the recurrence (under r*).
        bgi_f = bgi_f.at[:, 0 * Hpl:0 * Hpl + H].set(b_ih[0] + b_hh[0])
        bgi_f = bgi_f.at[:, 1 * Hpl:1 * Hpl + H].set(b_ih[1] + b_hh[1])
        bgi_f = bgi_f.at[:, 2 * Hpl:2 * Hpl + H].set(b_ih[2])
        bhn_f = jnp.zeros((1, Hpl), jnp.float32).at[:, :H].set(b_hh[2])
        args += [wih_f.astype(jnp.bfloat16), whh_f.astype(jnp.bfloat16),
                 bgi_f, bhn_f]
        fin, fin_p = H, Hpl

    w_out_f = (jnp.zeros((Hp[-1], Op), jnp.float32)
               .at[:hidden[-1], :O].set(params["w_out"]).astype(jnp.bfloat16))
    b_out_f = jnp.zeros((1, Op), jnp.float32).at[:, :O].set(params["b_out"])
    args += [w_out_f, b_out_f]

    scratch_shapes = []
    for Hpl in Hp:
        scratch_shapes.append(pltpu.VMEM((T, Bp, 3 * Hpl), jnp.float32))  # gi
        scratch_shapes.append(pltpu.VMEM((T, Bp, Hpl), jnp.bfloat16))     # seq

    # VMEM budget: inputs + output + scratch slabs, x2 headroom for buffering
    # and compiler temporaries, clamped to 64 MiB (valid on v5e/v6e/v7x).
    resident = sum(int(a.size) * a.dtype.itemsize for a in args)
    resident += T * Bp * Op * 4                                   # output slab
    resident += sum(T * Bp * 3 * hp * 4 + T * Bp * hp * 2 for hp in Hp)
    vmem_limit = int(min(64 << 20, max(32 << 20, 2 * resident + (4 << 20))))

    unroll = True if T <= 16 else 8
    kernel = _make_fused_gru_kernel(T, Bp, tuple(Hp), unroll)
    y = pl.pallas_call(
        kernel,
        out_shape=jax.ShapeDtypeStruct((T * Bp, Op), jnp.float32),
        scratch_shapes=scratch_shapes,
        compiler_params=pltpu.CompilerParams(vmem_limit_bytes=vmem_limit),
    )(*args)

    y = y.reshape(T, Bp, Op)[:, :B, :O]                  # drop padding
    return jnp.transpose(y, (1, 0, 2))                   # -> (B, T, O)


# ----------------------------------------------------------------------------
# Deterministic parameter init (PyTorch-style U(-1/sqrt(H), 1/sqrt(H))),
# stored gate-leading / pre-transposed: wih (3, in, H), whh (3, H, H),
# b_ih / b_hh (3, 1, H), gate order [r, z, n].
# ----------------------------------------------------------------------------
def init_params(key, input_size, hidden_sizes, output_size):
    params = {"gru_layers": []}
    in_dim = input_size
    for h_dim in hidden_sizes:
        k = 1.0 / jnp.sqrt(h_dim)
        key, k1, k2, k3, k4 = jax.random.split(key, 5)
        params["gru_layers"].append({
            "wih":  jax.random.uniform(k1, (3, in_dim, h_dim), jnp.float32, -k, k),
            "whh":  jax.random.uniform(k2, (3, h_dim, h_dim), jnp.float32, -k, k),
            "b_ih": jax.random.uniform(k3, (3, 1, h_dim), jnp.float32, -k, k),
            "b_hh": jax.random.uniform(k4, (3, 1, h_dim), jnp.float32, -k, k),
        })
        in_dim = h_dim
    k = 1.0 / jnp.sqrt(hidden_sizes[-1])
    key, k1, k2 = jax.random.split(key, 3)
    params["w_out"] = jax.random.uniform(
        k1, (hidden_sizes[-1], output_size), jnp.float32, -k, k)
    params["b_out"] = jax.random.uniform(
        k2, (1, output_size), jnp.float32, -k, k)
    return params


# ----------------------------------------------------------------------------
# Pure-JAX f32 reference (literal PyTorch nn.GRU equations) for correctness.
# ----------------------------------------------------------------------------
def _gru_layer_ref(x_tm, wih, whh, b_ih, b_hh):
    B = x_tm.shape[1]
    H = whh.shape[-1]

    def step(h, xt):
        gi_r = xt @ wih[0] + b_ih[0]
        gi_z = xt @ wih[1] + b_ih[1]
        gi_n = xt @ wih[2] + b_ih[2]
        gh_r = h @ whh[0] + b_hh[0]
        gh_z = h @ whh[1] + b_hh[1]
        gh_n = h @ whh[2] + b_hh[2]
        r = jax.nn.sigmoid(gi_r + gh_r)
        z = jax.nn.sigmoid(gi_z + gh_z)
        n = jnp.tanh(gi_n + r * gh_n)
        h_new = (1.0 - z) * n + z * h
        return h_new, h_new

    _, outs = jax.lax.scan(step, jnp.zeros((B, H), jnp.float32), x_tm)
    return outs


def gru_nn_forward_ref(x, params):
    h = jnp.transpose(x, (1, 0, 2)).astype(jnp.float32)
    for layer in params["gru_layers"]:
        h = _gru_layer_ref(h, layer["wih"], layer["whh"],
                           layer["b_ih"], layer["b_hh"])
    y = h @ params["w_out"] + params["b_out"]
    return jnp.transpose(y, (1, 0, 2))


if __name__ == "__main__":
    # Small shapes consistent with the module's forward:
    # x: (batch, seq, input_size); hidden_sizes per layer; output_size classes.
    batch, seq, input_size = 2, 8, 16
    hidden_sizes = [32, 32]
    output_size = 4

    key = jax.random.PRNGKey(0)
    key, xk = jax.random.split(key)
    x = jax.random.normal(xk, (batch, seq, input_size), jnp.float32)

    params = init_params(key, input_size, hidden_sizes, output_size)

    out = jax.block_until_ready(gru_nn_forward(x, params))
    ref = jax.block_until_ready(gru_nn_forward_ref(x, params))

    assert out.shape == (batch, seq, output_size), out.shape
    # bf16 matmul operands vs f32 reference -> loosened tolerance.
    max_err = float(jnp.max(jnp.abs(out - ref)))
    assert jnp.allclose(out, ref, atol=5e-2, rtol=5e-2), (
        "mismatch vs reference, max abs err = " + str(max_err))

    print("KERNEL_OK")
</pallas_src>

<mosaic_0001>
module attributes {stable_mosaic.version = 11 : i64} {
  func.func @kernel(%arg0: memref<8x8x128xbf16, #tpu.memory_space<vmem>>, %arg1: memref<128x384xbf16, #tpu.memory_space<vmem>>, %arg2: memref<128x384xbf16, #tpu.memory_space<vmem>>, %arg3: memref<1x384xf32, #tpu.memory_space<vmem>>, %arg4: memref<1x128xf32, #tpu.memory_space<vmem>>, %arg5: memref<128x384xbf16, #tpu.memory_space<vmem>>, %arg6: memref<128x384xbf16, #tpu.memory_space<vmem>>, %arg7: memref<1x384xf32, #tpu.memory_space<vmem>>, %arg8: memref<1x128xf32, #tpu.memory_space<vmem>>, %arg9: memref<128x128xbf16, #tpu.memory_space<vmem>>, %arg10: memref<1x128xf32, #tpu.memory_space<vmem>>, %arg11: memref<64x128xf32, #tpu.memory_space<vmem>>, %arg12: memref<8x8x384xf32, #tpu.memory_space<vmem>>, %arg13: memref<8x8x128xbf16, #tpu.memory_space<vmem>>, %arg14: memref<8x8x384xf32, #tpu.memory_space<vmem>>, %arg15: memref<8x8x128xbf16, #tpu.memory_space<vmem>>) attributes {dimension_semantics = [], scalar_prefetch = 0 : i64, scratch_operands = 4 : i64, tpu.core_type = #tpu.core_type<tc>} {
    %c0 = arith.constant 0 : index
    %c0_0 = arith.constant 0 : index
    %c0_1 = arith.constant 0 : index
    %0 = vector.load %arg0[%c0, %c0_0, %c0_1] : memref<8x8x128xbf16, #tpu.memory_space<vmem>>, vector<8x8x128xbf16>
    %1 = vector.shape_cast %0 : vector<8x8x128xbf16> to vector<64x128xbf16>
    %c0_2 = arith.constant 0 : index
    %c0_3 = arith.constant 0 : index
    %2 = vector.load %arg1[%c0_2, %c0_3] : memref<128x384xbf16, #tpu.memory_space<vmem>>, vector<128x384xbf16>
    %cst = arith.constant dense<0.000000e+00> : vector<64x384xf32>
    %3 = tpu.matmul %1, %2, %cst {dimension_numbers = #tpu.dot_dimension_numbers<[1], [0], [0], [1], [0, 0, 1, 1], [], []>} : vector<64x128xbf16>, vector<128x384xbf16>, vector<64x384xf32> -> vector<64x384xf32>
    %c0_4 = arith.constant 0 : index
    %c0_5 = arith.constant 0 : index
    %4 = vector.load %arg3[%c0_4, %c0_5] : memref<1x384xf32, #tpu.memory_space<vmem>>, vector<1x384xf32>
    %5 = vector.broadcast %4 : vector<1x384xf32> to vector<64x384xf32>
    %6 = arith.addf %3, %5 : vector<64x384xf32>
    %7 = vector.shape_cast %6 : vector<64x384xf32> to vector<8x8x384xf32>
    %c0_6 = arith.constant 0 : index
    %c0_7 = arith.constant 0 : index
    %c0_8 = arith.constant 0 : index
    %8 = vector.load %arg12[%c0_6, %c0_7, %c0_8] : memref<8x8x384xf32, #tpu.memory_space<vmem>>, vector<8x8x384xf32>
    tpu.vector_store %arg12[%c0_6, %c0_7, %c0_8], %7 {strides = array<i32>} : memref<8x8x384xf32, #tpu.memory_space<vmem>>, vector<8x8x384xf32>,
    %c0_9 = arith.constant 0 : index
    %c0_10 = arith.constant 0 : index
    %9 = vector.load %arg2[%c0_9, %c0_10] : memref<128x384xbf16, #tpu.memory_space<vmem>>, vector<128x384xbf16>
    %c0_11 = arith.constant 0 : index
    %c0_12 = arith.constant 0 : index
    %10 = vector.load %arg4[%c0_11, %c0_12] : memref<1x128xf32, #tpu.memory_space<vmem>>, vector<1x128xf32>
    %cst_13 = arith.constant 0.000000e+00 : f32
    %11 = vector.broadcast %cst_13 : f32 to vector<8x128xf32>
    %c0_i32 = arith.constant 0 : i32
    %12 = arith.index_cast %c0_i32 : i32 to index
    %c0_14 = arith.constant 0 : index
    %c0_15 = arith.constant 0 : index
    %13 = vector.load %arg12[%12, %c0_14, %c0_15] : memref<8x8x384xf32, #tpu.memory_space<vmem>>, vector<1x8x384xf32>
    %14 = vector.shape_cast %13 : vector<1x8x384xf32> to vector<8x384xf32>
    %15 = arith.truncf %11 : vector<8x128xf32> to vector<8x128xbf16>
    %cst_16 = arith.constant dense<0.000000e+00> : vector<8x384xf32>
    %16 = tpu.matmul %15, %9, %cst_16 {dimension_numbers = #tpu.dot_dimension_numbers<[1], [0], [0], [1], [0, 0, 1, 1], [], []>} : vector<8x128xbf16>, vector<128x384xbf16>, vector<8x384xf32> -> vector<8x384xf32>
    %17 = vector.extract_strided_slice %14 {offsets = [0, 0], sizes = [8, 128], strides = [1, 1]} : vector<8x384xf32> to vector<8x128xf32>
    %18 = vector.extract_strided_slice %16 {offsets = [0, 0], sizes = [8, 128], strides = [1, 1]} : vector<8x384xf32> to vector<8x128xf32>
    %19 = arith.addf %17, %18 : vector<8x128xf32>
    %20 = arith.negf %19 : vector<8x128xf32>
    %21 = math.exp %20 : vector<8x128xf32>
    %cst_17 = arith.constant 1.000000e+00 : f32
    %22 = vector.broadcast %cst_17 : f32 to vector<8x128xf32>
    %23 = arith.addf %22, %21 : vector<8x128xf32>
    %24 = arith.divf %22, %23 : vector<8x128xf32>
    %25 = vector.extract_strided_slice %14 {offsets = [0, 128], sizes = [8, 128], strides = [1, 1]} : vector<8x384xf32> to vector<8x128xf32>
    %26 = vector.extract_strided_slice %16 {offsets = [0, 128], sizes = [8, 128], strides = [1, 1]} : vector<8x384xf32> to vector<8x128xf32>
    %27 = arith.addf %25, %26 : vector<8x128xf32>
    %28 = arith.negf %27 : vector<8x128xf32>
    %29 = math.exp %28 : vector<8x128xf32>
    %cst_18 = arith.constant 1.000000e+00 : f32
    %30 = vector.broadcast %cst_18 : f32 to vector<8x128xf32>
    %31 = arith.addf %30, %29 : vector<8x128xf32>
    %32 = arith.divf %30, %31 : vector<8x128xf32>
    %33 = vector.extract_strided_slice %14 {offsets = [0, 256], sizes = [8, 128], strides = [1, 1]} : vector<8x384xf32> to vector<8x128xf32>
    %34 = vector.extract_strided_slice %16 {offsets = [0, 256], sizes = [8, 128], strides = [1, 1]} : vector<8x384xf32> to vector<8x128xf32>
    %35 = vector.broadcast %10 : vector<1x128xf32> to vector<8x128xf32>
    %36 = arith.addf %34, %35 : vector<8x128xf32>
    %37 = arith.mulf %24, %36 : vector<8x128xf32>
    %38 = arith.addf %33, %37 : vector<8x128xf32>
    %39 = math.tanh %38 : vector<8x128xf32>
    %cst_19 = arith.constant 1.000000e+00 : f32
    %40 = vector.broadcast %cst_19 : f32 to vector<8x128xf32>
    %41 = arith.subf %40, %32 : vector<8x128xf32>
    %42 = arith.mulf %41, %39 : vector<8x128xf32>
    %43 = arith.mulf %32, %11 : vector<8x128xf32>
    %44 = arith.addf %42, %43 : vector<8x128xf32>
    %45 = arith.truncf %44 : vector<8x128xf32> to vector<8x128xbf16>
    %46 = arith.index_cast %c0_i32 : i32 to index
    %c0_20 = arith.constant 0 : index
    %c0_21 = arith.constant 0 : index
    %47 = vector.load %arg13[%46, %c0_20, %c0_21] : memref<8x8x128xbf16, #tpu.memory_space<vmem>>, vector<1x8x128xbf16>
    %48 = vector.shape_cast %47 : vector<1x8x128xbf16> to vector<8x128xbf16>
    %49 = vector.shape_cast %45 : vector<8x128xbf16> to vector<1x8x128xbf16>
    tpu.vector_store %arg13[%46, %c0_20, %c0_21], %49 {strides = array<i32>} : memref<8x8x128xbf16, #tpu.memory_space<vmem>>, vector<1x8x128xbf16>,
    %c1_i32 = arith.constant 1 : i32
    %50 = arith.index_cast %c1_i32 : i32 to index
    %c0_22 = arith.constant 0 : index
    %c0_23 = arith.constant 0 : index
    %51 = vector.load %arg12[%50, %c0_22, %c0_23] : memref<8x8x384xf32, #tpu.memory_space<vmem>>, vector<1x8x384xf32>
    %52 = vector.shape_cast %51 : vector<1x8x384xf32> to vector<8x384xf32>
    %53 = arith.truncf %44 : vector<8x128xf32> to vector<8x128xbf16>
    %cst_24 = arith.constant dense<0.000000e+00> : vector<8x384xf32>
    %54 = tpu.matmul %53, %9, %cst_24 {dimension_numbers = #tpu.dot_dimension_numbers<[1], [0], [0], [1], [0, 0, 1, 1], [], []>} : vector<8x128xbf16>, vector<128x384xbf16>, vector<8x384xf32> -> vector<8x384xf32>
    %55 = vector.extract_strided_slice %52 {offsets = [0, 0], sizes = [8, 128], strides = [1, 1]} : vector<8x384xf32> to vector<8x128xf32>
    %56 = vector.extract_strided_slice %54 {offsets = [0, 0], sizes = [8, 128], strides = [1, 1]} : vector<8x384xf32> to vector<8x128xf32>
    %57 = arith.addf %55, %56 : vector<8x128xf32>
    %58 = arith.negf %57 : vector<8x128xf32>
    %59 = math.exp %58 : vector<8x128xf32>
    %cst_25 = arith.constant 1.000000e+00 : f32
    %60 = vector.broadcast %cst_25 : f32 to vector<8x128xf32>
    %61 = arith.addf %60, %59 : vector<8x128xf32>
    %62 = arith.divf %60, %61 : vector<8x128xf32>
    %63 = vector.extract_strided_slice %52 {offsets = [0, 128], sizes = [8, 128], strides = [1, 1]} : vector<8x384xf32> to vector<8x128xf32>
    %64 = vector.extract_strided_slice %54 {offsets = [0, 128], sizes = [8, 128], strides = [1, 1]} : vector<8x384xf32> to vector<8x128xf32>
    %65 = arith.addf %63, %64 : vector<8x128xf32>
    %66 = arith.negf %65 : vector<8x128xf32>
    %67 = math.exp %66 : vector<8x128xf32>
    %cst_26 = arith.constant 1.000000e+00 : f32
    %68 = vector.broadcast %cst_26 : f32 to vector<8x128xf32>
    %69 = arith.addf %68, %67 : vector<8x128xf32>
    %70 = arith.divf %68, %69 : vector<8x128xf32>
    %71 = vector.extract_strided_slice %52 {offsets = [0, 256], sizes = [8, 128], strides = [1, 1]} : vector<8x384xf32> to vector<8x128xf32>
    %72 = vector.extract_strided_slice %54 {offsets = [0, 256], sizes = [8, 128], strides = [1, 1]} : vector<8x384xf32> to vector<8x128xf32>
    %73 = vector.broadcast %10 : vector<1x128xf32> to vector<8x128xf32>
    %74 = arith.addf %72, %73 : vector<8x128xf32>
    %75 = arith.mulf %62, %74 : vector<8x128xf32>
    %76 = arith.addf %71, %75 : vector<8x128xf32>
    %77 = math.tanh %76 : vector<8x128xf32>
    %cst_27 = arith.constant 1.000000e+00 : f32
    %78 = vector.broadcast %cst_27 : f32 to vector<8x128xf32>
    %79 = arith.subf %78, %70 : vector<8x128xf32>
    %80 = arith.mulf %79, %77 : vector<8x128xf32>
    %81 = arith.mulf %70, %44 : vector<8x128xf32>
    %82 = arith.addf %80, %81 : vector<8x128xf32>
    %83 = arith.truncf %82 : vector<8x128xf32> to vector<8x128xbf16>
    %84 = arith.index_cast %c1_i32 : i32 to index
    %c0_28 = arith.constant 0 : index
    %c0_29 = arith.constant 0 : index
    %85 = vector.load %arg13[%84, %c0_28, %c0_29] : memref<8x8x128xbf16, #tpu.memory_space<vmem>>, vector<1x8x128xbf16>
    %86 = vector.shape_cast %85 : vector<1x8x128xbf16> to vector<8x128xbf16>
    %87 = vector.shape_cast %83 : vector<8x128xbf16> to vector<1x8x128xbf16>
    tpu.vector_store %arg13[%84, %c0_28, %c0_29], %87 {strides = array<i32>} : memref<8x8x128xbf16, #tpu.memory_space<vmem>>, vector<1x8x128xbf16>,
    %c2_i32 = arith.constant 2 : i32
    %88 = arith.index_cast %c2_i32 : i32 to index
    %c0_30 = arith.constant 0 : index
    %c0_31 = arith.constant 0 : index
    %89 = vector.load %arg12[%88, %c0_30, %c0_31] : memref<8x8x384xf32, #tpu.memory_space<vmem>>, vector<1x8x384xf32>
    %90 = vector.shape_cast %89 : vector<1x8x384xf32> to vector<8x384xf32>
    %91 = arith.truncf %82 : vector<8x128xf32> to vector<8x128xbf16>
    %cst_32 = arith.constant dense<0.000000e+00> : vector<8x384xf32>
    %92 = tpu.matmul %91, %9, %cst_32 {dimension_numbers = #tpu.dot_dimension_numbers<[1], [0], [0], [1], [0, 0, 1, 1], [], []>} : vector<8x128xbf16>, vector<128x384xbf16>, vector<8x384xf32> -> vector<8x384xf32>
    %93 = vector.extract_strided_slice %90 {offsets = [0, 0], sizes = [8, 128], strides = [1, 1]} : vector<8x384xf32> to vector<8x128xf32>
    %94 = vector.extract_strided_slice %92 {offsets = [0, 0], sizes = [8, 128], strides = [1, 1]} : vector<8x384xf32> to vector<8x128xf32>
    %95 = arith.addf %93, %94 : vector<8x128xf32>
    %96 = arith.negf %95 : vector<8x128xf32>
    %97 = math.exp %96 : vector<8x128xf32>
    %cst_33 = arith.constant 1.000000e+00 : f32
    %98 = vector.broadcast %cst_33 : f32 to vector<8x128xf32>
    %99 = arith.addf %98, %97 : vector<8x128xf32>
    %100 = arith.divf %98, %99 : vector<8x128xf32>
    %101 = vector.extract_strided_slice %90 {offsets = [0, 128], sizes = [8, 128], strides = [1, 1]} : vector<8x384xf32> to vector<8x128xf32>
    %102 = vector.extract_strided_slice %92 {offsets = [0, 128], sizes = [8, 128], strides = [1, 1]} : vector<8x384xf32> to vector<8x128xf32>
    %103 = arith.addf %101, %102 : vector<8x128xf32>
    %104 = arith.negf %103 : vector<8x128xf32>
    %105 = math.exp %104 : vector<8x128xf32>
    %cst_34 = arith.constant 1.000000e+00 : f32
    %106 = vector.broadcast %cst_34 : f32 to vector<8x128xf32>
    %107 = arith.addf %106, %105 : vector<8x128xf32>
    %108 = arith.divf %106, %107 : vector<8x128xf32>
    %109 = vector.extract_strided_slice %90 {offsets = [0, 256], sizes = [8, 128], strides = [1, 1]} : vector<8x384xf32> to vector<8x128xf32>
    %110 = vector.extract_strided_slice %92 {offsets = [0, 256], sizes = [8, 128], strides = [1, 1]} : vector<8x384xf32> to vector<8x128xf32>
    %111 = vector.broadcast %10 : vector<1x128xf32> to vector<8x128xf32>
    %112 = arith.addf %110, %111 : vector<8x128xf32>
    %113 = arith.mulf %100, %112 : vector<8x128xf32>
    %114 = arith.addf %109, %113 : vector<8x128xf32>
    %115 = math.tanh %114 : vector<8x128xf32>
    %cst_35 = arith.constant 1.000000e+00 : f32
    %116 = vector.broadcast %cst_35 : f32 to vector<8x128xf32>
    %117 = arith.subf %116, %108 : vector<8x128xf32>
    %118 = arith.mulf %117, %115 : vector<8x128xf32>
    %119 = arith.mulf %108, %82 : vector<8x128xf32>
    %120 = arith.addf %118, %119 : vector<8x128xf32>
    %121 = arith.truncf %120 : vector<8x128xf32> to vector<8x128xbf16>
    %122 = arith.index_cast %c2_i32 : i32 to index
    %c0_36 = arith.constant 0 : index
    %c0_37 = arith.constant 0 : index
    %123 = vector.load %arg13[%122, %c0_36, %c0_37] : memref<8x8x128xbf16, #tpu.memory_space<vmem>>, vector<1x8x128xbf16>
    %124 = vector.shape_cast %123 : vector<1x8x128xbf16> to vector<8x128xbf16>
    %125 = vector.shape_cast %121 : vector<8x128xbf16> to vector<1x8x128xbf16>
    tpu.vector_store %arg13[%122, %c0_36, %c0_37], %125 {strides = array<i32>} : memref<8x8x128xbf16, #tpu.memory_space<vmem>>, vector<1x8x128xbf16>,
    %c3_i32 = arith.constant 3 : i32
    %126 = arith.index_cast %c3_i32 : i32 to index
    %c0_38 = arith.constant 0 : index
    %c0_39 = arith.constant 0 : index
    %127 = vector.load %arg12[%126, %c0_38, %c0_39] : memref<8x8x384xf32, #tpu.memory_space<vmem>>, vector<1x8x384xf32>
    %128 = vector.shape_cast %127 : vector<1x8x384xf32> to vector<8x384xf32>
    %129 = arith.truncf %120 : vector<8x128xf32> to vector<8x128xbf16>
    %cst_40 = arith.constant dense<0.000000e+00> : vector<8x384xf32>
    %130 = tpu.matmul %129, %9, %cst_40 {dimension_numbers = #tpu.dot_dimension_numbers<[1], [0], [0], [1], [0, 0, 1, 1], [], []>} : vector<8x128xbf16>, vector<128x384xbf16>, vector<8x384xf32> -> vector<8x384xf32>
    %131 = vector.extract_strided_slice %128 {offsets = [0, 0], sizes = [8, 128], strides = [1, 1]} : vector<8x384xf32> to vector<8x128xf32>
    %132 = vector.extract_strided_slice %130 {offsets = [0, 0], sizes = [8, 128], strides = [1, 1]} : vector<8x384xf32> to vector<8x128xf32>
    %133 = arith.addf %131, %132 : vector<8x128xf32>
    %134 = arith.negf %133 : vector<8x128xf32>
    %135 = math.exp %134 : vector<8x128xf32>
    %cst_41 = arith.constant 1.000000e+00 : f32
    %136 = vector.broadcast %cst_41 : f32 to vector<8x128xf32>
    %137 = arith.addf %136, %135 : vector<8x128xf32>
    %138 = arith.divf %136, %137 : vector<8x128xf32>
    %139 = vector.extract_strided_slice %128 {offsets = [0, 128], sizes = [8, 128], strides = [1, 1]} : vector<8x384xf32> to vector<8x128xf32>
    %140 = vector.extract_strided_slice %130 {offsets = [0, 128], sizes = [8, 128], strides = [1, 1]} : vector<8x384xf32> to vector<8x128xf32>
    %141 = arith.addf %139, %140 : vector<8x128xf32>
    %142 = arith.negf %141 : vector<8x128xf32>
    %143 = math.exp %142 : vector<8x128xf32>
    %cst_42 = arith.constant 1.000000e+00 : f32
    %144 = vector.broadcast %cst_42 : f32 to vector<8x128xf32>
    %145 = arith.addf %144, %143 : vector<8x128xf32>
    %146 = arith.divf %144, %145 : vector<8x128xf32>
    %147 = vector.extract_strided_slice %128 {offsets = [0, 256], sizes = [8, 128], strides = [1, 1]} : vector<8x384xf32> to vector<8x128xf32>
    %148 = vector.extract_strided_slice %130 {offsets = [0, 256], sizes = [8, 128], strides = [1, 1]} : vector<8x384xf32> to vector<8x128xf32>
    %149 = vector.broadcast %10 : vector<1x128xf32> to vector<8x128xf32>
    %150 = arith.addf %148, %149 : vector<8x128xf32>
    %151 = arith.mulf %138, %150 : vector<8x128xf32>
    %152 = arith.addf %147, %151 : vector<8x128xf32>
    %153 = math.tanh %152 : vector<8x128xf32>
    %cst_43 = arith.constant 1.000000e+00 : f32
    %154 = vector.broadcast %cst_43 : f32 to vector<8x128xf32>
    %155 = arith.subf %154, %146 : vector<8x128xf32>
    %156 = arith.mulf %155, %153 : vector<8x128xf32>
    %157 = arith.mulf %146, %120 : vector<8x128xf32>
    %158 = arith.addf %156, %157 : vector<8x128xf32>
    %159 = arith.truncf %158 : vector<8x128xf32> to vector<8x128xbf16>
    %160 = arith.index_cast %c3_i32 : i32 to index
    %c0_44 = arith.constant 0 : index
    %c0_45 = arith.constant 0 : index
    %161 = vector.load %arg13[%160, %c0_44, %c0_45] : memref<8x8x128xbf16, #tpu.memory_space<vmem>>, vector<1x8x128xbf16>
    %162 = vector.shape_cast %161 : vector<1x8x128xbf16> to vector<8x128xbf16>
    %163 = vector.shape_cast %159 : vector<8x128xbf16> to vector<1x8x128xbf16>
    tpu.vector_store %arg13[%160, %c0_44, %c0_45], %163 {strides = array<i32>} : memref<8x8x128xbf16, #tpu.memory_space<vmem>>, vector<1x8x128xbf16>,
    %c4_i32 = arith.constant 4 : i32
    %164 = arith.index_cast %c4_i32 : i32 to index
    %c0_46 = arith.constant 0 : index
    %c0_47 = arith.constant 0 : index
    %165 = vector.load %arg12[%164, %c0_46, %c0_47] : memref<8x8x384xf32, #tpu.memory_space<vmem>>, vector<1x8x384xf32>
    %166 = vector.shape_cast %165 : vector<1x8x384xf32> to vector<8x384xf32>
    %167 = arith.truncf %158 : vector<8x128xf32> to vector<8x128xbf16>
    %cst_48 = arith.constant dense<0.000000e+00> : vector<8x384xf32>
    %168 = tpu.matmul %167, %9, %cst_48 {dimension_numbers = #tpu.dot_dimension_numbers<[1], [0], [0], [1], [0, 0, 1, 1], [], []>} : vector<8x128xbf16>, vector<128x384xbf16>, vector<8x384xf32> -> vector<8x384xf32>
    %169 = vector.extract_strided_slice %166 {offsets = [0, 0], sizes = [8, 128], strides = [1, 1]} : vector<8x384xf32> to vector<8x128xf32>
    %170 = vector.extract_strided_slice %168 {offsets = [0, 0], sizes = [8, 128], strides = [1, 1]} : vector<8x384xf32> to vector<8x128xf32>
    %171 = arith.addf %169, %170 : vector<8x128xf32>
    %172 = arith.negf %171 : vector<8x128xf32>
    %173 = math.exp %172 : vector<8x128xf32>
    %cst_49 = arith.constant 1.000000e+00 : f32
    %174 = vector.broadcast %cst_49 : f32 to vector<8x128xf32>
    %175 = arith.addf %174, %173 : vector<8x128xf32>
    %176 = arith.divf %174, %175 : vector<8x128xf32>
    %177 = vector.extract_strided_slice %166 {offsets = [0, 128], sizes = [8, 128], strides = [1, 1]} : vector<8x384xf32> to vector<8x128xf32>
    %178 = vector.extract_strided_slice %168 {offsets = [0, 128], sizes = [8, 128], strides = [1, 1]} : vector<8x384xf32> to vector<8x128xf32>
    %179 = arith.addf %177, %178 : vector<8x128xf32>
    %180 = arith.negf %179 : vector<8x128xf32>
    %181 = math.exp %180 : vector<8x128xf32>
    %cst_50 = arith.constant 1.000000e+00 : f32
    %182 = vector.broadcast %cst_50 : f32 to vector<8x128xf32>
    %183 = arith.addf %182, %181 : vector<8x128xf32>
    %184 = arith.divf %182, %183 : vector<8x128xf32>
    %185 = vector.extract_strided_slice %166 {offsets = [0, 256], sizes = [8, 128], strides = [1, 1]} : vector<8x384xf32> to vector<8x128xf32>
    %186 = vector.extract_strided_slice %168 {offsets = [0, 256], sizes = [8, 128], strides = [1, 1]} : vector<8x384xf32> to vector<8x128xf32>
    %187 = vector.broadcast %10 : vector<1x128xf32> to vector<8x128xf32>
    %188 = arith.addf %186, %187 : vector<8x128xf32>
    %189 = arith.mulf %176, %188 : vector<8x128xf32>
    %190 = arith.addf %185, %189 : vector<8x128xf32>
    %191 = math.tanh %190 : vector<8x128xf32>
    %cst_51 = arith.constant 1.000000e+00 : f32
    %192 = vector.broadcast %cst_51 : f32 to vector<8x128xf32>
    %193 = arith.subf %192, %184 : vector<8x128xf32>
    %194 = arith.mulf %193, %191 : vector<8x128xf32>
    %195 = arith.mulf %184, %158 : vector<8x128xf32>
    %196 = arith.addf %194, %195 : vector<8x128xf32>
    %197 = arith.truncf %196 : vector<8x128xf32> to vector<8x128xbf16>
    %198 = arith.index_cast %c4_i32 : i32 to index
    %c0_52 = arith.constant 0 : index
    %c0_53 = arith.constant 0 : index
    %199 = vector.load %arg13[%198, %c0_52, %c0_53] : memref<8x8x128xbf16, #tpu.memory_space<vmem>>, vector<1x8x128xbf16>
    %200 = vector.shape_cast %199 : vector<1x8x128xbf16> to vector<8x128xbf16>
    %201 = vector.shape_cast %197 : vector<8x128xbf16> to vector<1x8x128xbf16>
    tpu.vector_store %arg13[%198, %c0_52, %c0_53], %201 {strides = array<i32>} : memref<8x8x128xbf16, #tpu.memory_space<vmem>>, vector<1x8x128xbf16>,
    %c5_i32 = arith.constant 5 : i32
    %202 = arith.index_cast %c5_i32 : i32 to index
    %c0_54 = arith.constant 0 : index
    %c0_55 = arith.constant 0 : index
    %203 = vector.load %arg12[%202, %c0_54, %c0_55] : memref<8x8x384xf32, #tpu.memory_space<vmem>>, vector<1x8x384xf32>
    %204 = vector.shape_cast %203 : vector<1x8x384xf32> to vector<8x384xf32>
    %205 = arith.truncf %196 : vector<8x128xf32> to vector<8x128xbf16>
    %cst_56 = arith.constant dense<0.000000e+00> : vector<8x384xf32>
    %206 = tpu.matmul %205, %9, %cst_56 {dimension_numbers = #tpu.dot_dimension_numbers<[1], [0], [0], [1], [0, 0, 1, 1], [], []>} : vector<8x128xbf16>, vector<128x384xbf16>, vector<8x384xf32> -> vector<8x384xf32>
    %207 = vector.extract_strided_slice %204 {offsets = [0, 0], sizes = [8, 128], strides = [1, 1]} : vector<8x384xf32> to vector<8x128xf32>
    %208 = vector.extract_strided_slice %206 {offsets = [0, 0], sizes = [8, 128], strides = [1, 1]} : vector<8x384xf32> to vector<8x128xf32>
    %209 = arith.addf %207, %208 : vector<8x128xf32>
    %210 = arith.negf %209 : vector<8x128xf32>
    %211 = math.exp %210 : vector<8x128xf32>
    %cst_57 = arith.constant 1.000000e+00 : f32
    %212 = vector.broadcast %cst_57 : f32 to vector<8x128xf32>
    %213 = arith.addf %212, %211 : vector<8x128xf32>
    %214 = arith.divf %212, %213 : vector<8x128xf32>
    %215 = vector.extract_strided_slice %204 {offsets = [0, 128], sizes = [8, 128], strides = [1, 1]} : vector<8x384xf32> to vector<8x128xf32>
    %216 = vector.extract_strided_slice %206 {offsets = [0, 128], sizes = [8, 128], strides = [1, 1]} : vector<8x384xf32> to vector<8x128xf32>
    %217 = arith.addf %215, %216 : vector<8x128xf32>
    %218 = arith.negf %217 : vector<8x128xf32>
    %219 = math.exp %218 : vector<8x128xf32>
    %cst_58 = arith.constant 1.000000e+00 : f32
    %220 = vector.broadcast %cst_58 : f32 to vector<8x128xf32>
    %221 = arith.addf %220, %219 : vector<8x128xf32>
    %222 = arith.divf %220, %221 : vector<8x128xf32>
    %223 = vector.extract_strided_slice %204 {offsets = [0, 256], sizes = [8, 128], strides = [1, 1]} : vector<8x384xf32> to vector<8x128xf32>
    %224 = vector.extract_strided_slice %206 {offsets = [0, 256], sizes = [8, 128], strides = [1, 1]} : vector<8x384xf32> to vector<8x128xf32>
    %225 = vector.broadcast %10 : vector<1x128xf32> to vector<8x128xf32>
    %226 = arith.addf %224, %225 : vector<8x128xf32>
    %227 = arith.mulf %214, %226 : vector<8x128xf32>
    %228 = arith.addf %223, %227 : vector<8x128xf32>
    %229 = math.tanh %228 : vector<8x128xf32>
    %cst_59 = arith.constant 1.000000e+00 : f32
    %230 = vector.broadcast %cst_59 : f32 to vector<8x128xf32>
    %231 = arith.subf %230, %222 : vector<8x128xf32>
    %232 = arith.mulf %231, %229 : vector<8x128xf32>
    %233 = arith.mulf %222, %196 : vector<8x128xf32>
    %234 = arith.addf %232, %233 : vector<8x128xf32>
    %235 = arith.truncf %234 : vector<8x128xf32> to vector<8x128xbf16>
    %236 = arith.index_cast %c5_i32 : i32 to index
    %c0_60 = arith.constant 0 : index
    %c0_61 = arith.constant 0 : index
    %237 = vector.load %arg13[%236, %c0_60, %c0_61] : memref<8x8x128xbf16, #tpu.memory_space<vmem>>, vector<1x8x128xbf16>
    %238 = vector.shape_cast %237 : vector<1x8x128xbf16> to vector<8x128xbf16>
    %239 = vector.shape_cast %235 : vector<8x128xbf16> to vector<1x8x128xbf16>
    tpu.vector_store %arg13[%236, %c0_60, %c0_61], %239 {strides = array<i32>} : memref<8x8x128xbf16, #tpu.memory_space<vmem>>, vector<1x8x128xbf16>,
    %c6_i32 = arith.constant 6 : i32
    %240 = arith.index_cast %c6_i32 : i32 to index
    %c0_62 = arith.constant 0 : index
    %c0_63 = arith.constant 0 : index
    %241 = vector.load %arg12[%240, %c0_62, %c0_63] : memref<8x8x384xf32, #tpu.memory_space<vmem>>, vector<1x8x384xf32>
    %242 = vector.shape_cast %241 : vector<1x8x384xf32> to vector<8x384xf32>
    %243 = arith.truncf %234 : vector<8x128xf32> to vector<8x128xbf16>
    %cst_64 = arith.constant dense<0.000000e+00> : vector<8x384xf32>
    %244 = tpu.matmul %243, %9, %cst_64 {dimension_numbers = #tpu.dot_dimension_numbers<[1], [0], [0], [1], [0, 0, 1, 1], [], []>} : vector<8x128xbf16>, vector<128x384xbf16>, vector<8x384xf32> -> vector<8x384xf32>
    %245 = vector.extract_strided_slice %242 {offsets = [0, 0], sizes = [8, 128], strides = [1, 1]} : vector<8x384xf32> to vector<8x128xf32>
    %246 = vector.extract_strided_slice %244 {offsets = [0, 0], sizes = [8, 128], strides = [1, 1]} : vector<8x384xf32> to vector<8x128xf32>
    %247 = arith.addf %245, %246 : vector<8x128xf32>
    %248 = arith.negf %247 : vector<8x128xf32>
    %249 = math.exp %248 : vector<8x128xf32>
    %cst_65 = arith.constant 1.000000e+00 : f32
    %250 = vector.broadcast %cst_65 : f32 to vector<8x128xf32>
    %251 = arith.addf %250, %249 : vector<8x128xf32>
    %252 = arith.divf %250, %251 : vector<8x128xf32>
    %253 = vector.extract_strided_slice %242 {offsets = [0, 128], sizes = [8, 128], strides = [1, 1]} : vector<8x384xf32> to vector<8x128xf32>
    %254 = vector.extract_strided_slice %244 {offsets = [0, 128], sizes = [8, 128], strides = [1, 1]} : vector<8x384xf32> to vector<8x128xf32>
    %255 = arith.addf %253, %254 : vector<8x128xf32>
    %256 = arith.negf %255 : vector<8x128xf32>
    %257 = math.exp %256 : vector<8x128xf32>
    %cst_66 = arith.constant 1.000000e+00 : f32
    %258 = vector.broadcast %cst_66 : f32 to vector<8x128xf32>
    %259 = arith.addf %258, %257 : vector<8x128xf32>
    %260 = arith.divf %258, %259 : vector<8x128xf32>
    %261 = vector.extract_strided_slice %242 {offsets = [0, 256], sizes = [8, 128], strides = [1, 1]} : vector<8x384xf32> to vector<8x128xf32>
    %262 = vector.extract_strided_slice %244 {offsets = [0, 256], sizes = [8, 128], strides = [1, 1]} : vector<8x384xf32> to vector<8x128xf32>
    %263 = vector.broadcast %10 : vector<1x128xf32> to vector<8x128xf32>
    %264 = arith.addf %262, %263 : vector<8x128xf32>
    %265 = arith.mulf %252, %264 : vector<8x128xf32>
    %266 = arith.addf %261, %265 : vector<8x128xf32>
    %267 = math.tanh %266 : vector<8x128xf32>
    %cst_67 = arith.constant 1.000000e+00 : f32
    %268 = vector.broadcast %cst_67 : f32 to vector<8x128xf32>
    %269 = arith.subf %268, %260 : vector<8x128xf32>
    %270 = arith.mulf %269, %267 : vector<8x128xf32>
    %271 = arith.mulf %260, %234 : vector<8x128xf32>
    %272 = arith.addf %270, %271 : vector<8x128xf32>
    %273 = arith.truncf %272 : vector<8x128xf32> to vector<8x128xbf16>
    %274 = arith.index_cast %c6_i32 : i32 to index
    %c0_68 = arith.constant 0 : index
    %c0_69 = arith.constant 0 : index
    %275 = vector.load %arg13[%274, %c0_68, %c0_69] : memref<8x8x128xbf16, #tpu.memory_space<vmem>>, vector<1x8x128xbf16>
    %276 = vector.shape_cast %275 : vector<1x8x128xbf16> to vector<8x128xbf16>
    %277 = vector.shape_cast %273 : vector<8x128xbf16> to vector<1x8x128xbf16>
    tpu.vector_store %arg13[%274, %c0_68, %c0_69], %277 {strides = array<i32>} : memref<8x8x128xbf16, #tpu.memory_space<vmem>>, vector<1x8x128xbf16>,
    %c7_i32 = arith.constant 7 : i32
    %278 = arith.index_cast %c7_i32 : i32 to index
    %c0_70 = arith.constant 0 : index
    %c0_71 = arith.constant 0 : index
    %279 = vector.load %arg12[%278, %c0_70, %c0_71] : memref<8x8x384xf32, #tpu.memory_space<vmem>>, vector<1x8x384xf32>
    %280 = vector.shape_cast %279 : vector<1x8x384xf32> to vector<8x384xf32>
    %281 = arith.truncf %272 : vector<8x128xf32> to vector<8x128xbf16>
    %cst_72 = arith.constant dense<0.000000e+00> : vector<8x384xf32>
    %282 = tpu.matmul %281, %9, %cst_72 {dimension_numbers = #tpu.dot_dimension_numbers<[1], [0], [0], [1], [0, 0, 1, 1], [], []>} : vector<8x128xbf16>, vector<128x384xbf16>, vector<8x384xf32> -> vector<8x384xf32>
    %283 = vector.extract_strided_slice %280 {offsets = [0, 0], sizes = [8, 128], strides = [1, 1]} : vector<8x384xf32> to vector<8x128xf32>
    %284 = vector.extract_strided_slice %282 {offsets = [0, 0], sizes = [8, 128], strides = [1, 1]} : vector<8x384xf32> to vector<8x128xf32>
    %285 = arith.addf %283, %284 : vector<8x128xf32>
    %286 = arith.negf %285 : vector<8x128xf32>
    %287 = math.exp %286 : vector<8x128xf32>
    %cst_73 = arith.constant 1.000000e+00 : f32
    %288 = vector.broadcast %cst_73 : f32 to vector<8x128xf32>
    %289 = arith.addf %288, %287 : vector<8x128xf32>
    %290 = arith.divf %288, %289 : vector<8x128xf32>
    %291 = vector.extract_strided_slice %280 {offsets = [0, 128], sizes = [8, 128], strides = [1, 1]} : vector<8x384xf32> to vector<8x128xf32>
    %292 = vector.extract_strided_slice %282 {offsets = [0, 128], sizes = [8, 128], strides = [1, 1]} : vector<8x384xf32> to vector<8x128xf32>
    %293 = arith.addf %291, %292 : vector<8x128xf32>
    %294 = arith.negf %293 : vector<8x128xf32>
    %295 = math.exp %294 : vector<8x128xf32>
    %cst_74 = arith.constant 1.000000e+00 : f32
    %296 = vector.broadcast %cst_74 : f32 to vector<8x128xf32>
    %297 = arith.addf %296, %295 : vector<8x128xf32>
    %298 = arith.divf %296, %297 : vector<8x128xf32>
    %299 = vector.extract_strided_slice %280 {offsets = [0, 256], sizes = [8, 128], strides = [1, 1]} : vector<8x384xf32> to vector<8x128xf32>
    %300 = vector.extract_strided_slice %282 {offsets = [0, 256], sizes = [8, 128], strides = [1, 1]} : vector<8x384xf32> to vector<8x128xf32>
    %301 = vector.broadcast %10 : vector<1x128xf32> to vector<8x128xf32>
    %302 = arith.addf %300, %301 : vector<8x128xf32>
    %303 = arith.mulf %290, %302 : vector<8x128xf32>
    %304 = arith.addf %299, %303 : vector<8x128xf32>
    %305 = math.tanh %304 : vector<8x128xf32>
    %cst_75 = arith.constant 1.000000e+00 : f32
    %306 = vector.broadcast %cst_75 : f32 to vector<8x128xf32>
    %307 = arith.subf %306, %298 : vector<8x128xf32>
    %308 = arith.mulf %307, %305 : vector<8x128xf32>
    %309 = arith.mulf %298, %272 : vector<8x128xf32>
    %310 = arith.addf %308, %309 : vector<8x128xf32>
    %311 = arith.truncf %310 : vector<8x128xf32> to vector<8x128xbf16>
    %312 = arith.index_cast %c7_i32 : i32 to index
    %c0_76 = arith.constant 0 : index
    %c0_77 = arith.constant 0 : index
    %313 = vector.load %arg13[%312, %c0_76, %c0_77] : memref<8x8x128xbf16, #tpu.memory_space<vmem>>, vector<1x8x128xbf16>
    %314 = vector.shape_cast %313 : vector<1x8x128xbf16> to vector<8x128xbf16>
    %315 = vector.shape_cast %311 : vector<8x128xbf16> to vector<1x8x128xbf16>
    tpu.vector_store %arg13[%312, %c0_76, %c0_77], %315 {strides = array<i32>} : memref<8x8x128xbf16, #tpu.memory_space<vmem>>, vector<1x8x128xbf16>,
    %c8_i32 = arith.constant 8 : i32
    %c0_78 = arith.constant 0 : index
    %c0_79 = arith.constant 0 : index
    %c0_80 = arith.constant 0 : index
    %316 = vector.load %arg13[%c0_78, %c0_79, %c0_80] : memref<8x8x128xbf16, #tpu.memory_space<vmem>>, vector<8x8x128xbf16>
    %317 = vector.shape_cast %316 : vector<8x8x128xbf16> to vector<64x128xbf16>
    %c0_81 = arith.constant 0 : index
    %c0_82 = arith.constant 0 : index
    %318 = vector.load %arg5[%c0_81, %c0_82] : memref<128x384xbf16, #tpu.memory_space<vmem>>, vector<128x384xbf16>
    %cst_83 = arith.constant dense<0.000000e+00> : vector<64x384xf32>
    %319 = tpu.matmul %317, %318, %cst_83 {dimension_numbers = #tpu.dot_dimension_numbers<[1], [0], [0], [1], [0, 0, 1, 1], [], []>} : vector<64x128xbf16>, vector<128x384xbf16>, vector<64x384xf32> -> vector<64x384xf32>
    %c0_84 = arith.constant 0 : index
    %c0_85 = arith.constant 0 : index
    %320 = vector.load %arg7[%c0_84, %c0_85] : memref<1x384xf32, #tpu.memory_space<vmem>>, vector<1x384xf32>
    %321 = vector.broadcast %320 : vector<1x384xf32> to vector<64x384xf32>
    %322 = arith.addf %319, %321 : vector<64x384xf32>
    %323 = vector.shape_cast %322 : vector<64x384xf32> to vector<8x8x384xf32>
    %c0_86 = arith.constant 0 : index
    %c0_87 = arith.constant 0 : index
    %c0_88 = arith.constant 0 : index
    %324 = vector.load %arg14[%c0_86, %c0_87, %c0_88] : memref<8x8x384xf32, #tpu.memory_space<vmem>>, vector<8x8x384xf32>
    tpu.vector_store %arg14[%c0_86, %c0_87, %c0_88], %323 {strides = array<i32>} : memref<8x8x384xf32, #tpu.memory_space<vmem>>, vector<8x8x384xf32>,
    %c0_89 = arith.constant 0 : index
    %c0_90 = arith.constant 0 : index
    %325 = vector.load %arg6[%c0_89, %c0_90] : memref<128x384xbf16, #tpu.memory_space<vmem>>, vector<128x384xbf16>
    %c0_91 = arith.constant 0 : index
    %c0_92 = arith.constant 0 : index
    %326 = vector.load %arg8[%c0_91, %c0_92] : memref<1x128xf32, #tpu.memory_space<vmem>>, vector<1x128xf32>
    %cst_93 = arith.constant 0.000000e+00 : f32
    %327 = vector.broadcast %cst_93 : f32 to vector<8x128xf32>
    %c0_i32_94 = arith.constant 0 : i32
    %328 = arith.index_cast %c0_i32_94 : i32 to index
    %c0_95 = arith.constant 0 : index
    %c0_96 = arith.constant 0 : index
    %329 = vector.load %arg14[%328, %c0_95, %c0_96] : memref<8x8x384xf32, #tpu.memory_space<vmem>>, vector<1x8x384xf32>
    %330 = vector.shape_cast %329 : vector<1x8x384xf32> to vector<8x384xf32>
    %331 = arith.truncf %327 : vector<8x128xf32> to vector<8x128xbf16>
    %cst_97 = arith.constant dense<0.000000e+00> : vector<8x384xf32>
    %332 = tpu.matmul %331, %325, %cst_97 {dimension_numbers = #tpu.dot_dimension_numbers<[1], [0], [0], [1], [0, 0, 1, 1], [], []>} : vector<8x128xbf16>, vector<128x384xbf16>, vector<8x384xf32> -> vector<8x384xf32>
    %333 = vector.extract_strided_slice %330 {offsets = [0, 0], sizes = [8, 128], strides = [1, 1]} : vector<8x384xf32> to vector<8x128xf32>
    %334 = vector.extract_strided_slice %332 {offsets = [0, 0], sizes = [8, 128], strides = [1, 1]} : vector<8x384xf32> to vector<8x128xf32>
    %335 = arith.addf %333, %334 : vector<8x128xf32>
    %336 = arith.negf %335 : vector<8x128xf32>
    %337 = math.exp %336 : vector<8x128xf32>
    %cst_98 = arith.constant 1.000000e+00 : f32
    %338 = vector.broadcast %cst_98 : f32 to vector<8x128xf32>
    %339 = arith.addf %338, %337 : vector<8x128xf32>
    %340 = arith.divf %338, %339 : vector<8x128xf32>
    %341 = vector.extract_strided_slice %330 {offsets = [0, 128], sizes = [8, 128], strides = [1, 1]} : vector<8x384xf32> to vector<8x128xf32>
    %342 = vector.extract_strided_slice %332 {offsets = [0, 128], sizes = [8, 128], strides = [1, 1]} : vector<8x384xf32> to vector<8x128xf32>
    %343 = arith.addf %341, %342 : vector<8x128xf32>
    %344 = arith.negf %343 : vector<8x128xf32>
    %345 = math.exp %344 : vector<8x128xf32>
    %cst_99 = arith.constant 1.000000e+00 : f32
    %346 = vector.broadcast %cst_99 : f32 to vector<8x128xf32>
    %347 = arith.addf %346, %345 : vector<8x128xf32>
    %348 = arith.divf %346, %347 : vector<8x128xf32>
    %349 = vector.extract_strided_slice %330 {offsets = [0, 256], sizes = [8, 128], strides = [1, 1]} : vector<8x384xf32> to vector<8x128xf32>
    %350 = vector.extract_strided_slice %332 {offsets = [0, 256], sizes = [8, 128], strides = [1, 1]} : vector<8x384xf32> to vector<8x128xf32>
    %351 = vector.broadcast %326 : vector<1x128xf32> to vector<8x128xf32>
    %352 = arith.addf %350, %351 : vector<8x128xf32>
    %353 = arith.mulf %340, %352 : vector<8x128xf32>
    %354 = arith.addf %349, %353 : vector<8x128xf32>
    %355 = math.tanh %354 : vector<8x128xf32>
    %cst_100 = arith.constant 1.000000e+00 : f32
    %356 = vector.broadcast %cst_100 : f32 to vector<8x128xf32>
    %357 = arith.subf %356, %348 : vector<8x128xf32>
    %358 = arith.mulf %357, %355 : vector<8x128xf32>
    %359 = arith.mulf %348, %327 : vector<8x128xf32>
    %360 = arith.addf %358, %359 : vector<8x128xf32>
    %361 = arith.truncf %360 : vector<8x128xf32> to vector<8x128xbf16>
    %362 = arith.index_cast %c0_i32_94 : i32 to index
    %c0_101 = arith.constant 0 : index
    %c0_102 = arith.constant 0 : index
    %363 = vector.load %arg15[%362, %c0_101, %c0_102] : memref<8x8x128xbf16, #tpu.memory_space<vmem>>, vector<1x8x128xbf16>
    %364 = vector.shape_cast %363 : vector<1x8x128xbf16> to vector<8x128xbf16>
    %365 = vector.shape_cast %361 : vector<8x128xbf16> to vector<1x8x128xbf16>
    tpu.vector_store %arg15[%362, %c0_101, %c0_102], %365 {strides = array<i32>} : memref<8x8x128xbf16, #tpu.memory_space<vmem>>, vector<1x8x128xbf16>,
    %c1_i32_103 = arith.constant 1 : i32
    %366 = arith.index_cast %c1_i32_103 : i32 to index
    %c0_104 = arith.constant 0 : index
    %c0_105 = arith.constant 0 : index
    %367 = vector.load %arg14[%366, %c0_104, %c0_105] : memref<8x8x384xf32, #tpu.memory_space<vmem>>, vector<1x8x384xf32>
    %368 = vector.shape_cast %367 : vector<1x8x384xf32> to vector<8x384xf32>
    %369 = arith.truncf %360 : vector<8x128xf32> to vector<8x128xbf16>
    %cst_106 = arith.constant dense<0.000000e+00> : vector<8x384xf32>
    %370 = tpu.matmul %369, %325, %cst_106 {dimension_numbers = #tpu.dot_dimension_numbers<[1], [0], [0], [1], [0, 0, 1, 1], [], []>} : vector<8x128xbf16>, vector<128x384xbf16>, vector<8x384xf32> -> vector<8x384xf32>
    %371 = vector.extract_strided_slice %368 {offsets = [0, 0], sizes = [8, 128], strides = [1, 1]} : vector<8x384xf32> to vector<8x128xf32>
    %372 = vector.extract_strided_slice %370 {offsets = [0, 0], sizes = [8, 128], strides = [1, 1]} : vector<8x384xf32> to vector<8x128xf32>
    %373 = arith.addf %371, %372 : vector<8x128xf32>
    %374 = arith.negf %373 : vector<8x128xf32>
    %375 = math.exp %374 : vector<8x128xf32>
    %cst_107 = arith.constant 1.000000e+00 : f32
    %376 = vector.broadcast %cst_107 : f32 to vector<8x128xf32>
    %377 = arith.addf %376, %375 : vector<8x128xf32>
    %378 = arith.divf %376, %377 : vector<8x128xf32>
    %379 = vector.extract_strided_slice %368 {offsets = [0, 128], sizes = [8, 128], strides = [1, 1]} : vector<8x384xf32> to vector<8x128xf32>
    %380 = vector.extract_strided_slice %370 {offsets = [0, 128], sizes = [8, 128], strides = [1, 1]} : vector<8x384xf32> to vector<8x128xf32>
    %381 = arith.addf %379, %380 : vector<8x128xf32>
    %382 = arith.negf %381 : vector<8x128xf32>
    %383 = math.exp %382 : vector<8x128xf32>
    %cst_108 = arith.constant 1.000000e+00 : f32
    %384 = vector.broadcast %cst_108 : f32 to vector<8x128xf32>
    %385 = arith.addf %384, %383 : vector<8x128xf32>
    %386 = arith.divf %384, %385 : vector<8x128xf32>
    %387 = vector.extract_strided_slice %368 {offsets = [0, 256], sizes = [8, 128], strides = [1, 1]} : vector<8x384xf32> to vector<8x128xf32>
    %388 = vector.extract_strided_slice %370 {offsets = [0, 256], sizes = [8, 128], strides = [1, 1]} : vector<8x384xf32> to vector<8x128xf32>
    %389 = vector.broadcast %326 : vector<1x128xf32> to vector<8x128xf32>
    %390 = arith.addf %388, %389 : vector<8x128xf32>
    %391 = arith.mulf %378, %390 : vector<8x128xf32>
    %392 = arith.addf %387, %391 : vector<8x128xf32>
    %393 = math.tanh %392 : vector<8x128xf32>
    %cst_109 = arith.constant 1.000000e+00 : f32
    %394 = vector.broadcast %cst_109 : f32 to vector<8x128xf32>
    %395 = arith.subf %394, %386 : vector<8x128xf32>
    %396 = arith.mulf %395, %393 : vector<8x128xf32>
    %397 = arith.mulf %386, %360 : vector<8x128xf32>
    %398 = arith.addf %396, %397 : vector<8x128xf32>
    %399 = arith.truncf %398 : vector<8x128xf32> to vector<8x128xbf16>
    %400 = arith.index_cast %c1_i32_103 : i32 to index
    %c0_110 = arith.constant 0 : index
    %c0_111 = arith.constant 0 : index
    %401 = vector.load %arg15[%400, %c0_110, %c0_111] : memref<8x8x128xbf16, #tpu.memory_space<vmem>>, vector<1x8x128xbf16>
    %402 = vector.shape_cast %401 : vector<1x8x128xbf16> to vector<8x128xbf16>
    %403 = vector.shape_cast %399 : vector<8x128xbf16> to vector<1x8x128xbf16>
    tpu.vector_store %arg15[%400, %c0_110, %c0_111], %403 {strides = array<i32>} : memref<8x8x128xbf16, #tpu.memory_space<vmem>>, vector<1x8x128xbf16>,
    %c2_i32_112 = arith.constant 2 : i32
    %404 = arith.index_cast %c2_i32_112 : i32 to index
    %c0_113 = arith.constant 0 : index
    %c0_114 = arith.constant 0 : index
    %405 = vector.load %arg14[%404, %c0_113, %c0_114] : memref<8x8x384xf32, #tpu.memory_space<vmem>>, vector<1x8x384xf32>
    %406 = vector.shape_cast %405 : vector<1x8x384xf32> to vector<8x384xf32>
    %407 = arith.truncf %398 : vector<8x128xf32> to vector<8x128xbf16>
    %cst_115 = arith.constant dense<0.000000e+00> : vector<8x384xf32>
    %408 = tpu.matmul %407, %325, %cst_115 {dimension_numbers = #tpu.dot_dimension_numbers<[1], [0], [0], [1], [0, 0, 1, 1], [], []>} : vector<8x128xbf16>, vector<128x384xbf16>, vector<8x384xf32> -> vector<8x384xf32>
    %409 = vector.extract_strided_slice %406 {offsets = [0, 0], sizes = [8, 128], strides = [1, 1]} : vector<8x384xf32> to vector<8x128xf32>
    %410 = vector.extract_strided_slice %408 {offsets = [0, 0], sizes = [8, 128], strides = [1, 1]} : vector<8x384xf32> to vector<8x128xf32>
    %411 = arith.addf %409, %410 : vector<8x128xf32>
    %412 = arith.negf %411 : vector<8x128xf32>
    %413 = math.exp %412 : vector<8x128xf32>
    %cst_116 = arith.constant 1.000000e+00 : f32
    %414 = vector.broadcast %cst_116 : f32 to vector<8x128xf32>
    %415 = arith.addf %414, %413 : vector<8x128xf32>
    %416 = arith.divf %414, %415 : vector<8x128xf32>
    %417 = vector.extract_strided_slice %406 {offsets = [0, 128], sizes = [8, 128], strides = [1, 1]} : vector<8x384xf32> to vector<8x128xf32>
    %418 = vector.extract_strided_slice %408 {offsets = [0, 128], sizes = [8, 128], strides = [1, 1]} : vector<8x384xf32> to vector<8x128xf32>
    %419 = arith.addf %417, %418 : vector<8x128xf32>
    %420 = arith.negf %419 : vector<8x128xf32>
    %421 = math.exp %420 : vector<8x128xf32>
    %cst_117 = arith.constant 1.000000e+00 : f32
    %422 = vector.broadcast %cst_117 : f32 to vector<8x128xf32>
    %423 = arith.addf %422, %421 : vector<8x128xf32>
    %424 = arith.divf %422, %423 : vector<8x128xf32>
    %425 = vector.extract_strided_slice %406 {offsets = [0, 256], sizes = [8, 128], strides = [1, 1]} : vector<8x384xf32> to vector<8x128xf32>
    %426 = vector.extract_strided_slice %408 {offsets = [0, 256], sizes = [8, 128], strides = [1, 1]} : vector<8x384xf32> to vector<8x128xf32>
    %427 = vector.broadcast %326 : vector<1x128xf32> to vector<8x128xf32>
    %428 = arith.addf %426, %427 : vector<8x128xf32>
    %429 = arith.mulf %416, %428 : vector<8x128xf32>
    %430 = arith.addf %425, %429 : vector<8x128xf32>
    %431 = math.tanh %430 : vector<8x128xf32>
    %cst_118 = arith.constant 1.000000e+00 : f32
    %432 = vector.broadcast %cst_118 : f32 to vector<8x128xf32>
    %433 = arith.subf %432, %424 : vector<8x128xf32>
    %434 = arith.mulf %433, %431 : vector<8x128xf32>
    %435 = arith.mulf %424, %398 : vector<8x128xf32>
    %436 = arith.addf %434, %435 : vector<8x128xf32>
    %437 = arith.truncf %436 : vector<8x128xf32> to vector<8x128xbf16>
    %438 = arith.index_cast %c2_i32_112 : i32 to index
    %c0_119 = arith.constant 0 : index
    %c0_120 = arith.constant 0 : index
    %439 = vector.load %arg15[%438, %c0_119, %c0_120] : memref<8x8x128xbf16, #tpu.memory_space<vmem>>, vector<1x8x128xbf16>
    %440 = vector.shape_cast %439 : vector<1x8x128xbf16> to vector<8x128xbf16>
    %441 = vector.shape_cast %437 : vector<8x128xbf16> to vector<1x8x128xbf16>
    tpu.vector_store %arg15[%438, %c0_119, %c0_120], %441 {strides = array<i32>} : memref<8x8x128xbf16, #tpu.memory_space<vmem>>, vector<1x8x128xbf16>,
    %c3_i32_121 = arith.constant 3 : i32
    %442 = arith.index_cast %c3_i32_121 : i32 to index
    %c0_122 = arith.constant 0 : index
    %c0_123 = arith.constant 0 : index
    %443 = vector.load %arg14[%442, %c0_122, %c0_123] : memref<8x8x384xf32, #tpu.memory_space<vmem>>, vector<1x8x384xf32>
    %444 = vector.shape_cast %443 : vector<1x8x384xf32> to vector<8x384xf32>
    %445 = arith.truncf %436 : vector<8x128xf32> to vector<8x128xbf16>
    %cst_124 = arith.constant dense<0.000000e+00> : vector<8x384xf32>
    %446 = tpu.matmul %445, %325, %cst_124 {dimension_numbers = #tpu.dot_dimension_numbers<[1], [0], [0], [1], [0, 0, 1, 1], [], []>} : vector<8x128xbf16>, vector<128x384xbf16>, vector<8x384xf32> -> vector<8x384xf32>
    %447 = vector.extract_strided_slice %444 {offsets = [0, 0], sizes = [8, 128], strides = [1, 1]} : vector<8x384xf32> to vector<8x128xf32>
    %448 = vector.extract_strided_slice %446 {offsets = [0, 0], sizes = [8, 128], strides = [1, 1]} : vector<8x384xf32> to vector<8x128xf32>
    %449 = arith.addf %447, %448 : vector<8x128xf32>
    %450 = arith.negf %449 : vector<8x128xf32>
    %451 = math.exp %450 : vector<8x128xf32>
    %cst_125 = arith.constant 1.000000e+00 : f32
    %452 = vector.broadcast %cst_125 : f32 to vector<8x128xf32>
    %453 = arith.addf %452, %451 : vector<8x128xf32>
    %454 = arith.divf %452, %453 : vector<8x128xf32>
    %455 = vector.extract_strided_slice %444 {offsets = [0, 128], sizes = [8, 128], strides = [1, 1]} : vector<8x384xf32> to vector<8x128xf32>
    %456 = vector.extract_strided_slice %446 {offsets = [0, 128], sizes = [8, 128], strides = [1, 1]} : vector<8x384xf32> to vector<8x128xf32>
    %457 = arith.addf %455, %456 : vector<8x128xf32>
    %458 = arith.negf %457 : vector<8x128xf32>
    %459 = math.exp %458 : vector<8x128xf32>
    %cst_126 = arith.constant 1.000000e+00 : f32
    %460 = vector.broadcast %cst_126 : f32 to vector<8x128xf32>
    %461 = arith.addf %460, %459 : vector<8x128xf32>
    %462 = arith.divf %460, %461 : vector<8x128xf32>
    %463 = vector.extract_strided_slice %444 {offsets = [0, 256], sizes = [8, 128], strides = [1, 1]} : vector<8x384xf32> to vector<8x128xf32>
    %464 = vector.extract_strided_slice %446 {offsets = [0, 256], sizes = [8, 128], strides = [1, 1]} : vector<8x384xf32> to vector<8x128xf32>
    %465 = vector.broadcast %326 : vector<1x128xf32> to vector<8x128xf32>
    %466 = arith.addf %464, %465 : vector<8x128xf32>
    %467 = arith.mulf %454, %466 : vector<8x128xf32>
    %468 = arith.addf %463, %467 : vector<8x128xf32>
    %469 = math.tanh %468 : vector<8x128xf32>
    %cst_127 = arith.constant 1.000000e+00 : f32
    %470 = vector.broadcast %cst_127 : f32 to vector<8x128xf32>
    %471 = arith.subf %470, %462 : vector<8x128xf32>
    %472 = arith.mulf %471, %469 : vector<8x128xf32>
    %473 = arith.mulf %462, %436 : vector<8x128xf32>
    %474 = arith.addf %472, %473 : vector<8x128xf32>
    %475 = arith.truncf %474 : vector<8x128xf32> to vector<8x128xbf16>
    %476 = arith.index_cast %c3_i32_121 : i32 to index
    %c0_128 = arith.constant 0 : index
    %c0_129 = arith.constant 0 : index
    %477 = vector.load %arg15[%476, %c0_128, %c0_129] : memref<8x8x128xbf16, #tpu.memory_space<vmem>>, vector<1x8x128xbf16>
    %478 = vector.shape_cast %477 : vector<1x8x128xbf16> to vector<8x128xbf16>
    %479 = vector.shape_cast %475 : vector<8x128xbf16> to vector<1x8x128xbf16>
    tpu.vector_store %arg15[%476, %c0_128, %c0_129], %479 {strides = array<i32>} : memref<8x8x128xbf16, #tpu.memory_space<vmem>>, vector<1x8x128xbf16>,
    %c4_i32_130 = arith.constant 4 : i32
    %480 = arith.index_cast %c4_i32_130 : i32 to index
    %c0_131 = arith.constant 0 : index
    %c0_132 = arith.constant 0 : index
    %481 = vector.load %arg14[%480, %c0_131, %c0_132] : memref<8x8x384xf32, #tpu.memory_space<vmem>>, vector<1x8x384xf32>
    %482 = vector.shape_cast %481 : vector<1x8x384xf32> to vector<8x384xf32>
    %483 = arith.truncf %474 : vector<8x128xf32> to vector<8x128xbf16>
    %cst_133 = arith.constant dense<0.000000e+00> : vector<8x384xf32>
    %484 = tpu.matmul %483, %325, %cst_133 {dimension_numbers = #tpu.dot_dimension_numbers<[1], [0], [0], [1], [0, 0, 1, 1], [], []>} : vector<8x128xbf16>, vector<128x384xbf16>, vector<8x384xf32> -> vector<8x384xf32>
    %485 = vector.extract_strided_slice %482 {offsets = [0, 0], sizes = [8, 128], strides = [1, 1]} : vector<8x384xf32> to vector<8x128xf32>
    %486 = vector.extract_strided_slice %484 {offsets = [0, 0], sizes = [8, 128], strides = [1, 1]} : vector<8x384xf32> to vector<8x128xf32>
    %487 = arith.addf %485, %486 : vector<8x128xf32>
    %488 = arith.negf %487 : vector<8x128xf32>
    %489 = math.exp %488 : vector<8x128xf32>
    %cst_134 = arith.constant 1.000000e+00 : f32
    %490 = vector.broadcast %cst_134 : f32 to vector<8x128xf32>
    %491 = arith.addf %490, %489 : vector<8x128xf32>
    %492 = arith.divf %490, %491 : vector<8x128xf32>
    %493 = vector.extract_strided_slice %482 {offsets = [0, 128], sizes = [8, 128], strides = [1, 1]} : vector<8x384xf32> to vector<8x128xf32>
    %494 = vector.extract_strided_slice %484 {offsets = [0, 128], sizes = [8, 128], strides = [1, 1]} : vector<8x384xf32> to vector<8x128xf32>
    %495 = arith.addf %493, %494 : vector<8x128xf32>
    %496 = arith.negf %495 : vector<8x128xf32>
    %497 = math.exp %496 : vector<8x128xf32>
    %cst_135 = arith.constant 1.000000e+00 : f32
    %498 = vector.broadcast %cst_135 : f32 to vector<8x128xf32>
    %499 = arith.addf %498, %497 : vector<8x128xf32>
    %500 = arith.divf %498, %499 : vector<8x128xf32>
    %501 = vector.extract_strided_slice %482 {offsets = [0, 256], sizes = [8, 128], strides = [1, 1]} : vector<8x384xf32> to vector<8x128xf32>
    %502 = vector.extract_strided_slice %484 {offsets = [0, 256], sizes = [8, 128], strides = [1, 1]} : vector<8x384xf32> to vector<8x128xf32>
    %503 = vector.broadcast %326 : vector<1x128xf32> to vector<8x128xf32>
    %504 = arith.addf %502, %503 : vector<8x128xf32>
    %505 = arith.mulf %492, %504 : vector<8x128xf32>
    %506 = arith.addf %501, %505 : vector<8x128xf32>
    %507 = math.tanh %506 : vector<8x128xf32>
    %cst_136 = arith.constant 1.000000e+00 : f32
    %508 = vector.broadcast %cst_136 : f32 to vector<8x128xf32>
    %509 = arith.subf %508, %500 : vector<8x128xf32>
    %510 = arith.mulf %509, %507 : vector<8x128xf32>
    %511 = arith.mulf %500, %474 : vector<8x128xf32>
    %512 = arith.addf %510, %511 : vector<8x128xf32>
    %513 = arith.truncf %512 : vector<8x128xf32> to vector<8x128xbf16>
    %514 = arith.index_cast %c4_i32_130 : i32 to index
    %c0_137 = arith.constant 0 : index
    %c0_138 = arith.constant 0 : index
    %515 = vector.load %arg15[%514, %c0_137, %c0_138] : memref<8x8x128xbf16, #tpu.memory_space<vmem>>, vector<1x8x128xbf16>
    %516 = vector.shape_cast %515 : vector<1x8x128xbf16> to vector<8x128xbf16>
    %517 = vector.shape_cast %513 : vector<8x128xbf16> to vector<1x8x128xbf16>
    tpu.vector_store %arg15[%514, %c0_137, %c0_138], %517 {strides = array<i32>} : memref<8x8x128xbf16, #tpu.memory_space<vmem>>, vector<1x8x128xbf16>,
    %c5_i32_139 = arith.constant 5 : i32
    %518 = arith.index_cast %c5_i32_139 : i32 to index
    %c0_140 = arith.constant 0 : index
    %c0_141 = arith.constant 0 : index
    %519 = vector.load %arg14[%518, %c0_140, %c0_141] : memref<8x8x384xf32, #tpu.memory_space<vmem>>, vector<1x8x384xf32>
    %520 = vector.shape_cast %519 : vector<1x8x384xf32> to vector<8x384xf32>
    %521 = arith.truncf %512 : vector<8x128xf32> to vector<8x128xbf16>
    %cst_142 = arith.constant dense<0.000000e+00> : vector<8x384xf32>
    %522 = tpu.matmul %521, %325, %cst_142 {dimension_numbers = #tpu.dot_dimension_numbers<[1], [0], [0], [1], [0, 0, 1, 1], [], []>} : vector<8x128xbf16>, vector<128x384xbf16>, vector<8x384xf32> -> vector<8x384xf32>
    %523 = vector.extract_strided_slice %520 {offsets = [0, 0], sizes = [8, 128], strides = [1, 1]} : vector<8x384xf32> to vector<8x128xf32>
    %524 = vector.extract_strided_slice %522 {offsets = [0, 0], sizes = [8, 128], strides = [1, 1]} : vector<8x384xf32> to vector<8x128xf32>
    %525 = arith.addf %523, %524 : vector<8x128xf32>
    %526 = arith.negf %525 : vector<8x128xf32>
    %527 = math.exp %526 : vector<8x128xf32>
    %cst_143 = arith.constant 1.000000e+00 : f32
    %528 = vector.broadcast %cst_143 : f32 to vector<8x128xf32>
    %529 = arith.addf %528, %527 : vector<8x128xf32>
    %530 = arith.divf %528, %529 : vector<8x128xf32>
    %531 = vector.extract_strided_slice %520 {offsets = [0, 128], sizes = [8, 128], strides = [1, 1]} : vector<8x384xf32> to vector<8x128xf32>
    %532 = vector.extract_strided_slice %522 {offsets = [0, 128], sizes = [8, 128], strides = [1, 1]} : vector<8x384xf32> to vector<8x128xf32>
    %533 = arith.addf %531, %532 : vector<8x128xf32>
    %534 = arith.negf %533 : vector<8x128xf32>
    %535 = math.exp %534 : vector<8x128xf32>
    %cst_144 = arith.constant 1.000000e+00 : f32
    %536 = vector.broadcast %cst_144 : f32 to vector<8x128xf32>
    %537 = arith.addf %536, %535 : vector<8x128xf32>
    %538 = arith.divf %536, %537 : vector<8x128xf32>
    %539 = vector.extract_strided_slice %520 {offsets = [0, 256], sizes = [8, 128], strides = [1, 1]} : vector<8x384xf32> to vector<8x128xf32>
    %540 = vector.extract_strided_slice %522 {offsets = [0, 256], sizes = [8, 128], strides = [1, 1]} : vector<8x384xf32> to vector<8x128xf32>
    %541 = vector.broadcast %326 : vector<1x128xf32> to vector<8x128xf32>
    %542 = arith.addf %540, %541 : vector<8x128xf32>
    %543 = arith.mulf %530, %542 : vector<8x128xf32>
    %544 = arith.addf %539, %543 : vector<8x128xf32>
    %545 = math.tanh %544 : vector<8x128xf32>
    %cst_145 = arith.constant 1.000000e+00 : f32
    %546 = vector.broadcast %cst_145 : f32 to vector<8x128xf32>
    %547 = arith.subf %546, %538 : vector<8x128xf32>
    %548 = arith.mulf %547, %545 : vector<8x128xf32>
    %549 = arith.mulf %538, %512 : vector<8x128xf32>
    %550 = arith.addf %548, %549 : vector<8x128xf32>
    %551 = arith.truncf %550 : vector<8x128xf32> to vector<8x128xbf16>
    %552 = arith.index_cast %c5_i32_139 : i32 to index
    %c0_146 = arith.constant 0 : index
    %c0_147 = arith.constant 0 : index
    %553 = vector.load %arg15[%552, %c0_146, %c0_147] : memref<8x8x128xbf16, #tpu.memory_space<vmem>>, vector<1x8x128xbf16>
    %554 = vector.shape_cast %553 : vector<1x8x128xbf16> to vector<8x128xbf16>
    %555 = vector.shape_cast %551 : vector<8x128xbf16> to vector<1x8x128xbf16>
    tpu.vector_store %arg15[%552, %c0_146, %c0_147], %555 {strides = array<i32>} : memref<8x8x128xbf16, #tpu.memory_space<vmem>>, vector<1x8x128xbf16>,
    %c6_i32_148 = arith.constant 6 : i32
    %556 = arith.index_cast %c6_i32_148 : i32 to index
    %c0_149 = arith.constant 0 : index
    %c0_150 = arith.constant 0 : index
    %557 = vector.load %arg14[%556, %c0_149, %c0_150] : memref<8x8x384xf32, #tpu.memory_space<vmem>>, vector<1x8x384xf32>
    %558 = vector.shape_cast %557 : vector<1x8x384xf32> to vector<8x384xf32>
    %559 = arith.truncf %550 : vector<8x128xf32> to vector<8x128xbf16>
    %cst_151 = arith.constant dense<0.000000e+00> : vector<8x384xf32>
    %560 = tpu.matmul %559, %325, %cst_151 {dimension_numbers = #tpu.dot_dimension_numbers<[1], [0], [0], [1], [0, 0, 1, 1], [], []>} : vector<8x128xbf16>, vector<128x384xbf16>, vector<8x384xf32> -> vector<8x384xf32>
    %561 = vector.extract_strided_slice %558 {offsets = [0, 0], sizes = [8, 128], strides = [1, 1]} : vector<8x384xf32> to vector<8x128xf32>
    %562 = vector.extract_strided_slice %560 {offsets = [0, 0], sizes = [8, 128], strides = [1, 1]} : vector<8x384xf32> to vector<8x128xf32>
    %563 = arith.addf %561, %562 : vector<8x128xf32>
    %564 = arith.negf %563 : vector<8x128xf32>
    %565 = math.exp %564 : vector<8x128xf32>
    %cst_152 = arith.constant 1.000000e+00 : f32
    %566 = vector.broadcast %cst_152 : f32 to vector<8x128xf32>
    %567 = arith.addf %566, %565 : vector<8x128xf32>
    %568 = arith.divf %566, %567 : vector<8x128xf32>
    %569 = vector.extract_strided_slice %558 {offsets = [0, 128], sizes = [8, 128], strides = [1, 1]} : vector<8x384xf32> to vector<8x128xf32>
    %570 = vector.extract_strided_slice %560 {offsets = [0, 128], sizes = [8, 128], strides = [1, 1]} : vector<8x384xf32> to vector<8x128xf32>
    %571 = arith.addf %569, %570 : vector<8x128xf32>
    %572 = arith.negf %571 : vector<8x128xf32>
    %573 = math.exp %572 : vector<8x128xf32>
    %cst_153 = arith.constant 1.000000e+00 : f32
    %574 = vector.broadcast %cst_153 : f32 to vector<8x128xf32>
    %575 = arith.addf %574, %573 : vector<8x128xf32>
    %576 = arith.divf %574, %575 : vector<8x128xf32>
    %577 = vector.extract_strided_slice %558 {offsets = [0, 256], sizes = [8, 128], strides = [1, 1]} : vector<8x384xf32> to vector<8x128xf32>
    %578 = vector.extract_strided_slice %560 {offsets = [0, 256], sizes = [8, 128], strides = [1, 1]} : vector<8x384xf32> to vector<8x128xf32>
    %579 = vector.broadcast %326 : vector<1x128xf32> to vector<8x128xf32>
    %580 = arith.addf %578, %579 : vector<8x128xf32>
    %581 = arith.mulf %568, %580 : vector<8x128xf32>
    %582 = arith.addf %577, %581 : vector<8x128xf32>
    %583 = math.tanh %582 : vector<8x128xf32>
    %cst_154 = arith.constant 1.000000e+00 : f32
    %584 = vector.broadcast %cst_154 : f32 to vector<8x128xf32>
    %585 = arith.subf %584, %576 : vector<8x128xf32>
    %586 = arith.mulf %585, %583 : vector<8x128xf32>
    %587 = arith.mulf %576, %550 : vector<8x128xf32>
    %588 = arith.addf %586, %587 : vector<8x128xf32>
    %589 = arith.truncf %588 : vector<8x128xf32> to vector<8x128xbf16>
    %590 = arith.index_cast %c6_i32_148 : i32 to index
    %c0_155 = arith.constant 0 : index
    %c0_156 = arith.constant 0 : index
    %591 = vector.load %arg15[%590, %c0_155, %c0_156] : memref<8x8x128xbf16, #tpu.memory_space<vmem>>, vector<1x8x128xbf16>
    %592 = vector.shape_cast %591 : vector<1x8x128xbf16> to vector<8x128xbf16>
    %593 = vector.shape_cast %589 : vector<8x128xbf16> to vector<1x8x128xbf16>
    tpu.vector_store %arg15[%590, %c0_155, %c0_156], %593 {strides = array<i32>} : memref<8x8x128xbf16, #tpu.memory_space<vmem>>, vector<1x8x128xbf16>,
    %c7_i32_157 = arith.constant 7 : i32
    %594 = arith.index_cast %c7_i32_157 : i32 to index
    %c0_158 = arith.constant 0 : index
    %c0_159 = arith.constant 0 : index
    %595 = vector.load %arg14[%594, %c0_158, %c0_159] : memref<8x8x384xf32, #tpu.memory_space<vmem>>, vector<1x8x384xf32>
    %596 = vector.shape_cast %595 : vector<1x8x384xf32> to vector<8x384xf32>
    %597 = arith.truncf %588 : vector<8x128xf32> to vector<8x128xbf16>
    %cst_160 = arith.constant dense<0.000000e+00> : vector<8x384xf32>
    %598 = tpu.matmul %597, %325, %cst_160 {dimension_numbers = #tpu.dot_dimension_numbers<[1], [0], [0], [1], [0, 0, 1, 1], [], []>} : vector<8x128xbf16>, vector<128x384xbf16>, vector<8x384xf32> -> vector<8x384xf32>
    %599 = vector.extract_strided_slice %596 {offsets = [0, 0], sizes = [8, 128], strides = [1, 1]} : vector<8x384xf32> to vector<8x128xf32>
    %600 = vector.extract_strided_slice %598 {offsets = [0, 0], sizes = [8, 128], strides = [1, 1]} : vector<8x384xf32> to vector<8x128xf32>
    %601 = arith.addf %599, %600 : vector<8x128xf32>
    %602 = arith.negf %601 : vector<8x128xf32>
    %603 = math.exp %602 : vector<8x128xf32>
    %cst_161 = arith.constant 1.000000e+00 : f32
    %604 = vector.broadcast %cst_161 : f32 to vector<8x128xf32>
    %605 = arith.addf %604, %603 : vector<8x128xf32>
    %606 = arith.divf %604, %605 : vector<8x128xf32>
    %607 = vector.extract_strided_slice %596 {offsets = [0, 128], sizes = [8, 128], strides = [1, 1]} : vector<8x384xf32> to vector<8x128xf32>
    %608 = vector.extract_strided_slice %598 {offsets = [0, 128], sizes = [8, 128], strides = [1, 1]} : vector<8x384xf32> to vector<8x128xf32>
    %609 = arith.addf %607, %608 : vector<8x128xf32>
    %610 = arith.negf %609 : vector<8x128xf32>
    %611 = math.exp %610 : vector<8x128xf32>
    %cst_162 = arith.constant 1.000000e+00 : f32
    %612 = vector.broadcast %cst_162 : f32 to vector<8x128xf32>
    %613 = arith.addf %612, %611 : vector<8x128xf32>
    %614 = arith.divf %612, %613 : vector<8x128xf32>
    %615 = vector.extract_strided_slice %596 {offsets = [0, 256], sizes = [8, 128], strides = [1, 1]} : vector<8x384xf32> to vector<8x128xf32>
    %616 = vector.extract_strided_slice %598 {offsets = [0, 256], sizes = [8, 128], strides = [1, 1]} : vector<8x384xf32> to vector<8x128xf32>
    %617 = vector.broadcast %326 : vector<1x128xf32> to vector<8x128xf32>
    %618 = arith.addf %616, %617 : vector<8x128xf32>
    %619 = arith.mulf %606, %618 : vector<8x128xf32>
    %620 = arith.addf %615, %619 : vector<8x128xf32>
    %621 = math.tanh %620 : vector<8x128xf32>
    %cst_163 = arith.constant 1.000000e+00 : f32
    %622 = vector.broadcast %cst_163 : f32 to vector<8x128xf32>
    %623 = arith.subf %622, %614 : vector<8x128xf32>
    %624 = arith.mulf %623, %621 : vector<8x128xf32>
    %625 = arith.mulf %614, %588 : vector<8x128xf32>
    %626 = arith.addf %624, %625 : vector<8x128xf32>
    %627 = arith.truncf %626 : vector<8x128xf32> to vector<8x128xbf16>
    %628 = arith.index_cast %c7_i32_157 : i32 to index
    %c0_164 = arith.constant 0 : index
    %c0_165 = arith.constant 0 : index
    %629 = vector.load %arg15[%628, %c0_164, %c0_165] : memref<8x8x128xbf16, #tpu.memory_space<vmem>>, vector<1x8x128xbf16>
    %630 = vector.shape_cast %629 : vector<1x8x128xbf16> to vector<8x128xbf16>
    %631 = vector.shape_cast %627 : vector<8x128xbf16> to vector<1x8x128xbf16>
    tpu.vector_store %arg15[%628, %c0_164, %c0_165], %631 {strides = array<i32>} : memref<8x8x128xbf16, #tpu.memory_space<vmem>>, vector<1x8x128xbf16>,
    %c8_i32_166 = arith.constant 8 : i32
    %c0_167 = arith.constant 0 : index
    %c0_168 = arith.constant 0 : index
    %c0_169 = arith.constant 0 : index
    %632 = vector.load %arg15[%c0_167, %c0_168, %c0_169] : memref<8x8x128xbf16, #tpu.memory_space<vmem>>, vector<8x8x128xbf16>
    %633 = vector.shape_cast %632 : vector<8x8x128xbf16> to vector<64x128xbf16>
    %c0_170 = arith.constant 0 : index
    %c0_171 = arith.constant 0 : index
    %634 = vector.load %arg9[%c0_170, %c0_171] : memref<128x128xbf16, #tpu.memory_space<vmem>>, vector<128x128xbf16>
    %cst_172 = arith.constant dense<0.000000e+00> : vector<64x128xf32>
    %635 = tpu.matmul %633, %634, %cst_172 {dimension_numbers = #tpu.dot_dimension_numbers<[1], [0], [0], [1], [0, 0, 1, 1], [], []>} : vector<64x128xbf16>, vector<128x128xbf16>, vector<64x128xf32> -> vector<64x128xf32>
    %c0_173 = arith.constant 0 : index
    %c0_174 = arith.constant 0 : index
    %636 = vector.load %arg10[%c0_173, %c0_174] : memref<1x128xf32, #tpu.memory_space<vmem>>, vector<1x128xf32>
    %637 = vector.broadcast %636 : vector<1x128xf32> to vector<64x128xf32>
    %638 = arith.addf %635, %637 : vector<64x128xf32>
    %c0_175 = arith.constant 0 : index
    %c0_176 = arith.constant 0 : index
    %639 = vector.load %arg11[%c0_175, %c0_176] : memref<64x128xf32, #tpu.memory_space<vmem>>, vector<64x128xf32>
    tpu.vector_store %arg11[%c0_175, %c0_176], %638 {strides = array<i32>} : memref<64x128xf32, #tpu.memory_space<vmem>>, vector<64x128xf32>,
    return
  }
}

</mosaic_0001>

<llo_original>
// kernel: tpu_custom_call.1
$region0: #{tpu_custom_call.1}
  #allocation0 [shape = 'u32[]', space=smem, size = 0x4, offset = 0x4, fixed_abs, tag = 'smem constant byte address 0x4 - core index']
  #allocation1 [shape = 'u32[144,128]{1,0:T(1,128)}', space=vmem, size = 0x12000, scoped, tag = 'internal scratch']
  #allocation2 [shape = 'f32[8,8,384]{2,1,0:T(8,128)}', space=vmem, size = 0x18000, scoped, tag = 'scratch operand']
  #allocation3 [shape = 'bf16[8,8,128]{2,1,0:T(8,128)(2,1)}', space=vmem, size = 0x4000, scoped, tag = 'scratch operand']
  #allocation4 [shape = 'f32[8,8,384]{2,1,0:T(8,128)}', space=vmem, size = 0x18000, scoped, tag = 'scratch operand']
  #allocation5 [shape = 'bf16[8,8,128]{2,1,0:T(8,128)(2,1)}', space=vmem, size = 0x4000, scoped, tag = 'scratch operand']
  %s0 = inlined_call_operand.hbm [shape: bf16[8,8,128], index: 0, kind: input, shape index: {}]
  %s1 = inlined_call_operand.hbm [shape: bf16[128,384], index: 1, kind: input, shape index: {}]
  %s2 = inlined_call_operand.hbm [shape: bf16[128,384], index: 2, kind: input, shape index: {}]
  %s3 = inlined_call_operand.vmem [shape: f32[1,384], index: 3, kind: input, shape index: {}]
  %s4 = inlined_call_operand.vmem [shape: f32[1,128], index: 4, kind: input, shape index: {}]
  %s5 = inlined_call_operand.hbm [shape: bf16[128,384], index: 5, kind: input, shape index: {}]
  %s6 = inlined_call_operand.hbm [shape: bf16[128,384], index: 6, kind: input, shape index: {}]
  %s7 = inlined_call_operand.vmem [shape: f32[1,384], index: 7, kind: input, shape index: {}]
  %s8 = inlined_call_operand.vmem [shape: f32[1,128], index: 8, kind: input, shape index: {}]
  %s9 = inlined_call_operand.hbm [shape: bf16[128,128], index: 9, kind: input, shape index: {}]
  %s10 = inlined_call_operand.vmem [shape: f32[1,128], index: 10, kind: input, shape index: {}]
  %s11 = inlined_call_operand.hbm [shape: f32[64,128], index: 11, kind: output, shape index: {}]
  %s12 = sld [smem:[#allocation0]]
  $region78: #{tpu_custom_call.1} parent=0
    _
  %s14 = ssub.s32 1, %s12
  %s15 = scalar_select 0, %s14, %s12
  $region1: #{tpu_custom_call.1} parent=0
    #allocation6 [shape = 'u8[16384]{0}', space=vmem, size = 0x4000, scoped, tag = 'input window, operand 0, single buffered']
    #allocation7 [shape = 's32[1]{0}', space=sflag, size = 0x4, scoped, tag = 'scoped memory for tpu_custom_call.1']
    #allocation8 [shape = 's32[1]{0}', space=sflag, size = 0x4, scoped, tag = 'scoped memory for tpu_custom_call.1']
    #allocation9 [shape = 'u8[98304]{0}', space=vmem, size = 0x18000, scoped, tag = 'input window, operand 1, single buffered']
    #allocation10 [shape = 's32[1]{0}', space=sflag, size = 0x4, scoped, tag = 'scoped memory for tpu_custom_call.1']
    #allocation11 [shape = 'u8[98304]{0}', space=vmem, size = 0x18000, scoped, tag = 'input window, operand 2, single buffered']
    #allocation12 [shape = 'u8[98304]{0}', space=vmem, size = 0x18000, scoped, tag = 'input window, operand 5, single buffered']
    #allocation13 [shape = 's32[1]{0}', space=sflag, size = 0x4, scoped, tag = 'scoped memory for tpu_custom_call.1']
    #allocation14 [shape = 'u8[98304]{0}', space=vmem, size = 0x18000, scoped, tag = 'input window, operand 6, single buffered']
    #allocation15 [shape = 'u8[32768]{0}', space=vmem, size = 0x8000, scoped, tag = 'input window, operand 9, single buffered']
    #allocation16 [shape = 's32[1]{0}', space=sflag, size = 0x4, scoped, tag = 'scoped memory for tpu_custom_call.1']
    #allocation17 [shape = 'u8[32768]{0}', space=vmem, size = 0x8000, scoped, tag = 'output window, operand 0, single buffered']
    %16 = vsyncpa [#allocation7], 0
    %17 = vsyncpa [#allocation10], 0
    %18 = vsyncpa [#allocation13], 0
    %19 = vsyncpa [#allocation16], 0
    %20 = vsyncpa [#allocation8], 0
    // Predicated region
    $region2: #{tpu_custom_call.1} parent=1 // pred_check
      _
    $region3: #{tpu_custom_call.1} parent=1 // pred_check_branch
      %22 = sbr.rel (0) target = $region5
    $region4: #{tpu_custom_call.1} parent=1 // pred_region
      %s24 = ssub.s32 512, 512
      %25 = vsyncadd [#allocation7], %s24
      %s26 = sshll.u32 [#allocation6], 4
      %s27 = int_to_ptr.vmem [resolvable:$true] %s26
      %32 = dma.hbm_to_vmem [thread:$0]  %s0, 512, %s27, [#allocation7], 64, 64, 4
    $region5: #{tpu_custom_call.1} parent=1 // pred_fallthru
      _
    // Predicated region
    $region6: #{tpu_custom_call.1} parent=1 // pred_check
      _
    $region7: #{tpu_custom_call.1} parent=1 // pred_check_branch
      %34 = sbr.rel (0) target = $region9
    $region8: #{tpu_custom_call.1} parent=1 // pred_region
      %s36 = ssub.s32 3072, 3072
      %37 = vsyncadd [#allocation10], %s36
      %s38 = sshll.u32 [#allocation9], 4
      %s39 = int_to_ptr.vmem [resolvable:$true] %s38
      %44 = dma.hbm_to_vmem [thread:$0]  %s1, 3072, %s39, [#allocation10], 192, 192, 12
    $region9: #{tpu_custom_call.1} parent=1 // pred_fallthru
      _
    // Predicated region
    $region10: #{tpu_custom_call.1} parent=1 // pred_check
      _
    $region11: #{tpu_custom_call.1} parent=1 // pred_check_branch
      %46 = sbr.rel (0) target = $region13
    $region12: #{tpu_custom_call.1} parent=1 // pred_region
      %s48 = ssub.s32 3072, 3072
      %49 = vsyncadd [#allocation10], %s48
      %s50 = sshll.u32 [#allocation11], 4
      %s51 = int_to_ptr.vmem [resolvable:$true] %s50
      %56 = dma.hbm_to_vmem [thread:$0]  %s2, 3072, %s51, [#allocation10], 192, 192, 12
    $region13: #{tpu_custom_call.1} parent=1 // pred_fallthru
      _
    // Predicated region
    $region14: #{tpu_custom_call.1} parent=1 // pred_check
      _
    $region15: #{tpu_custom_call.1} parent=1 // pred_check_branch
      %58 = sbr.rel (0) target = $region17
    $region16: #{tpu_custom_call.1} parent=1 // pred_region
      _
    $region17: #{tpu_custom_call.1} parent=1 // pred_fallthru
      _
    // Predicated region
    $region18: #{tpu_custom_call.1} parent=1 // pred_check
      _
    $region19: #{tpu_custom_call.1} parent=1 // pred_check_branch
      %60 = sbr.rel (0) target = $region21
    $region20: #{tpu_custom_call.1} parent=1 // pred_region
      _
    $region21: #{tpu_custom_call.1} parent=1 // pred_fallthru
      _
    // Predicated region
    $region22: #{tpu_custom_call.1} parent=1 // pred_check
      _
    $region23: #{tpu_custom_call.1} parent=1 // pred_check_branch
      %62 = sbr.rel (0) target = $region25
    $region24: #{tpu_custom_call.1} parent=1 // pred_region
      %s64 = ssub.s32 3072, 3072
      %65 = vsyncadd [#allocation13], %s64
      %s66 = sshll.u32 [#allocation12], 4
      %s67 = int_to_ptr.vmem [resolvable:$true] %s66
      %72 = dma.hbm_to_vmem [thread:$0]  %s5, 3072, %s67, [#allocation13], 192, 192, 12
    $region25: #{tpu_custom_call.1} parent=1 // pred_fallthru
      _
    // Predicated region
    $region26: #{tpu_custom_call.1} parent=1 // pred_check
      _
    $region27: #{tpu_custom_call.1} parent=1 // pred_check_branch
      %74 = sbr.rel (0) target = $region29
    $region28: #{tpu_custom_call.1} parent=1 // pred_region
      %s76 = ssub.s32 3072, 3072
      %77 = vsyncadd [#allocation13], %s76
      %s78 = sshll.u32 [#allocation14], 4
      %s79 = int_to_ptr.vmem [resolvable:$true] %s78
      %84 = dma.hbm_to_vmem [thread:$0]  %s6, 3072, %s79, [#allocation13], 192, 192, 12
    $region29: #{tpu_custom_call.1} parent=1 // pred_fallthru
      _
    // Predicated region
    $region30: #{tpu_custom_call.1} parent=1 // pred_check
      _
    $region31: #{tpu_custom_call.1} parent=1 // pred_check_branch
      %86 = sbr.rel (0) target = $region33
    $region32: #{tpu_custom_call.1} parent=1 // pred_region
      _
    $region33: #{tpu_custom_call.1} parent=1 // pred_fallthru
      _
    // Predicated region
    $region34: #{tpu_custom_call.1} parent=1 // pred_check
      _
    $region35: #{tpu_custom_call.1} parent=1 // pred_check_branch
      %88 = sbr.rel (0) target = $region37
    $region36: #{tpu_custom_call.1} parent=1 // pred_region
      _
    $region37: #{tpu_custom_call.1} parent=1 // pred_fallthru
      _
    // Predicated region
    $region38: #{tpu_custom_call.1} parent=1 // pred_check
      _
    $region39: #{tpu_custom_call.1} parent=1 // pred_check_branch
      %90 = sbr.rel (0) target = $region41
    $region40: #{tpu_custom_call.1} parent=1 // pred_region
      %s92 = ssub.s32 1024, 1024
      %93 = vsyncadd [#allocation16], %s92
      %s94 = sshll.u32 [#allocation15], 4
      %s95 = int_to_ptr.vmem [resolvable:$true] %s94
      %100 = dma.hbm_to_vmem [thread:$0]  %s9, 1024, %s95, [#allocation16], 64, 64, 4
    $region41: #{tpu_custom_call.1} parent=1 // pred_fallthru
      _
    // Predicated region
    $region42: #{tpu_custom_call.1} parent=1 // pred_check
      _
    $region43: #{tpu_custom_call.1} parent=1 // pred_check_branch
      %102 = sbr.rel (0) target = $region45
    $region44: #{tpu_custom_call.1} parent=1 // pred_region
      _
    $region45: #{tpu_custom_call.1} parent=1 // pred_fallthru
      _
    // Predicated region
    $region46: #{tpu_custom_call.1} parent=1 // pred_check
      _
    $region47: #{tpu_custom_call.1} parent=1 // pred_check_branch
      %104 = sbr.rel (0) target = $region49
    $region48: #{tpu_custom_call.1} parent=1 // pred_region
      %105 = dma.done [#allocation7], 512
    $region49: #{tpu_custom_call.1} parent=1 // pred_fallthru
      _
    // Predicated region
    $region50: #{tpu_custom_call.1} parent=1 // pred_check
      _
    $region51: #{tpu_custom_call.1} parent=1 // pred_check_branch
      %107 = sbr.rel (0) target = $region53
    $region52: #{tpu_custom_call.1} parent=1 // pred_region
      %108 = dma.done [#allocation10], 3072
    $region53: #{tpu_custom_call.1} parent=1 // pred_fallthru
      _
    // Predicated region
    $region54: #{tpu_custom_call.1} parent=1 // pred_check
      _
    $region55: #{tpu_custom_call.1} parent=1 // pred_check_branch
      %110 = sbr.rel (0) target = $region57
    $region56: #{tpu_custom_call.1} parent=1 // pred_region
      %111 = dma.done [#allocation10], 3072
    $region57: #{tpu_custom_call.1} parent=1 // pred_fallthru
      _
    // Predicated region
    $region58: #{tpu_custom_call.1} parent=1 // pred_check
      _
    $region59: #{tpu_custom_call.1} parent=1 // pred_check_branch
      %113 = sbr.rel (0) target = $region61
    $region60: #{tpu_custom_call.1} parent=1 // pred_region
      %114 = dma.done [#allocation13], 3072
    $region61: #{tpu_custom_call.1} parent=1 // pred_fallthru
      _
    // Predicated region
    $region62: #{tpu_custom_call.1} parent=1 // pred_check
      _
    $region63: #{tpu_custom_call.1} parent=1 // pred_check_branch
      %116 = sbr.rel (0) target = $region65
    $region64: #{tpu_custom_call.1} parent=1 // pred_region
      %117 = dma.done [#allocation13], 3072
    $region65: #{tpu_custom_call.1} parent=1 // pred_fallthru
      _
    // Predicated region
    $region66: #{tpu_custom_call.1} parent=1 // pred_check
      _
    $region67: #{tpu_custom_call.1} parent=1 // pred_check_branch
      %119 = sbr.rel (0) target = $region69
    $region68: #{tpu_custom_call.1} parent=1 // pred_region
      %120 = dma.done [#allocation16], 1024
    $region69: #{tpu_custom_call.1} parent=1 // pred_fallthru
      _
    %v122 = vld [vmem:[#allocation6] sm:$0xf]
    %v123 = vld [vmem:[#allocation6 + $0x4] sm:$0xf]
    %v124 = vld [vmem:[#allocation6 + $0x8] sm:$0xf]
    %v125 = vld [vmem:[#allocation6 + $0xc] sm:$0xf]
    %v126 = vld [vmem:[#allocation6 + $0x10] sm:$0xf]
    %v127 = vld [vmem:[#allocation6 + $0x14] sm:$0xf]
    %v128 = vld [vmem:[#allocation6 + $0x18] sm:$0xf]
    %v129 = vld [vmem:[#allocation6 + $0x1c] sm:$0xf]
    %v130 = vld [vmem:[#allocation9] sm:$0xff]
    %v131 = vld [vmem:[#allocation9 + $0x8] sm:$0xf]
    %v132 = vld [vmem:[#allocation9 + $0xc] sm:$0xff]
    %v133 = vld [vmem:[#allocation9 + $0x14] sm:$0xf]
    %v134 = vld [vmem:[#allocation9 + $0x18] sm:$0xff]
    %v135 = vld [vmem:[#allocation9 + $0x20] sm:$0xf]
    %v136 = vld [vmem:[#allocation9 + $0x24] sm:$0xff]
    %v137 = vld [vmem:[#allocation9 + $0x2c] sm:$0xf]
    %v138 = vld [vmem:[#allocation9 + $0x30] sm:$0xff]
    %v139 = vld [vmem:[#allocation9 + $0x38] sm:$0xf]
    %v140 = vld [vmem:[#allocation9 + $0x3c] sm:$0xff]
    %v141 = vld [vmem:[#allocation9 + $0x44] sm:$0xf]
    %v142 = vld [vmem:[#allocation9 + $0x48] sm:$0xff]
    %v143 = vld [vmem:[#allocation9 + $0x50] sm:$0xf]
    %v144 = vld [vmem:[#allocation9 + $0x54] sm:$0xff]
    %v145 = vld [vmem:[#allocation9 + $0x5c] sm:$0xf]
    %v146 = vld [vmem:[#allocation9 + $0x60] sm:$0xff]
    %v147 = vld [vmem:[#allocation9 + $0x68] sm:$0xf]
    %v148 = vld [vmem:[#allocation9 + $0x6c] sm:$0xff]
    %v149 = vld [vmem:[#allocation9 + $0x74] sm:$0xf]
    %v150 = vld [vmem:[#allocation9 + $0x78] sm:$0xff]
    %v151 = vld [vmem:[#allocation9 + $0x80] sm:$0xf]
    %v152 = vld [vmem:[#allocation9 + $0x84] sm:$0xff]
    %v153 = vld [vmem:[#allocation9 + $0x8c] sm:$0xf]
    %v154 = vld [vmem:[#allocation9 + $0x90] sm:$0xff]
    %v155 = vld [vmem:[#allocation9 + $0x98] sm:$0xf]
    %v156 = vld [vmem:[#allocation9 + $0x9c] sm:$0xff]
    %v157 = vld [vmem:[#allocation9 + $0xa4] sm:$0xf]
    %v158 = vld [vmem:[#allocation9 + $0xa8] sm:$0xff]
    %v159 = vld [vmem:[#allocation9 + $0xb0] sm:$0xf]
    %v160 = vld [vmem:[#allocation9 + $0xb4] sm:$0xff]
    %v161 = vld [vmem:[#allocation9 + $0xbc] sm:$0xf]
    %v162 = vld [vmem:[%s3] sm:$0x7]
    %v164 = vlaneseq
    %v165 = vshrl.u32 %v164, 7
    %v166 = vsub.s32 0, %v165
    %v167 = vrot.slane %v162, %v166
    %v168 = vlaneseq
    %v169 = vshrl.u32 %v168, 7
    %v170 = vsub.s32 1, %v169
    %v171 = vrot.slane %v162, %v170
    %v172 = vlaneseq
    %v173 = vshrl.u32 %v172, 7
    %v174 = vsub.s32 2, %v173
    %v175 = vrot.slane %v162, %v174
    %v187 = vunpack.c.l.b16 %v122
    %v188 = vunpack.c.l.b16 %v123
    %v189 = vunpack.c.l.b16 %v124
    %v190 = vunpack.c.l.b16 %v125
    %v191 = vunpack.c.l.b16 %v126
    %v192 = vunpack.c.l.b16 %v127
    %v193 = vunpack.c.l.b16 %v128
    %v194 = vunpack.c.l.b16 %v129
    %v195 = vpack.c.b16 %v188, %v187
    %v196 = vpack.c.b16 %v190, %v189
    %v197 = vpack.c.b16 %v192, %v191
    %v198 = vpack.c.b16 %v194, %v193
    %v235 = vunpack.c.l.b16 %v130
    %v236 = vunpack.c.h.b16 %v130
    %v237 = vunpack.c.l.b16 %v131
    %v238 = vunpack.c.l.b16 %v132
    %v239 = vunpack.c.h.b16 %v132
    %v240 = vunpack.c.l.b16 %v133
    %v241 = vunpack.c.l.b16 %v134
    %v242 = vunpack.c.h.b16 %v134
    %v243 = vunpack.c.l.b16 %v135
    %v244 = vunpack.c.l.b16 %v136
    %v245 = vunpack.c.h.b16 %v136
    %v246 = vunpack.c.l.b16 %v137
    %v247 = vunpack.c.l.b16 %v138
    %v248 = vunpack.c.h.b16 %v138
    %v249 = vunpack.c.l.b16 %v139
    %v250 = vunpack.c.l.b16 %v140
    %v251 = vunpack.c.h.b16 %v140
    %v252 = vunpack.c.l.b16 %v141
    %v253 = vunpack.c.l.b16 %v142
    %v254 = vunpack.c.h.b16 %v142
    %v255 = vunpack.c.l.b16 %v143
    %v256 = vunpack.c.l.b16 %v144
    %v257 = vunpack.c.h.b16 %v144
    %v258 = vunpack.c.l.b16 %v145
    %v259 = vunpack.c.l.b16 %v146
    %v260 = vunpack.c.h.b16 %v146
    %v261 = vunpack.c.l.b16 %v147
    %v262 = vunpack.c.l.b16 %v148
    %v263 = vunpack.c.h.b16 %v148
    %v264 = vunpack.c.l.b16 %v149
    %v265 = vunpack.c.l.b16 %v150
    %v266 = vunpack.c.h.b16 %v150
    %v267 = vunpack.c.l.b16 %v151
    %v268 = vunpack.c.l.b16 %v152
    %v269 = vunpack.c.h.b16 %v152
    %v270 = vunpack.c.l.b16 %v153
    %v271 = vunpack.c.l.b16 %v154
    %v272 = vunpack.c.h.b16 %v154
    %v273 = vunpack.c.l.b16 %v155
    %v274 = vunpack.c.l.b16 %v156
    %v275 = vunpack.c.h.b16 %v156
    %v276 = vunpack.c.l.b16 %v157
    %v277 = vunpack.c.l.b16 %v158
    %v278 = vunpack.c.h.b16 %v158
    %v279 = vunpack.c.l.b16 %v159
    %v280 = vunpack.c.l.b16 %v160
    %v281 = vunpack.c.h.b16 %v160
    %v282 = vunpack.c.l.b16 %v161
    %v283 = vpack.c.b16 %v238, %v235
    %v284 = vpack.c.b16 %v239, %v236
    %v285 = vpack.c.b16 %v240, %v237
    %v286 = vpack.c.b16 %v244, %v241
    %v287 = vpack.c.b16 %v245, %v242
    %v288 = vpack.c.b16 %v246, %v243
    %v289 = vpack.c.b16 %v250, %v247
    %v290 = vpack.c.b16 %v251, %v248
    %v291 = vpack.c.b16 %v252, %v249
    %v292 = vpack.c.b16 %v256, %v253
    %v293 = vpack.c.b16 %v257, %v254
    %v294 = vpack.c.b16 %v258, %v255
    %v295 = vpack.c.b16 %v262, %v259
    %v296 = vpack.c.b16 %v263, %v260
    %v297 = vpack.c.b16 %v264, %v261
    %v298 = vpack.c.b16 %v268, %v265
    %v299 = vpack.c.b16 %v269, %v266
    %v300 = vpack.c.b16 %v270, %v267
    %v301 = vpack.c.b16 %v274, %v271
    %v302 = vpack.c.b16 %v275, %v272
    %v303 = vpack.c.b16 %v276, %v273
    %v304 = vpack.c.b16 %v280, %v277
    %v305 = vpack.c.b16 %v281, %v278
    %v306 = vpack.c.b16 %v282, %v279
    %331 = vmatprep.subr.bf16.mxu0 %v284
    %332 = vmatpush1.bf16.msra.mxu0 %v283
    %333 = vmatprep.subr.bf16.mxu0 %v287
    %334 = vmatpush1.bf16.msra.mxu0 %v286
    %335 = vmatprep.subr.bf16.mxu0 %v290
    %336 = vmatpush1.bf16.msra.mxu0 %v289
    %337 = vmatprep.subr.bf16.mxu0 %v293
    %338 = vmatpush1.bf16.msra.mxu0 %v292
    %339 = vmatprep.subr.bf16.mxu0 %v296
    %340 = vmatpush1.bf16.msra.mxu0 %v295
    %341 = vmatprep.subr.bf16.mxu0 %v299
    %342 = vmatpush1.bf16.msra.mxu0 %v298
    %343 = vmatprep.subr.bf16.mxu0 %v302
    %344 = vmatpush1.bf16.msra.mxu0 %v301
    %345 = vmatprep.subr.bf16.mxu0 %v305
    %346 = vmatpush1.bf16.msra.mxu0 %v304
    %347 = vmatprep.subr.bf16.mxu0 0
    %348 = vmatpush1.bf16.msra.mxu0 0
    %349 = vmatprep.subr.bf16.mxu0 0
    %350 = vmatpush1.bf16.msra.mxu0 0
    %351 = vmatprep.subr.bf16.mxu0 0
    %352 = vmatpush1.bf16.msra.mxu0 0
    %353 = vmatprep.subr.bf16.mxu0 0
    %354 = vmatpush1.bf16.msra.mxu0 0
    %355 = vmatprep.subr.bf16.mxu0 0
    %356 = vmatpush1.bf16.msra.mxu0 0
    %357 = vmatprep.subr.bf16.mxu0 0
    %358 = vmatpush1.bf16.msra.mxu0 0
    %359 = vmatprep.subr.bf16.mxu0 0
    %360 = vmatpush1.bf16.msra.mxu0 0
    %361 = vmatprep.subr.bf16.mxu0 0
    %362 = vmatpush1.bf16.msra.mxu0 0
    %363 = vmatprep.mubr.bf16.mxu0 0
    %364 = vmatmul.mubr.bf16.gmra.mrb[0].mxu0 %v195
    %v365 = vpop.f32.mrb[0].mxu0
    %v366 = vadd.f32 %v167, %v365
    %v367 = vpop.f32.mrb[0].mxu0
    %v368 = vadd.f32 %v171, %v367
    %v369 = vpop.f32.mrb[0].mxu0
    %v370 = vadd.f32 %v167, %v369
    %v371 = vpop.f32.mrb[0].mxu0
    %v372 = vadd.f32 %v171, %v371
    %373 = vmatprep.mubr.bf16.mxu0 0
    %374 = vmatmul.mubr.bf16.gmra.mrb[0].mxu0 %v196
    %v375 = vpop.f32.mrb[0].mxu0
    %v376 = vadd.f32 %v167, %v375
    %v377 = vpop.f32.mrb[0].mxu0
    %v378 = vadd.f32 %v171, %v377
    %v379 = vpop.f32.mrb[0].mxu0
    %v380 = vadd.f32 %v167, %v379
    %v381 = vpop.f32.mrb[0].mxu0
    %v382 = vadd.f32 %v171, %v381
    %383 = vmatprep.mubr.bf16.mxu0 0
    %384 = vmatmul.mubr.bf16.gmra.mrb[0].mxu0 %v197
    %v385 = vpop.f32.mrb[0].mxu0
    %v386 = vadd.f32 %v167, %v385
    %v387 = vpop.f32.mrb[0].mxu0
    %v388 = vadd.f32 %v171, %v387
    %v389 = vpop.f32.mrb[0].mxu0
    %v390 = vadd.f32 %v167, %v389
    %v391 = vpop.f32.mrb[0].mxu0
    %v392 = vadd.f32 %v171, %v391
    %393 = vmatprep.mubr.bf16.mxu0 0
    %394 = vmatmul.mubr.bf16.gmra.mrb[0].mxu0 %v198
    %v395 = vpop.f32.mrb[0].mxu0
    %v396 = vadd.f32 %v167, %v395
    %v397 = vpop.f32.mrb[0].mxu0
    %v398 = vadd.f32 %v171, %v397
    %v399 = vpop.f32.mrb[0].mxu0
    %v400 = vadd.f32 %v167, %v399
    %v401 = vpop.f32.mrb[0].mxu0
    %v402 = vadd.f32 %v171, %v401
    %403 = vdwg.mxu0
    %404 = vmatprep.subr.bf16.mxu0 0
    %405 = vmatpush1.bf16.msra.mxu0 %v285
    %406 = vmatprep.subr.bf16.mxu0 0
    %407 = vmatpush1.bf16.msra.mxu0 %v288
    %408 = vmatprep.subr.bf16.mxu0 0
    %409 = vmatpush1.bf16.msra.mxu0 %v291
    %410 = vmatprep.subr.bf16.mxu0 0
    %411 = vmatpush1.bf16.msra.mxu0 %v294
    %412 = vmatprep.subr.bf16.mxu0 0
    %413 = vmatpush1.bf16.msra.mxu0 %v297
    %414 = vmatprep.subr.bf16.mxu0 0
    %415 = vmatpush1.bf16.msra.mxu0 %v300
    %416 = vmatprep.subr.bf16.mxu0 0
    %417 = vmatpush1.bf16.msra.mxu0 %v303
    %418 = vmatprep.subr.bf16.mxu0 0
    %419 = vmatpush1.bf16.msra.mxu0 %v306
    %420 = vmatprep.subr.bf16.mxu0 0
    %421 = vmatpush1.bf16.msra.mxu0 0
    %422 = vmatprep.subr.bf16.mxu0 0
    %423 = vmatpush1.bf16.msra.mxu0 0
    %424 = vmatprep.subr.bf16.mxu0 0
    %425 = vmatpush1.bf16.msra.mxu0 0
    %426 = vmatprep.subr.bf16.mxu0 0
    %427 = vmatpush1.bf16.msra.mxu0 0
    %428 = vmatprep.subr.bf16.mxu0 0
    %429 = vmatpush1.bf16.msra.mxu0 0
    %430 = vmatprep.subr.bf16.mxu0 0
    %431 = vmatpush1.bf16.msra.mxu0 0
    %432 = vmatprep.subr.bf16.mxu0 0
    %433 = vmatpush1.bf16.msra.mxu0 0
    %434 = vmatprep.subr.bf16.mxu0 0
    %435 = vmatpush1.bf16.msra.mxu0 0
    %436 = vmatprep.mubr.bf16.mxu0 0
    %437 = vmatmul.mubr.bf16.gmra.mrb[0].mxu0 %v195
    %v438 = vpop.f32.mrb[0].mxu0
    %v439 = vadd.f32 %v175, %v438
    %v440 = vpop.f32.mrb[0].mxu0
    %v441 = vpop.f32.mrb[0].mxu0
    %v442 = vadd.f32 %v175, %v441
    %v443 = vpop.f32.mrb[0].mxu0
    %444 = vmatprep.mubr.bf16.mxu0 0
    %445 = vmatmul.mubr.bf16.gmra.mrb[0].mxu0 %v196
    %v446 = vpop.f32.mrb[0].mxu0
    %v447 = vadd.f32 %v175, %v446
    %v448 = vpop.f32.mrb[0].mxu0
    %v449 = vpop.f32.mrb[0].mxu0
    %v450 = vadd.f32 %v175, %v449
    %v451 = vpop.f32.mrb[0].mxu0
    %452 = vmatprep.mubr.bf16.mxu0 0
    %453 = vmatmul.mubr.bf16.gmra.mrb[0].mxu0 %v197
    %v454 = vpop.f32.mrb[0].mxu0
    %v455 = vadd.f32 %v175, %v454
    %v456 = vpop.f32.mrb[0].mxu0
    %v457 = vpop.f32.mrb[0].mxu0
    %v458 = vadd.f32 %v175, %v457
    %v459 = vpop.f32.mrb[0].mxu0
    %460 = vmatprep.mubr.bf16.mxu0 0
    %461 = vmatmul.mubr.bf16.gmra.mrb[0].mxu0 %v198
    %v462 = vpop.f32.mrb[0].mxu0
    %v463 = vadd.f32 %v175, %v462
    %v464 = vpop.f32.mrb[0].mxu0
    %v465 = vpop.f32.mrb[0].mxu0
    %v466 = vadd.f32 %v175, %v465
    %v467 = vpop.f32.mrb[0].mxu0
    %468 = vdwg.mxu0
    %469 = vst [vmem:[#allocation2] sm:$0xff] %v366
    %470 = vst [vmem:[#allocation2 + $0x8] sm:$0xff] %v368
    %471 = vst [vmem:[#allocation2 + $0x10] sm:$0xff] %v439
    %472 = vst [vmem:[#allocation2 + $0x18] sm:$0xff] %v370
    %473 = vst [vmem:[#allocation2 + $0x20] sm:$0xff] %v372
    %474 = vst [vmem:[#allocation2 + $0x28] sm:$0xff] %v442
    %475 = vst [vmem:[#allocation2 + $0x30] sm:$0xff] %v376
    %476 = vst [vmem:[#allocation2 + $0x38] sm:$0xff] %v378
    %477 = vst [vmem:[#allocation2 + $0x40] sm:$0xff] %v447
    %478 = vst [vmem:[#allocation2 + $0x48] sm:$0xff] %v380
    %479 = vst [vmem:[#allocation2 + $0x50] sm:$0xff] %v382
    %480 = vst [vmem:[#allocation2 + $0x58] sm:$0xff] %v450
    %481 = vst [vmem:[#allocation2 + $0x60] sm:$0xff] %v386
    %482 = vst [vmem:[#allocation2 + $0x68] sm:$0xff] %v388
    %483 = vst [vmem:[#allocation2 + $0x70] sm:$0xff] %v455
    %484 = vst [vmem:[#allocation2 + $0x78] sm:$0xff] %v390
    %485 = vst [vmem:[#allocation2 + $0x80] sm:$0xff] %v392
    %486 = vst [vmem:[#allocation2 + $0x88] sm:$0xff] %v458
    %487 = vst [vmem:[#allocation2 + $0x90] sm:$0xff] %v396
    %488 = vst [vmem:[#allocation2 + $0x98] sm:$0xff] %v398
    %489 = vst [vmem:[#allocation2 + $0xa0] sm:$0xff] %v463
    %490 = vst [vmem:[#allocation2 + $0xa8] sm:$0xff] %v400
    %491 = vst [vmem:[#allocation2 + $0xb0] sm:$0xff] %v402
    %492 = vst [vmem:[#allocation2 + $0xb8] sm:$0xff] %v466
    %v493 = vld [vmem:[#allocation11] sm:$0xff]
    %v494 = vld [vmem:[#allocation11 + $0x8] sm:$0xf]
    %v495 = vld [vmem:[#allocation11 + $0xc] sm:$0xff]
    %v496 = vld [vmem:[#allocation11 + $0x14] sm:$0xf]
    %v497 = vld [vmem:[#allocation11 + $0x18] sm:$0xff]
    %v498 = vld [vmem:[#allocation11 + $0x20] sm:$0xf]
    %v499 = vld [vmem:[#allocation11 + $0x24] sm:$0xff]
    %v500 = vld [vmem:[#allocation11 + $0x2c] sm:$0xf]
    %v501 = vld [vmem:[#allocation11 + $0x30] sm:$0xff]
    %v502 = vld [vmem:[#allocation11 + $0x38] sm:$0xf]
    %v503 = vld [vmem:[#allocation11 + $0x3c] sm:$0xff]
    %v504 = vld [vmem:[#allocation11 + $0x44] sm:$0xf]
    %v505 = vld [vmem:[#allocation11 + $0x48] sm:$0xff]
    %v506 = vld [vmem:[#allocation11 + $0x50] sm:$0xf]
    %v507 = vld [vmem:[#allocation11 + $0x54] sm:$0xff]
    %v508 = vld [vmem:[#allocation11 + $0x5c] sm:$0xf]
    %v509 = vld [vmem:[#allocation11 + $0x60] sm:$0xff]
    %v510 = vld [vmem:[#allocation11 + $0x68] sm:$0xf]
    %v511 = vld [vmem:[#allocation11 + $0x6c] sm:$0xff]
    %v512 = vld [vmem:[#allocation11 + $0x74] sm:$0xf]
    %v513 = vld [vmem:[#allocation11 + $0x78] sm:$0xff]
    %v514 = vld [vmem:[#allocation11 + $0x80] sm:$0xf]
    %v515 = vld [vmem:[#allocation11 + $0x84] sm:$0xff]
    %v516 = vld [vmem:[#allocation11 + $0x8c] sm:$0xf]
    %v517 = vld [vmem:[#allocation11 + $0x90] sm:$0xff]
    %v518 = vld [vmem:[#allocation11 + $0x98] sm:$0xf]
    %v519 = vld [vmem:[#allocation11 + $0x9c] sm:$0xff]
    %v520 = vld [vmem:[#allocation11 + $0xa4] sm:$0xf]
    %v521 = vld [vmem:[#allocation11 + $0xa8] sm:$0xff]
    %v522 = vld [vmem:[#allocation11 + $0xb0] sm:$0xf]
    %v523 = vld [vmem:[#allocation11 + $0xb4] sm:$0xff]
    %v524 = vld [vmem:[#allocation11 + $0xbc] sm:$0xf]
    %v525 = vld [vmem:[%s4] sm:$0x1]
    %v526 = vld [vmem:[#allocation2] sm:$0xff]
    %v527 = vld [vmem:[#allocation2 + $0x8] sm:$0xff]
    %v528 = vld [vmem:[#allocation2 + $0x10] sm:$0xff]
    %v561 = vunpack.c.l.b16 %v493
    %v562 = vunpack.c.h.b16 %v493
    %v563 = vunpack.c.l.b16 %v494
    %v564 = vunpack.c.l.b16 %v495
    %v565 = vunpack.c.h.b16 %v495
    %v566 = vunpack.c.l.b16 %v496
    %v567 = vunpack.c.l.b16 %v497
    %v568 = vunpack.c.h.b16 %v497
    %v569 = vunpack.c.l.b16 %v498
    %v570 = vunpack.c.l.b16 %v499
    %v571 = vunpack.c.h.b16 %v499
    %v572 = vunpack.c.l.b16 %v500
    %v573 = vunpack.c.l.b16 %v501
    %v574 = vunpack.c.h.b16 %v501
    %v575 = vunpack.c.l.b16 %v502
    %v576 = vunpack.c.l.b16 %v503
    %v577 = vunpack.c.h.b16 %v503
    %v578 = vunpack.c.l.b16 %v504
    %v579 = vunpack.c.l.b16 %v505
    %v580 = vunpack.c.h.b16 %v505
    %v581 = vunpack.c.l.b16 %v506
    %v582 = vunpack.c.l.b16 %v507
    %v583 = vunpack.c.h.b16 %v507
    %v584 = vunpack.c.l.b16 %v508
    %v585 = vunpack.c.l.b16 %v509
    %v586 = vunpack.c.h.b16 %v509
    %v587 = vunpack.c.l.b16 %v510
    %v588 = vunpack.c.l.b16 %v511
    %v589 = vunpack.c.h.b16 %v511
    %v590 = vunpack.c.l.b16 %v512
    %v591 = vunpack.c.l.b16 %v513
    %v592 = vunpack.c.h.b16 %v513
    %v593 = vunpack.c.l.b16 %v514
    %v594 = vunpack.c.l.b16 %v515
    %v595 = vunpack.c.h.b16 %v515
    %v596 = vunpack.c.l.b16 %v516
    %v597 = vunpack.c.l.b16 %v517
    %v598 = vunpack.c.h.b16 %v517
    %v599 = vunpack.c.l.b16 %v518
    %v600 = vunpack.c.l.b16 %v519
    %v601 = vunpack.c.h.b16 %v519
    %v602 = vunpack.c.l.b16 %v520
    %v603 = vunpack.c.l.b16 %v521
    %v604 = vunpack.c.h.b16 %v521
    %v605 = vunpack.c.l.b16 %v522
    %v606 = vunpack.c.l.b16 %v523
    %v607 = vunpack.c.h.b16 %v523
    %v608 = vunpack.c.l.b16 %v524
    %v609 = vpack.c.b16 %v564, %v561
    %v610 = vpack.c.b16 %v565, %v562
    %v611 = vpack.c.b16 %v566, %v563
    %v612 = vpack.c.b16 %v570, %v567
    %v613 = vpack.c.b16 %v571, %v568
    %v614 = vpack.c.b16 %v572, %v569
    %v615 = vpack.c.b16 %v576, %v573
    %v616 = vpack.c.b16 %v577, %v574
    %v617 = vpack.c.b16 %v578, %v575
    %v618 = vpack.c.b16 %v582, %v579
    %v619 = vpack.c.b16 %v583, %v580
    %v620 = vpack.c.b16 %v584, %v581
    %v621 = vpack.c.b16 %v588, %v585
    %v622 = vpack.c.b16 %v589, %v586
    %v623 = vpack.c.b16 %v590, %v587
    %v624 = vpack.c.b16 %v594, %v591
    %v625 = vpack.c.b16 %v595, %v592
    %v626 = vpack.c.b16 %v596, %v593
    %v627 = vpack.c.b16 %v600, %v597
    %v628 = vpack.c.b16 %v601, %v598
    %v629 = vpack.c.b16 %v602, %v599
    %v630 = vpack.c.b16 %v606, %v603
    %v631 = vpack.c.b16 %v607, %v604
    %v632 = vpack.c.b16 %v608, %v605
    %657 = vmatprep.subr.bf16.mxu0 %v610
    %658 = vmatpush1.bf16.msra.mxu0 %v609
    %659 = vmatprep.subr.bf16.mxu0 %v613
    %660 = vmatpush1.bf16.msra.mxu0 %v612
    %661 = vmatprep.subr.bf16.mxu0 %v616
    %662 = vmatpush1.bf16.msra.mxu0 %v615
    %663 = vmatprep.subr.bf16.mxu0 %v619
    %664 = vmatpush1.bf16.msra.mxu0 %v618
    %665 = vmatprep.subr.bf16.mxu0 %v622
    %666 = vmatpush1.bf16.msra.mxu0 %v621
    %667 = vmatprep.subr.bf16.mxu0 %v625
    %668 = vmatpush1.bf16.msra.mxu0 %v624
    %669 = vmatprep.subr.bf16.mxu0 %v628
    %670 = vmatpush1.bf16.msra.mxu0 %v627
    %671 = vmatprep.subr.bf16.mxu0 %v631
    %672 = vmatpush1.bf16.msra.mxu0 %v630
    %673 = vmatprep.subr.bf16.mxu0 0
    %674 = vmatpush1.bf16.msra.mxu0 0
    %675 = vmatprep.subr.bf16.mxu0 0
    %676 = vmatpush1.bf16.msra.mxu0 0
    %677 = vmatprep.subr.bf16.mxu0 0
    %678 = vmatpush1.bf16.msra.mxu0 0
    %679 = vmatprep.subr.bf16.mxu0 0
    %680 = vmatpush1.bf16.msra.mxu0 0
    %681 = vmatprep.subr.bf16.mxu0 0
    %682 = vmatpush1.bf16.msra.mxu0 0
    %683 = vmatprep.subr.bf16.mxu0 0
    %684 = vmatpush1.bf16.msra.mxu0 0
    %685 = vmatprep.subr.bf16.mxu0 0
    %686 = vmatpush1.bf16.msra.mxu0 0
    %687 = vmatprep.subr.bf16.mxu0 0
    %688 = vmatpush1.bf16.msra.mxu0 0
    %689 = vmatprep.mubr.bf16.mxu0 0
    %690 = vmatmul.mubr.bf16.gmra.mrb[0].mxu0 0
    %v691 = vpop.f32.mrb[0].mxu0
    %v692 = vadd.f32 0.0, %v691
    %v693 = vpop.f32.mrb[0].mxu0
    %v694 = vadd.f32 0.0, %v693
    %v695 = vpop.f32.mrb[0].mxu0
    %v696 = vpop.f32.mrb[0].mxu0
    %697 = vdwg.mxu0
    %698 = vmatprep.subr.bf16.mxu0 0
    %699 = vmatpush1.bf16.msra.mxu0 %v611
    %700 = vmatprep.subr.bf16.mxu0 0
    %701 = vmatpush1.bf16.msra.mxu0 %v614
    %702 = vmatprep.subr.bf16.mxu0 0
    %703 = vmatpush1.bf16.msra.mxu0 %v617
    %704 = vmatprep.subr.bf16.mxu0 0
    %705 = vmatpush1.bf16.msra.mxu0 %v620
    %706 = vmatprep.subr.bf16.mxu0 0
    %707 = vmatpush1.bf16.msra.mxu0 %v623
    %708 = vmatprep.subr.bf16.mxu0 0
    %709 = vmatpush1.bf16.msra.mxu0 %v626
    %710 = vmatprep.subr.bf16.mxu0 0
    %711 = vmatpush1.bf16.msra.mxu0 %v629
    %712 = vmatprep.subr.bf16.mxu0 0
    %713 = vmatpush1.bf16.msra.mxu0 %v632
    %714 = vmatprep.subr.bf16.mxu0 0
    %715 = vmatpush1.bf16.msra.mxu0 0
    %716 = vmatprep.subr.bf16.mxu0 0
    %717 = vmatpush1.bf16.msra.mxu0 0
    %718 = vmatprep.subr.bf16.mxu0 0
    %719 = vmatpush1.bf16.msra.mxu0 0
    %720 = vmatprep.subr.bf16.mxu0 0
    %721 = vmatpush1.bf16.msra.mxu0 0
    %722 = vmatprep.subr.bf16.mxu0 0
    %723 = vmatpush1.bf16.msra.mxu0 0
    %724 = vmatprep.subr.bf16.mxu0 0
    %725 = vmatpush1.bf16.msra.mxu0 0
    %726 = vmatprep.subr.bf16.mxu0 0
    %727 = vmatpush1.bf16.msra.mxu0 0
    %728 = vmatprep.subr.bf16.mxu0 0
    %729 = vmatpush1.bf16.msra.mxu0 0
    %730 = vmatprep.mubr.bf16.mxu0 0
    %731 = vmatmul.mubr.bf16.gmra.mrb[0].mxu0 0
    %v732 = vpop.f32.mrb[0].mxu0
    %v733 = vadd.f32 0.0, %v732
    %v734 = vpop.f32.mrb[0].mxu0
    %v735 = vpop.f32.mrb[0].mxu0
    %v736 = vpop.f32.mrb[0].mxu0
    %737 = vdwg.mxu0
    %v738 = vadd.f32 %v526, %v692
    %v739 = vxor.u32 %v738, 2147483648
    %v740 = vmul.f32 %v739, 1.442695
    %v741 = vpow.pop %v740
    %v742 = vadd.f32 %v741, 1.0
    %v743 = vrcp.pop %v742
    %v744 = vmul.f32 1.0, %v743
    %v745 = vadd.f32 %v527, %v694
    %v746 = vxor.u32 %v745, 2147483648
    %v747 = vmul.f32 %v746, 1.442695
    %v748 = vpow.pop %v747
    %v749 = vadd.f32 %v748, 1.0
    %v750 = vrcp.pop %v749
    %v751 = vmul.f32 1.0, %v750
    %v753 = vlaneseq
    %v754 = vshrl.u32 %v753, 7
    %v755 = vsub.s32 0, %v754
    %v756 = vrot.slane %v525, %v755
    %v758 = vadd.f32 %v733, %v756
    %v759 = vmul.f32 %v744, %v758
    %v760 = vadd.f32 %v528, %v759
    %v761 = vtanh.pop %v760
    %v762 = vsub.f32 1.0, %v751
    %v763 = vmul.f32 %v762, %v761
    %v764 = vmul.f32 %v751, 0.0
    %v765 = vadd.f32 %v763, %v764
    %v766 = vpack.c.bf16 %v765, %v765
    %767 = vst [vmem:[#allocation3] sm:$0xf] %v766
    %s768 = scalar_lea.vmem [#allocation2], 24
    %v769 = vld [vmem:[%s768] sm:$0xff]
    %v770 = vld [vmem:[%s768 + $0x8] sm:$0xff]
    %v771 = vld [vmem:[%s768 + $0x10] sm:$0xff]
    %772 = vmatprep.subr.bf16.mxu0 %v610
    %773 = vmatpush1.bf16.msra.mxu0 %v609
    %774 = vmatprep.subr.bf16.mxu0 %v613
    %775 = vmatpush1.bf16.msra.mxu0 %v612
    %776 = vmatprep.subr.bf16.mxu0 %v616
    %777 = vmatpush1.bf16.msra.mxu0 %v615
    %778 = vmatprep.subr.bf16.mxu0 %v619
    %779 = vmatpush1.bf16.msra.mxu0 %v618
    %780 = vmatprep.subr.bf16.mxu0 %v622
    %781 = vmatpush1.bf16.msra.mxu0 %v621
    %782 = vmatprep.subr.bf16.mxu0 %v625
    %783 = vmatpush1.bf16.msra.mxu0 %v624
    %784 = vmatprep.subr.bf16.mxu0 %v628
    %785 = vmatpush1.bf16.msra.mxu0 %v627
    %786 = vmatprep.subr.bf16.mxu0 %v631
    %787 = vmatpush1.bf16.msra.mxu0 %v630
    %788 = vmatprep.subr.bf16.mxu0 0
    %789 = vmatpush1.bf16.msra.mxu0 0
    %790 = vmatprep.subr.bf16.mxu0 0
    %791 = vmatpush1.bf16.msra.mxu0 0
    %792 = vmatprep.subr.bf16.mxu0 0
    %793 = vmatpush1.bf16.msra.mxu0 0
    %794 = vmatprep.subr.bf16.mxu0 0
    %795 = vmatpush1.bf16.msra.mxu0 0
    %796 = vmatprep.subr.bf16.mxu0 0
    %797 = vmatpush1.bf16.msra.mxu0 0
    %798 = vmatprep.subr.bf16.mxu0 0
    %799 = vmatpush1.bf16.msra.mxu0 0
    %800 = vmatprep.subr.bf16.mxu0 0
    %801 = vmatpush1.bf16.msra.mxu0 0
    %802 = vmatprep.subr.bf16.mxu0 0
    %803 = vmatpush1.bf16.msra.mxu0 0
    %804 = vmatprep.mubr.bf16.mxu0 0
    %805 = vmatmul.mubr.bf16.gmra.mrb[0].mxu0 %v766
    %v806 = vpop.f32.mrb[0].mxu0
    %v807 = vadd.f32 0.0, %v806
    %v808 = vpop.f32.mrb[0].mxu0
    %v809 = vadd.f32 0.0, %v808
    %v810 = vpop.f32.mrb[0].mxu0
    %v811 = vpop.f32.mrb[0].mxu0
    %812 = vdwg.mxu0
    %813 = vmatprep.subr.bf16.mxu0 0
    %814 = vmatpush1.bf16.msra.mxu0 %v611
    %815 = vmatprep.subr.bf16.mxu0 0
    %816 = vmatpush1.bf16.msra.mxu0 %v614
    %817 = vmatprep.subr.bf16.mxu0 0
    %818 = vmatpush1.bf16.msra.mxu0 %v617
    %819 = vmatprep.subr.bf16.mxu0 0
    %820 = vmatpush1.bf16.msra.mxu0 %v620
    %821 = vmatprep.subr.bf16.mxu0 0
    %822 = vmatpush1.bf16.msra.mxu0 %v623
    %823 = vmatprep.subr.bf16.mxu0 0
    %824 = vmatpush1.bf16.msra.mxu0 %v626
    %825 = vmatprep.subr.bf16.mxu0 0
    %826 = vmatpush1.bf16.msra.mxu0 %v629
    %827 = vmatprep.subr.bf16.mxu0 0
    %828 = vmatpush1.bf16.msra.mxu0 %v632
    %829 = vmatprep.subr.bf16.mxu0 0
    %830 = vmatpush1.bf16.msra.mxu0 0
    %831 = vmatprep.subr.bf16.mxu0 0
    %832 = vmatpush1.bf16.msra.mxu0 0
    %833 = vmatprep.subr.bf16.mxu0 0
    %834 = vmatpush1.bf16.msra.mxu0 0
    %835 = vmatprep.subr.bf16.mxu0 0
    %836 = vmatpush1.bf16.msra.mxu0 0
    %837 = vmatprep.subr.bf16.mxu0 0
    %838 = vmatpush1.bf16.msra.mxu0 0
    %839 = vmatprep.subr.bf16.mxu0 0
    %840 = vmatpush1.bf16.msra.mxu0 0
    %841 = vmatprep.subr.bf16.mxu0 0
    %842 = vmatpush1.bf16.msra.mxu0 0
    %843 = vmatprep.subr.bf16.mxu0 0
    %844 = vmatpush1.bf16.msra.mxu0 0
    %845 = vmatprep.mubr.bf16.mxu0 0
    %846 = vmatmul.mubr.bf16.gmra.mrb[0].mxu0 %v766
    %v847 = vpop.f32.mrb[0].mxu0
    %v848 = vadd.f32 0.0, %v847
    %v849 = vpop.f32.mrb[0].mxu0
    %v850 = vpop.f32.mrb[0].mxu0
    %v851 = vpop.f32.mrb[0].mxu0
    %852 = vdwg.mxu0
    %v853 = vadd.f32 %v769, %v807
    %v854 = vxor.u32 %v853, 2147483648
    %v855 = vmul.f32 %v854, 1.442695
    %v856 = vpow.pop %v855
    %v857 = vadd.f32 %v856, 1.0
    %v858 = vrcp.pop %v857
    %v859 = vmul.f32 1.0, %v858
    %v860 = vadd.f32 %v770, %v809
    %v861 = vxor.u32 %v860, 2147483648
    %v862 = vmul.f32 %v861, 1.442695
    %v863 = vpow.pop %v862
    %v864 = vadd.f32 %v863, 1.0
    %v865 = vrcp.pop %v864
    %v866 = vmul.f32 1.0, %v865
    %v867 = vadd.f32 %v848, %v756
    %v868 = vmul.f32 %v859, %v867
    %v869 = vadd.f32 %v771, %v868
    %v870 = vtanh.pop %v869
    %v871 = vsub.f32 1.0, %v866
    %v872 = vmul.f32 %v871, %v870
    %v873 = vmul.f32 %v866, %v765
    %v874 = vadd.f32 %v872, %v873
    %v875 = vpack.c.bf16 %v874, %v874
    %s876 = scalar_lea.vmem [#allocation3], 4
    %877 = vst [vmem:[%s876] sm:$0xf] %v875
    %s878 = scalar_lea.vmem [#allocation2], 48
    %v879 = vld [vmem:[%s878] sm:$0xff]
    %v880 = vld [vmem:[%s878 + $0x8] sm:$0xff]
    %v881 = vld [vmem:[%s878 + $0x10] sm:$0xff]
    %882 = vmatprep.subr.bf16.mxu0 %v610
    %883 = vmatpush1.bf16.msra.mxu0 %v609
    %884 = vmatprep.subr.bf16.mxu0 %v613
    %885 = vmatpush1.bf16.msra.mxu0 %v612
    %886 = vmatprep.subr.bf16.mxu0 %v616
    %887 = vmatpush1.bf16.msra.mxu0 %v615
    %888 = vmatprep.subr.bf16.mxu0 %v619
    %889 = vmatpush1.bf16.msra.mxu0 %v618
    %890 = vmatprep.subr.bf16.mxu0 %v622
    %891 = vmatpush1.bf16.msra.mxu0 %v621
    %892 = vmatprep.subr.bf16.mxu0 %v625
    %893 = vmatpush1.bf16.msra.mxu0 %v624
    %894 = vmatprep.subr.bf16.mxu0 %v628
    %895 = vmatpush1.bf16.msra.mxu0 %v627
    %896 = vmatprep.subr.bf16.mxu0 %v631
    %897 = vmatpush1.bf16.msra.mxu0 %v630
    %898 = vmatprep.subr.bf16.mxu0 0
    %899 = vmatpush1.bf16.msra.mxu0 0
    %900 = vmatprep.subr.bf16.mxu0 0
    %901 = vmatpush1.bf16.msra.mxu0 0
    %902 = vmatprep.subr.bf16.mxu0 0
    %903 = vmatpush1.bf16.msra.mxu0 0
    %904 = vmatprep.subr.bf16.mxu0 0
    %905 = vmatpush1.bf16.msra.mxu0 0
    %906 = vmatprep.subr.bf16.mxu0 0
    %907 = vmatpush1.bf16.msra.mxu0 0
    %908 = vmatprep.subr.bf16.mxu0 0
    %909 = vmatpush1.bf16.msra.mxu0 0
    %910 = vmatprep.subr.bf16.mxu0 0
    %911 = vmatpush1.bf16.msra.mxu0 0
    %912 = vmatprep.subr.bf16.mxu0 0
    %913 = vmatpush1.bf16.msra.mxu0 0
    %914 = vmatprep.mubr.bf16.mxu0 0
    %915 = vmatmul.mubr.bf16.gmra.mrb[0].mxu0 %v875
    %v916 = vpop.f32.mrb[0].mxu0
    %v917 = vadd.f32 0.0, %v916
    %v918 = vpop.f32.mrb[0].mxu0
    %v919 = vadd.f32 0.0, %v918
    %v920 = vpop.f32.mrb[0].mxu0
    %v921 = vpop.f32.mrb[0].mxu0
    %922 = vdwg.mxu0
    %923 = vmatprep.subr.bf16.mxu0 0
    %924 = vmatpush1.bf16.msra.mxu0 %v611
    %925 = vmatprep.subr.bf16.mxu0 0
    %926 = vmatpush1.bf16.msra.mxu0 %v614
    %927 = vmatprep.subr.bf16.mxu0 0
    %928 = vmatpush1.bf16.msra.mxu0 %v617
    %929 = vmatprep.subr.bf16.mxu0 0
    %930 = vmatpush1.bf16.msra.mxu0 %v620
    %931 = vmatprep.subr.bf16.mxu0 0
    %932 = vmatpush1.bf16.msra.mxu0 %v623
    %933 = vmatprep.subr.bf16.mxu0 0
    %934 = vmatpush1.bf16.msra.mxu0 %v626
    %935 = vmatprep.subr.bf16.mxu0 0
    %936 = vmatpush1.bf16.msra.mxu0 %v629
    %937 = vmatprep.subr.bf16.mxu0 0
    %938 = vmatpush1.bf16.msra.mxu0 %v632
    %939 = vmatprep.subr.bf16.mxu0 0
    %940 = vmatpush1.bf16.msra.mxu0 0
    %941 = vmatprep.subr.bf16.mxu0 0
    %942 = vmatpush1.bf16.msra.mxu0 0
    %943 = vmatprep.subr.bf16.mxu0 0
    %944 = vmatpush1.bf16.msra.mxu0 0
    %945 = vmatprep.subr.bf16.mxu0 0
    %946 = vmatpush1.bf16.msra.mxu0 0
    %947 = vmatprep.subr.bf16.mxu0 0
    %948 = vmatpush1.bf16.msra.mxu0 0
    %949 = vmatprep.subr.bf16.mxu0 0
    %950 = vmatpush1.bf16.msra.mxu0 0
    %951 = vmatprep.subr.bf16.mxu0 0
    %952 = vmatpush1.bf16.msra.mxu0 0
    %953 = vmatprep.subr.bf16.mxu0 0
    %954 = vmatpush1.bf16.msra.mxu0 0
    %955 = vmatprep.mubr.bf16.mxu0 0
    %956 = vmatmul.mubr.bf16.gmra.mrb[0].mxu0 %v875
    %v957 = vpop.f32.mrb[0].mxu0
    %v958 = vadd.f32 0.0, %v957
    %v959 = vpop.f32.mrb[0].mxu0
    %v960 = vpop.f32.mrb[0].mxu0
    %v961 = vpop.f32.mrb[0].mxu0
    %962 = vdwg.mxu0
    %v963 = vadd.f32 %v879, %v917
    %v964 = vxor.u32 %v963, 2147483648
    %v965 = vmul.f32 %v964, 1.442695
    %v966 = vpow.pop %v965
    %v967 = vadd.f32 %v966, 1.0
    %v968 = vrcp.pop %v967
    %v969 = vmul.f32 1.0, %v968
    %v970 = vadd.f32 %v880, %v919
    %v971 = vxor.u32 %v970, 2147483648
    %v972 = vmul.f32 %v971, 1.442695
    %v973 = vpow.pop %v972
    %v974 = vadd.f32 %v973, 1.0
    %v975 = vrcp.pop %v974
    %v976 = vmul.f32 1.0, %v975
    %v977 = vadd.f32 %v958, %v756
    %v978 = vmul.f32 %v969, %v977
    %v979 = vadd.f32 %v881, %v978
    %v980 = vtanh.pop %v979
    %v981 = vsub.f32 1.0, %v976
    %v982 = vmul.f32 %v981, %v980
    %v983 = vmul.f32 %v976, %v874
    %v984 = vadd.f32 %v982, %v983
    %v985 = vpack.c.bf16 %v984, %v984
    %s986 = scalar_lea.vmem [#allocation3], 8
    %987 = vst [vmem:[%s986] sm:$0xf] %v985
    %s988 = scalar_lea.vmem [#allocation2], 72
    %v989 = vld [vmem:[%s988] sm:$0xff]
    %v990 = vld [vmem:[%s988 + $0x8] sm:$0xff]
    %v991 = vld [vmem:[%s988 + $0x10] sm:$0xff]
    %992 = vmatprep.subr.bf16.mxu0 %v610
    %993 = vmatpush1.bf16.msra.mxu0 %v609
    %994 = vmatprep.subr.bf16.mxu0 %v613
    %995 = vmatpush1.bf16.msra.mxu0 %v612
    %996 = vmatprep.subr.bf16.mxu0 %v616
    %997 = vmatpush1.bf16.msra.mxu0 %v615
    %998 = vmatprep.subr.bf16.mxu0 %v619
    %999 = vmatpush1.bf16.msra.mxu0 %v618
    %1000 = vmatprep.subr.bf16.mxu0 %v622
    %1001 = vmatpush1.bf16.msra.mxu0 %v621
    %1002 = vmatprep.subr.bf16.mxu0 %v625
    %1003 = vmatpush1.bf16.msra.mxu0 %v624
    %1004 = vmatprep.subr.bf16.mxu0 %v628
    %1005 = vmatpush1.bf16.msra.mxu0 %v627
    %1006 = vmatprep.subr.bf16.mxu0 %v631
    %1007 = vmatpush1.bf16.msra.mxu0 %v630
    %1008 = vmatprep.subr.bf16.mxu0 0
    %1009 = vmatpush1.bf16.msra.mxu0 0
    %1010 = vmatprep.subr.bf16.mxu0 0
    %1011 = vmatpush1.bf16.msra.mxu0 0
    %1012 = vmatprep.subr.bf16.mxu0 0
    %1013 = vmatpush1.bf16.msra.mxu0 0
    %1014 = vmatprep.subr.bf16.mxu0 0
    %1015 = vmatpush1.bf16.msra.mxu0 0
    %1016 = vmatprep.subr.bf16.mxu0 0
    %1017 = vmatpush1.bf16.msra.mxu0 0
    %1018 = vmatprep.subr.bf16.mxu0 0
    %1019 = vmatpush1.bf16.msra.mxu0 0
    %1020 = vmatprep.subr.bf16.mxu0 0
    %1021 = vmatpush1.bf16.msra.mxu0 0
    %1022 = vmatprep.subr.bf16.mxu0 0
    %1023 = vmatpush1.bf16.msra.mxu0 0
    %1024 = vmatprep.mubr.bf16.mxu0 0
    %1025 = vmatmul.mubr.bf16.gmra.mrb[0].mxu0 %v985
    %v1026 = vpop.f32.mrb[0].mxu0
    %v1027 = vadd.f32 0.0, %v1026
    %v1028 = vpop.f32.mrb[0].mxu0
    %v1029 = vadd.f32 0.0, %v1028
    %v1030 = vpop.f32.mrb[0].mxu0
    %v1031 = vpop.f32.mrb[0].mxu0
    %1032 = vdwg.mxu0
    %1033 = vmatprep.subr.bf16.mxu0 0
    %1034 = vmatpush1.bf16.msra.mxu0 %v611
    %1035 = vmatprep.subr.bf16.mxu0 0
    %1036 = vmatpush1.bf16.msra.mxu0 %v614
    %1037 = vmatprep.subr.bf16.mxu0 0
    %1038 = vmatpush1.bf16.msra.mxu0 %v617
    %1039 = vmatprep.subr.bf16.mxu0 0
    %1040 = vmatpush1.bf16.msra.mxu0 %v620
    %1041 = vmatprep.subr.bf16.mxu0 0
    %1042 = vmatpush1.bf16.msra.mxu0 %v623
    %1043 = vmatprep.subr.bf16.mxu0 0
    %1044 = vmatpush1.bf16.msra.mxu0 %v626
    %1045 = vmatprep.subr.bf16.mxu0 0
    %1046 = vmatpush1.bf16.msra.mxu0 %v629
    %1047 = vmatprep.subr.bf16.mxu0 0
    %1048 = vmatpush1.bf16.msra.mxu0 %v632
    %1049 = vmatprep.subr.bf16.mxu0 0
    %1050 = vmatpush1.bf16.msra.mxu0 0
    %1051 = vmatprep.subr.bf16.mxu0 0
    %1052 = vmatpush1.bf16.msra.mxu0 0
    %1053 = vmatprep.subr.bf16.mxu0 0
    %1054 = vmatpush1.bf16.msra.mxu0 0
    %1055 = vmatprep.subr.bf16.mxu0 0
    %1056 = vmatpush1.bf16.msra.mxu0 0
    %1057 = vmatprep.subr.bf16.mxu0 0
    %1058 = vmatpush1.bf16.msra.mxu0 0
    %1059 = vmatprep.subr.bf16.mxu0 0
    %1060 = vmatpush1.bf16.msra.mxu0 0
    %1061 = vmatprep.subr.bf16.mxu0 0
    %1062 = vmatpush1.bf16.msra.mxu0 0
    %1063 = vmatprep.subr.bf16.mxu0 0
    %1064 = vmatpush1.bf16.msra.mxu0 0
    %1065 = vmatprep.mubr.bf16.mxu0 0
    %1066 = vmatmul.mubr.bf16.gmra.mrb[0].mxu0 %v985
    %v1067 = vpop.f32.mrb[0].mxu0
    %v1068 = vadd.f32 0.0, %v1067
    %v1069 = vpop.f32.mrb[0].mxu0
    %v1070 = vpop.f32.mrb[0].mxu0
    %v1071 = vpop.f32.mrb[0].mxu0
    %1072 = vdwg.mxu0
    %v1073 = vadd.f32 %v989, %v1027
    %v1074 = vxor.u32 %v1073, 2147483648
    %v1075 = vmul.f32 %v1074, 1.442695
    %v1076 = vpow.pop %v1075
    %v1077 = vadd.f32 %v1076, 1.0
    %v1078 = vrcp.pop %v1077
    %v1079 = vmul.f32 1.0, %v1078
    %v1080 = vadd.f32 %v990, %v1029
    %v1081 = vxor.u32 %v1080, 2147483648
    %v1082 = vmul.f32 %v1081, 1.442695
    %v1083 = vpow.pop %v1082
    %v1084 = vadd.f32 %v1083, 1.0
    %v1085 = vrcp.pop %v1084
    %v1086 = vmul.f32 1.0, %v1085
    %v1087 = vadd.f32 %v1068, %v756
    %v1088 = vmul.f32 %v1079, %v1087
    %v1089 = vadd.f32 %v991, %v1088
    %v1090 = vtanh.pop %v1089
    %v1091 = vsub.f32 1.0, %v1086
    %v1092 = vmul.f32 %v1091, %v1090
    %v1093 = vmul.f32 %v1086, %v984
    %v1094 = vadd.f32 %v1092, %v1093
    %v1095 = vpack.c.bf16 %v1094, %v1094
    %s1096 = scalar_lea.vmem [#allocation3], 12
    %1097 = vst [vmem:[%s1096] sm:$0xf] %v1095
    %s1098 = scalar_lea.vmem [#allocation2], 96
    %v1099 = vld [vmem:[%s1098] sm:$0xff]
    %v1100 = vld [vmem:[%s1098 + $0x8] sm:$0xff]
    %v1101 = vld [vmem:[%s1098 + $0x10] sm:$0xff]
    %1102 = vmatprep.subr.bf16.mxu0 %v610
    %1103 = vmatpush1.bf16.msra.mxu0 %v609
    %1104 = vmatprep.subr.bf16.mxu0 %v613
    %1105 = vmatpush1.bf16.msra.mxu0 %v612
    %1106 = vmatprep.subr.bf16.mxu0 %v616
    %1107 = vmatpush1.bf16.msra.mxu0 %v615
    %1108 = vmatprep.subr.bf16.mxu0 %v619
    %1109 = vmatpush1.bf16.msra.mxu0 %v618
    %1110 = vmatprep.subr.bf16.mxu0 %v622
    %1111 = vmatpush1.bf16.msra.mxu0 %v621
    %1112 = vmatprep.subr.bf16.mxu0 %v625
    %1113 = vmatpush1.bf16.msra.mxu0 %v624
    %1114 = vmatprep.subr.bf16.mxu0 %v628
    %1115 = vmatpush1.bf16.msra.mxu0 %v627
    %1116 = vmatprep.subr.bf16.mxu0 %v631
    %1117 = vmatpush1.bf16.msra.mxu0 %v630
    %1118 = vmatprep.subr.bf16.mxu0 0
    %1119 = vmatpush1.bf16.msra.mxu0 0
    %1120 = vmatprep.subr.bf16.mxu0 0
    %1121 = vmatpush1.bf16.msra.mxu0 0
    %1122 = vmatprep.subr.bf16.mxu0 0
    %1123 = vmatpush1.bf16.msra.mxu0 0
    %1124 = vmatprep.subr.bf16.mxu0 0
    %1125 = vmatpush1.bf16.msra.mxu0 0
    %1126 = vmatprep.subr.bf16.mxu0 0
    %1127 = vmatpush1.bf16.msra.mxu0 0
    %1128 = vmatprep.subr.bf16.mxu0 0
    %1129 = vmatpush1.bf16.msra.mxu0 0
    %1130 = vmatprep.subr.bf16.mxu0 0
    %1131 = vmatpush1.bf16.msra.mxu0 0
    %1132 = vmatprep.subr.bf16.mxu0 0
    %1133 = vmatpush1.bf16.msra.mxu0 0
    %1134 = vmatprep.mubr.bf16.mxu0 0
    %1135 = vmatmul.mubr.bf16.gmra.mrb[0].mxu0 %v1095
    %v1136 = vpop.f32.mrb[0].mxu0
    %v1137 = vadd.f32 0.0, %v1136
    %v1138 = vpop.f32.mrb[0].mxu0
    %v1139 = vadd.f32 0.0, %v1138
    %v1140 = vpop.f32.mrb[0].mxu0
    %v1141 = vpop.f32.mrb[0].mxu0
    %1142 = vdwg.mxu0
    %1143 = vmatprep.subr.bf16.mxu0 0
    %1144 = vmatpush1.bf16.msra.mxu0 %v611
    %1145 = vmatprep.subr.bf16.mxu0 0
    %1146 = vmatpush1.bf16.msra.mxu0 %v614
    %1147 = vmatprep.subr.bf16.mxu0 0
    %1148 = vmatpush1.bf16.msra.mxu0 %v617
    %1149 = vmatprep.subr.bf16.mxu0 0
    %1150 = vmatpush1.bf16.msra.mxu0 %v620
    %1151 = vmatprep.subr.bf16.mxu0 0
    %1152 = vmatpush1.bf16.msra.mxu0 %v623
    %1153 = vmatprep.subr.bf16.mxu0 0
    %1154 = vmatpush1.bf16.msra.mxu0 %v626
    %1155 = vmatprep.subr.bf16.mxu0 0
    %1156 = vmatpush1.bf16.msra.mxu0 %v629
    %1157 = vmatprep.subr.bf16.mxu0 0
    %1158 = vmatpush1.bf16.msra.mxu0 %v632
    %1159 = vmatprep.subr.bf16.mxu0 0
    %1160 = vmatpush1.bf16.msra.mxu0 0
    %1161 = vmatprep.subr.bf16.mxu0 0
    %1162 = vmatpush1.bf16.msra.mxu0 0
    %1163 = vmatprep.subr.bf16.mxu0 0
    %1164 = vmatpush1.bf16.msra.mxu0 0
    %1165 = vmatprep.subr.bf16.mxu0 0
    %1166 = vmatpush1.bf16.msra.mxu0 0
    %1167 = vmatprep.subr.bf16.mxu0 0
    %1168 = vmatpush1.bf16.msra.mxu0 0
    %1169 = vmatprep.subr.bf16.mxu0 0
    %1170 = vmatpush1.bf16.msra.mxu0 0
    %1171 = vmatprep.subr.bf16.mxu0 0
    %1172 = vmatpush1.bf16.msra.mxu0 0
    %1173 = vmatprep.subr.bf16.mxu0 0
    %1174 = vmatpush1.bf16.msra.mxu0 0
    %1175 = vmatprep.mubr.bf16.mxu0 0
    %1176 = vmatmul.mubr.bf16.gmra.mrb[0].mxu0 %v1095
    %v1177 = vpop.f32.mrb[0].mxu0
    %v1178 = vadd.f32 0.0, %v1177
    %v1179 = vpop.f32.mrb[0].mxu0
    %v1180 = vpop.f32.mrb[0].mxu0
    %v1181 = vpop.f32.mrb[0].mxu0
    %1182 = vdwg.mxu0
    %v1183 = vadd.f32 %v1099, %v1137
    %v1184 = vxor.u32 %v1183, 2147483648
    %v1185 = vmul.f32 %v1184, 1.442695
    %v1186 = vpow.pop %v1185
    %v1187 = vadd.f32 %v1186, 1.0
    %v1188 = vrcp.pop %v1187
    %v1189 = vmul.f32 1.0, %v1188
    %v1190 = vadd.f32 %v1100, %v1139
    %v1191 = vxor.u32 %v1190, 2147483648
    %v1192 = vmul.f32 %v1191, 1.442695
    %v1193 = vpow.pop %v1192
    %v1194 = vadd.f32 %v1193, 1.0
    %v1195 = vrcp.pop %v1194
    %v1196 = vmul.f32 1.0, %v1195
    %v1197 = vadd.f32 %v1178, %v756
    %v1198 = vmul.f32 %v1189, %v1197
    %v1199 = vadd.f32 %v1101, %v1198
    %v1200 = vtanh.pop %v1199
    %v1201 = vsub.f32 1.0, %v1196
    %v1202 = vmul.f32 %v1201, %v1200
    %v1203 = vmul.f32 %v1196, %v1094
    %v1204 = vadd.f32 %v1202, %v1203
    %v1205 = vpack.c.bf16 %v1204, %v1204
    %s1206 = scalar_lea.vmem [#allocation3], 16
    %1207 = vst [vmem:[%s1206] sm:$0xf] %v1205
    %s1208 = scalar_lea.vmem [#allocation2], 120
    %v1209 = vld [vmem:[%s1208] sm:$0xff]
    %v1210 = vld [vmem:[%s1208 + $0x8] sm:$0xff]
    %v1211 = vld [vmem:[%s1208 + $0x10] sm:$0xff]
    %1212 = vmatprep.subr.bf16.mxu0 %v610
    %1213 = vmatpush1.bf16.msra.mxu0 %v609
    %1214 = vmatprep.subr.bf16.mxu0 %v613
    %1215 = vmatpush1.bf16.msra.mxu0 %v612
    %1216 = vmatprep.subr.bf16.mxu0 %v616
    %1217 = vmatpush1.bf16.msra.mxu0 %v615
    %1218 = vmatprep.subr.bf16.mxu0 %v619
    %1219 = vmatpush1.bf16.msra.mxu0 %v618
    %1220 = vmatprep.subr.bf16.mxu0 %v622
    %1221 = vmatpush1.bf16.msra.mxu0 %v621
    %1222 = vmatprep.subr.bf16.mxu0 %v625
    %1223 = vmatpush1.bf16.msra.mxu0 %v624
    %1224 = vmatprep.subr.bf16.mxu0 %v628
    %1225 = vmatpush1.bf16.msra.mxu0 %v627
    %1226 = vmatprep.subr.bf16.mxu0 %v631
    %1227 = vmatpush1.bf16.msra.mxu0 %v630
    %1228 = vmatprep.subr.bf16.mxu0 0
    %1229 = vmatpush1.bf16.msra.mxu0 0
    %1230 = vmatprep.subr.bf16.mxu0 0
    %1231 = vmatpush1.bf16.msra.mxu0 0
    %1232 = vmatprep.subr.bf16.mxu0 0
    %1233 = vmatpush1.bf16.msra.mxu0 0
    %1234 = vmatprep.subr.bf16.mxu0 0
    %1235 = vmatpush1.bf16.msra.mxu0 0
    %1236 = vmatprep.subr.bf16.mxu0 0
    %1237 = vmatpush1.bf16.msra.mxu0 0
    %1238 = vmatprep.subr.bf16.mxu0 0
    %1239 = vmatpush1.bf16.msra.mxu0 0
    %1240 = vmatprep.subr.bf16.mxu0 0
    %1241 = vmatpush1.bf16.msra.mxu0 0
    %1242 = vmatprep.subr.bf16.mxu0 0
    %1243 = vmatpush1.bf16.msra.mxu0 0
    %1244 = vmatprep.mubr.bf16.mxu0 0
    %1245 = vmatmul.mubr.bf16.gmra.mrb[0].mxu0 %v1205
    %v1246 = vpop.f32.mrb[0].mxu0
    %v1247 = vadd.f32 0.0, %v1246
    %v1248 = vpop.f32.mrb[0].mxu0
    %v1249 = vadd.f32 0.0, %v1248
    %v1250 = vpop.f32.mrb[0].mxu0
    %v1251 = vpop.f32.mrb[0].mxu0
    %1252 = vdwg.mxu0
    %1253 = vmatprep.subr.bf16.mxu0 0
    %1254 = vmatpush1.bf16.msra.mxu0 %v611
    %1255 = vmatprep.subr.bf16.mxu0 0
    %1256 = vmatpush1.bf16.msra.mxu0 %v614
    %1257 = vmatprep.subr.bf16.mxu0 0
    %1258 = vmatpush1.bf16.msra.mxu0 %v617
    %1259 = vmatprep.subr.bf16.mxu0 0
    %1260 = vmatpush1.bf16.msra.mxu0 %v620
    %1261 = vmatprep.subr.bf16.mxu0 0
    %1262 = vmatpush1.bf16.msra.mxu0 %v623
    %1263 = vmatprep.subr.bf16.mxu0 0
    %1264 = vmatpush1.bf16.msra.mxu0 %v626
    %1265 = vmatprep.subr.bf16.mxu0 0
    %1266 = vmatpush1.bf16.msra.mxu0 %v629
    %1267 = vmatprep.subr.bf16.mxu0 0
    %1268 = vmatpush1.bf16.msra.mxu0 %v632
    %1269 = vmatprep.subr.bf16.mxu0 0
    %1270 = vmatpush1.bf16.msra.mxu0 0
    %1271 = vmatprep.subr.bf16.mxu0 0
    %1272 = vmatpush1.bf16.msra.mxu0 0
    %1273 = vmatprep.subr.bf16.mxu0 0
    %1274 = vmatpush1.bf16.msra.mxu0 0
    %1275 = vmatprep.subr.bf16.mxu0 0
    %1276 = vmatpush1.bf16.msra.mxu0 0
    %1277 = vmatprep.subr.bf16.mxu0 0
    %1278 = vmatpush1.bf16.msra.mxu0 0
    %1279 = vmatprep.subr.bf16.mxu0 0
    %1280 = vmatpush1.bf16.msra.mxu0 0
    %1281 = vmatprep.subr.bf16.mxu0 0
    %1282 = vmatpush1.bf16.msra.mxu0 0
    %1283 = vmatprep.subr.bf16.mxu0 0
    %1284 = vmatpush1.bf16.msra.mxu0 0
    %1285 = vmatprep.mubr.bf16.mxu0 0
    %1286 = vmatmul.mubr.bf16.gmra.mrb[0].mxu0 %v1205
    %v1287 = vpop.f32.mrb[0].mxu0
    %v1288 = vadd.f32 0.0, %v1287
    %v1289 = vpop.f32.mrb[0].mxu0
    %v1290 = vpop.f32.mrb[0].mxu0
    %v1291 = vpop.f32.mrb[0].mxu0
    %1292 = vdwg.mxu0
    %v1293 = vadd.f32 %v1209, %v1247
    %v1294 = vxor.u32 %v1293, 2147483648
    %v1295 = vmul.f32 %v1294, 1.442695
    %v1296 = vpow.pop %v1295
    %v1297 = vadd.f32 %v1296, 1.0
    %v1298 = vrcp.pop %v1297
    %v1299 = vmul.f32 1.0, %v1298
    %v1300 = vadd.f32 %v1210, %v1249
    %v1301 = vxor.u32 %v1300, 2147483648
    %v1302 = vmul.f32 %v1301, 1.442695
    %v1303 = vpow.pop %v1302
    %v1304 = vadd.f32 %v1303, 1.0
    %v1305 = vrcp.pop %v1304
    %v1306 = vmul.f32 1.0, %v1305
    %v1307 = vadd.f32 %v1288, %v756
    %v1308 = vmul.f32 %v1299, %v1307
    %v1309 = vadd.f32 %v1211, %v1308
    %v1310 = vtanh.pop %v1309
    %v1311 = vsub.f32 1.0, %v1306
    %v1312 = vmul.f32 %v1311, %v1310
    %v1313 = vmul.f32 %v1306, %v1204
    %v1314 = vadd.f32 %v1312, %v1313
    %v1315 = vpack.c.bf16 %v1314, %v1314
    %s1316 = scalar_lea.vmem [#allocation3], 20
    %1317 = vst [vmem:[%s1316] sm:$0xf] %v1315
    %s1318 = scalar_lea.vmem [#allocation2], 144
    %v1319 = vld [vmem:[%s1318] sm:$0xff]
    %v1320 = vld [vmem:[%s1318 + $0x8] sm:$0xff]
    %v1321 = vld [vmem:[%s1318 + $0x10] sm:$0xff]
    %1322 = vmatprep.subr.bf16.mxu0 %v610
    %1323 = vmatpush1.bf16.msra.mxu0 %v609
    %1324 = vmatprep.subr.bf16.mxu0 %v613
    %1325 = vmatpush1.bf16.msra.mxu0 %v612
    %1326 = vmatprep.subr.bf16.mxu0 %v616
    %1327 = vmatpush1.bf16.msra.mxu0 %v615
    %1328 = vmatprep.subr.bf16.mxu0 %v619
    %1329 = vmatpush1.bf16.msra.mxu0 %v618
    %1330 = vmatprep.subr.bf16.mxu0 %v622
    %1331 = vmatpush1.bf16.msra.mxu0 %v621
    %1332 = vmatprep.subr.bf16.mxu0 %v625
    %1333 = vmatpush1.bf16.msra.mxu0 %v624
    %1334 = vmatprep.subr.bf16.mxu0 %v628
    %1335 = vmatpush1.bf16.msra.mxu0 %v627
    %1336 = vmatprep.subr.bf16.mxu0 %v631
    %1337 = vmatpush1.bf16.msra.mxu0 %v630
    %1338 = vmatprep.subr.bf16.mxu0 0
    %1339 = vmatpush1.bf16.msra.mxu0 0
    %1340 = vmatprep.subr.bf16.mxu0 0
    %1341 = vmatpush1.bf16.msra.mxu0 0
    %1342 = vmatprep.subr.bf16.mxu0 0
    %1343 = vmatpush1.bf16.msra.mxu0 0
    %1344 = vmatprep.subr.bf16.mxu0 0
    %1345 = vmatpush1.bf16.msra.mxu0 0
    %1346 = vmatprep.subr.bf16.mxu0 0
    %1347 = vmatpush1.bf16.msra.mxu0 0
    %1348 = vmatprep.subr.bf16.mxu0 0
    %1349 = vmatpush1.bf16.msra.mxu0 0
    %1350 = vmatprep.subr.bf16.mxu0 0
    %1351 = vmatpush1.bf16.msra.mxu0 0
    %1352 = vmatprep.subr.bf16.mxu0 0
    %1353 = vmatpush1.bf16.msra.mxu0 0
    %1354 = vmatprep.mubr.bf16.mxu0 0
    %1355 = vmatmul.mubr.bf16.gmra.mrb[0].mxu0 %v1315
    %v1356 = vpop.f32.mrb[0].mxu0
    %v1357 = vadd.f32 0.0, %v1356
    %v1358 = vpop.f32.mrb[0].mxu0
    %v1359 = vadd.f32 0.0, %v1358
    %v1360 = vpop.f32.mrb[0].mxu0
    %v1361 = vpop.f32.mrb[0].mxu0
    %1362 = vdwg.mxu0
    %1363 = vmatprep.subr.bf16.mxu0 0
    %1364 = vmatpush1.bf16.msra.mxu0 %v611
    %1365 = vmatprep.subr.bf16.mxu0 0
    %1366 = vmatpush1.bf16.msra.mxu0 %v614
    %1367 = vmatprep.subr.bf16.mxu0 0
    %1368 = vmatpush1.bf16.msra.mxu0 %v617
    %1369 = vmatprep.subr.bf16.mxu0 0
    %1370 = vmatpush1.bf16.msra.mxu0 %v620
    %1371 = vmatprep.subr.bf16.mxu0 0
    %1372 = vmatpush1.bf16.msra.mxu0 %v623
    %1373 = vmatprep.subr.bf16.mxu0 0
    %1374 = vmatpush1.bf16.msra.mxu0 %v626
    %1375 = vmatprep.subr.bf16.mxu0 0
    %1376 = vmatpush1.bf16.msra.mxu0 %v629
    %1377 = vmatprep.subr.bf16.mxu0 0
    %1378 = vmatpush1.bf16.msra.mxu0 %v632
    %1379 = vmatprep.subr.bf16.mxu0 0
    %1380 = vmatpush1.bf16.msra.mxu0 0
    %1381 = vmatprep.subr.bf16.mxu0 0
    %1382 = vmatpush1.bf16.msra.mxu0 0
    %1383 = vmatprep.subr.bf16.mxu0 0
    %1384 = vmatpush1.bf16.msra.mxu0 0
    %1385 = vmatprep.subr.bf16.mxu0 0
    %1386 = vmatpush1.bf16.msra.mxu0 0
    %1387 = vmatprep.subr.bf16.mxu0 0
    %1388 = vmatpush1.bf16.msra.mxu0 0
    %1389 = vmatprep.subr.bf16.mxu0 0
    %1390 = vmatpush1.bf16.msra.mxu0 0
    %1391 = vmatprep.subr.bf16.mxu0 0
    %1392 = vmatpush1.bf16.msra.mxu0 0
    %1393 = vmatprep.subr.bf16.mxu0 0
    %1394 = vmatpush1.bf16.msra.mxu0 0
    %1395 = vmatprep.mubr.bf16.mxu0 0
    %1396 = vmatmul.mubr.bf16.gmra.mrb[0].mxu0 %v1315
    %v1397 = vpop.f32.mrb[0].mxu0
    %v1398 = vadd.f32 0.0, %v1397
    %v1399 = vpop.f32.mrb[0].mxu0
    %v1400 = vpop.f32.mrb[0].mxu0
    %v1401 = vpop.f32.mrb[0].mxu0
    %1402 = vdwg.mxu0
    %v1403 = vadd.f32 %v1319, %v1357
    %v1404 = vxor.u32 %v1403, 2147483648
    %v1405 = vmul.f32 %v1404, 1.442695
    %v1406 = vpow.pop %v1405
    %v1407 = vadd.f32 %v1406, 1.0
    %v1408 = vrcp.pop %v1407
    %v1409 = vmul.f32 1.0, %v1408
    %v1410 = vadd.f32 %v1320, %v1359
    %v1411 = vxor.u32 %v1410, 2147483648
    %v1412 = vmul.f32 %v1411, 1.442695
    %v1413 = vpow.pop %v1412
    %v1414 = vadd.f32 %v1413, 1.0
    %v1415 = vrcp.pop %v1414
    %v1416 = vmul.f32 1.0, %v1415
    %v1417 = vadd.f32 %v1398, %v756
    %v1418 = vmul.f32 %v1409, %v1417
    %v1419 = vadd.f32 %v1321, %v1418
    %v1420 = vtanh.pop %v1419
    %v1421 = vsub.f32 1.0, %v1416
    %v1422 = vmul.f32 %v1421, %v1420
    %v1423 = vmul.f32 %v1416, %v1314
    %v1424 = vadd.f32 %v1422, %v1423
    %v1425 = vpack.c.bf16 %v1424, %v1424
    %s1426 = scalar_lea.vmem [#allocation3], 24
    %1427 = vst [vmem:[%s1426] sm:$0xf] %v1425
    %s1428 = scalar_lea.vmem [#allocation2], 168
    %v1429 = vld [vmem:[%s1428] sm:$0xff]
    %v1430 = vld [vmem:[%s1428 + $0x8] sm:$0xff]
    %v1431 = vld [vmem:[%s1428 + $0x10] sm:$0xff]
    %1432 = vmatprep.subr.bf16.mxu0 %v610
    %1433 = vmatpush1.bf16.msra.mxu0 %v609
    %1434 = vmatprep.subr.bf16.mxu0 %v613
    %1435 = vmatpush1.bf16.msra.mxu0 %v612
    %1436 = vmatprep.subr.bf16.mxu0 %v616
    %1437 = vmatpush1.bf16.msra.mxu0 %v615
    %1438 = vmatprep.subr.bf16.mxu0 %v619
    %1439 = vmatpush1.bf16.msra.mxu0 %v618
    %1440 = vmatprep.subr.bf16.mxu0 %v622
    %1441 = vmatpush1.bf16.msra.mxu0 %v621
    %1442 = vmatprep.subr.bf16.mxu0 %v625
    %1443 = vmatpush1.bf16.msra.mxu0 %v624
    %1444 = vmatprep.subr.bf16.mxu0 %v628
    %1445 = vmatpush1.bf16.msra.mxu0 %v627
    %1446 = vmatprep.subr.bf16.mxu0 %v631
    %1447 = vmatpush1.bf16.msra.mxu0 %v630
    %1448 = vmatprep.subr.bf16.mxu0 0
    %1449 = vmatpush1.bf16.msra.mxu0 0
    %1450 = vmatprep.subr.bf16.mxu0 0
    %1451 = vmatpush1.bf16.msra.mxu0 0
    %1452 = vmatprep.subr.bf16.mxu0 0
    %1453 = vmatpush1.bf16.msra.mxu0 0
    %1454 = vmatprep.subr.bf16.mxu0 0
    %1455 = vmatpush1.bf16.msra.mxu0 0
    %1456 = vmatprep.subr.bf16.mxu0 0
    %1457 = vmatpush1.bf16.msra.mxu0 0
    %1458 = vmatprep.subr.bf16.mxu0 0
    %1459 = vmatpush1.bf16.msra.mxu0 0
    %1460 = vmatprep.subr.bf16.mxu0 0
    %1461 = vmatpush1.bf16.msra.mxu0 0
    %1462 = vmatprep.subr.bf16.mxu0 0
    %1463 = vmatpush1.bf16.msra.mxu0 0
    %1464 = vmatprep.mubr.bf16.mxu0 0
    %1465 = vmatmul.mubr.bf16.gmra.mrb[0].mxu0 %v1425
    %v1466 = vpop.f32.mrb[0].mxu0
    %v1467 = vadd.f32 0.0, %v1466
    %v1468 = vpop.f32.mrb[0].mxu0
    %v1469 = vadd.f32 0.0, %v1468
    %v1470 = vpop.f32.mrb[0].mxu0
    %v1471 = vpop.f32.mrb[0].mxu0
    %1472 = vdwg.mxu0
    %1473 = vmatprep.subr.bf16.mxu0 0
    %1474 = vmatpush1.bf16.msra.mxu0 %v611
    %1475 = vmatprep.subr.bf16.mxu0 0
    %1476 = vmatpush1.bf16.msra.mxu0 %v614
    %1477 = vmatprep.subr.bf16.mxu0 0
    %1478 = vmatpush1.bf16.msra.mxu0 %v617
    %1479 = vmatprep.subr.bf16.mxu0 0
    %1480 = vmatpush1.bf16.msra.mxu0 %v620
    %1481 = vmatprep.subr.bf16.mxu0 0
    %1482 = vmatpush1.bf16.msra.mxu0 %v623
    %1483 = vmatprep.subr.bf16.mxu0 0
    %1484 = vmatpush1.bf16.msra.mxu0 %v626
    %1485 = vmatprep.subr.bf16.mxu0 0
    %1486 = vmatpush1.bf16.msra.mxu0 %v629
    %1487 = vmatprep.subr.bf16.mxu0 0
    %1488 = vmatpush1.bf16.msra.mxu0 %v632
    %1489 = vmatprep.subr.bf16.mxu0 0
    %1490 = vmatpush1.bf16.msra.mxu0 0
    %1491 = vmatprep.subr.bf16.mxu0 0
    %1492 = vmatpush1.bf16.msra.mxu0 0
    %1493 = vmatprep.subr.bf16.mxu0 0
    %1494 = vmatpush1.bf16.msra.mxu0 0
    %1495 = vmatprep.subr.bf16.mxu0 0
    %1496 = vmatpush1.bf16.msra.mxu0 0
    %1497 = vmatprep.subr.bf16.mxu0 0
    %1498 = vmatpush1.bf16.msra.mxu0 0
    %1499 = vmatprep.subr.bf16.mxu0 0
    %1500 = vmatpush1.bf16.msra.mxu0 0
    %1501 = vmatprep.subr.bf16.mxu0 0
    %1502 = vmatpush1.bf16.msra.mxu0 0
    %1503 = vmatprep.subr.bf16.mxu0 0
    %1504 = vmatpush1.bf16.msra.mxu0 0
    %1505 = vmatprep.mubr.bf16.mxu0 0
    %1506 = vmatmul.mubr.bf16.gmra.mrb[0].mxu0 %v1425
    %v1507 = vpop.f32.mrb[0].mxu0
    %v1508 = vadd.f32 0.0, %v1507
    %v1509 = vpop.f32.mrb[0].mxu0
    %v1510 = vpop.f32.mrb[0].mxu0
    %v1511 = vpop.f32.mrb[0].mxu0
    %1512 = vdwg.mxu0
    %v1513 = vadd.f32 %v1429, %v1467
    %v1514 = vxor.u32 %v1513, 2147483648
    %v1515 = vmul.f32 %v1514, 1.442695
    %v1516 = vpow.pop %v1515
    %v1517 = vadd.f32 %v1516, 1.0
    %v1518 = vrcp.pop %v1517
    %v1519 = vmul.f32 1.0, %v1518
    %v1520 = vadd.f32 %v1430, %v1469
    %v1521 = vxor.u32 %v1520, 2147483648
    %v1522 = vmul.f32 %v1521, 1.442695
    %v1523 = vpow.pop %v1522
    %v1524 = vadd.f32 %v1523, 1.0
    %v1525 = vrcp.pop %v1524
    %v1526 = vmul.f32 1.0, %v1525
    %v1527 = vadd.f32 %v1508, %v756
    %v1528 = vmul.f32 %v1519, %v1527
    %v1529 = vadd.f32 %v1431, %v1528
    %v1530 = vtanh.pop %v1529
    %v1531 = vsub.f32 1.0, %v1526
    %v1532 = vmul.f32 %v1531, %v1530
    %v1533 = vmul.f32 %v1526, %v1424
    %v1534 = vadd.f32 %v1532, %v1533
    %v1535 = vpack.c.bf16 %v1534, %v1534
    %s1536 = scalar_lea.vmem [#allocation3], 28
    %1537 = vst [vmem:[%s1536] sm:$0xf] %v1535
    %v1538 = vld [vmem:[#allocation3] sm:$0xf]
    %v1539 = vld [vmem:[#allocation3 + $0x4] sm:$0xf]
    %v1540 = vld [vmem:[#allocation3 + $0x8] sm:$0xf]
    %v1541 = vld [vmem:[#allocation3 + $0xc] sm:$0xf]
    %v1542 = vld [vmem:[#allocation3 + $0x10] sm:$0xf]
    %v1543 = vld [vmem:[#allocation3 + $0x14] sm:$0xf]
    %v1544 = vld [vmem:[#allocation3 + $0x18] sm:$0xf]
    %v1545 = vld [vmem:[#allocation3 + $0x1c] sm:$0xf]
    %v1546 = vld [vmem:[#allocation12] sm:$0xff]
    %v1547 = vld [vmem:[#allocation12 + $0x8] sm:$0xf]
    %v1548 = vld [vmem:[#allocation12 + $0xc] sm:$0xff]
    %v1549 = vld [vmem:[#allocation12 + $0x14] sm:$0xf]
    %v1550 = vld [vmem:[#allocation12 + $0x18] sm:$0xff]
    %v1551 = vld [vmem:[#allocation12 + $0x20] sm:$0xf]
    %v1552 = vld [vmem:[#allocation12 + $0x24] sm:$0xff]
    %v1553 = vld [vmem:[#allocation12 + $0x2c] sm:$0xf]
    %v1554 = vld [vmem:[#allocation12 + $0x30] sm:$0xff]
    %v1555 = vld [vmem:[#allocation12 + $0x38] sm:$0xf]
    %v1556 = vld [vmem:[#allocation12 + $0x3c] sm:$0xff]
    %v1557 = vld [vmem:[#allocation12 + $0x44] sm:$0xf]
    %v1558 = vld [vmem:[#allocation12 + $0x48] sm:$0xff]
    %v1559 = vld [vmem:[#allocation12 + $0x50] sm:$0xf]
    %v1560 = vld [vmem:[#allocation12 + $0x54] sm:$0xff]
    %v1561 = vld [vmem:[#allocation12 + $0x5c] sm:$0xf]
    %v1562 = vld [vmem:[#allocation12 + $0x60] sm:$0xff]
    %v1563 = vld [vmem:[#allocation12 + $0x68] sm:$0xf]
    %v1564 = vld [vmem:[#allocation12 + $0x6c] sm:$0xff]
    %v1565 = vld [vmem:[#allocation12 + $0x74] sm:$0xf]
    %v1566 = vld [vmem:[#allocation12 + $0x78] sm:$0xff]
    %v1567 = vld [vmem:[#allocation12 + $0x80] sm:$0xf]
    %v1568 = vld [vmem:[#allocation12 + $0x84] sm:$0xff]
    %v1569 = vld [vmem:[#allocation12 + $0x8c] sm:$0xf]
    %v1570 = vld [vmem:[#allocation12 + $0x90] sm:$0xff]
    %v1571 = vld [vmem:[#allocation12 + $0x98] sm:$0xf]
    %v1572 = vld [vmem:[#allocation12 + $0x9c] sm:$0xff]
    %v1573 = vld [vmem:[#allocation12 + $0xa4] sm:$0xf]
    %v1574 = vld [vmem:[#allocation12 + $0xa8] sm:$0xff]
    %v1575 = vld [vmem:[#allocation12 + $0xb0] sm:$0xf]
    %v1576 = vld [vmem:[#allocation12 + $0xb4] sm:$0xff]
    %v1577 = vld [vmem:[#allocation12 + $0xbc] sm:$0xf]
    %v1578 = vld [vmem:[%s7] sm:$0x7]
    %v1580 = vlaneseq
    %v1581 = vshrl.u32 %v1580, 7
    %v1582 = vsub.s32 0, %v1581
    %v1583 = vrot.slane %v1578, %v1582
    %v1584 = vlaneseq
    %v1585 = vshrl.u32 %v1584, 7
    %v1586 = vsub.s32 1, %v1585
    %v1587 = vrot.slane %v1578, %v1586
    %v1588 = vlaneseq
    %v1589 = vshrl.u32 %v1588, 7
    %v1590 = vsub.s32 2, %v1589
    %v1591 = vrot.slane %v1578, %v1590
    %v1603 = vunpack.c.l.b16 %v1538
    %v1604 = vunpack.c.l.b16 %v1539
    %v1605 = vunpack.c.l.b16 %v1540
    %v1606 = vunpack.c.l.b16 %v1541
    %v1607 = vunpack.c.l.b16 %v1542
    %v1608 = vunpack.c.l.b16 %v1543
    %v1609 = vunpack.c.l.b16 %v1544
    %v1610 = vunpack.c.l.b16 %v1545
    %v1611 = vpack.c.b16 %v1604, %v1603
    %v1612 = vpack.c.b16 %v1606, %v1605
    %v1613 = vpack.c.b16 %v1608, %v1607
    %v1614 = vpack.c.b16 %v1610, %v1609
    %v1651 = vunpack.c.l.b16 %v1546
    %v1652 = vunpack.c.h.b16 %v1546
    %v1653 = vunpack.c.l.b16 %v1547
    %v1654 = vunpack.c.l.b16 %v1548
    %v1655 = vunpack.c.h.b16 %v1548
    %v1656 = vunpack.c.l.b16 %v1549
    %v1657 = vunpack.c.l.b16 %v1550
    %v1658 = vunpack.c.h.b16 %v1550
    %v1659 = vunpack.c.l.b16 %v1551
    %v1660 = vunpack.c.l.b16 %v1552
    %v1661 = vunpack.c.h.b16 %v1552
    %v1662 = vunpack.c.l.b16 %v1553
    %v1663 = vunpack.c.l.b16 %v1554
    %v1664 = vunpack.c.h.b16 %v1554
    %v1665 = vunpack.c.l.b16 %v1555
    %v1666 = vunpack.c.l.b16 %v1556
    %v1667 = vunpack.c.h.b16 %v1556
    %v1668 = vunpack.c.l.b16 %v1557
    %v1669 = vunpack.c.l.b16 %v1558
    %v1670 = vunpack.c.h.b16 %v1558
    %v1671 = vunpack.c.l.b16 %v1559
    %v1672 = vunpack.c.l.b16 %v1560
    %v1673 = vunpack.c.h.b16 %v1560
    %v1674 = vunpack.c.l.b16 %v1561
    %v1675 = vunpack.c.l.b16 %v1562
    %v1676 = vunpack.c.h.b16 %v1562
    %v1677 = vunpack.c.l.b16 %v1563
    %v1678 = vunpack.c.l.b16 %v1564
    %v1679 = vunpack.c.h.b16 %v1564
    %v1680 = vunpack.c.l.b16 %v1565
    %v1681 = vunpack.c.l.b16 %v1566
    %v1682 = vunpack.c.h.b16 %v1566
    %v1683 = vunpack.c.l.b16 %v1567
    %v1684 = vunpack.c.l.b16 %v1568
    %v1685 = vunpack.c.h.b16 %v1568
    %v1686 = vunpack.c.l.b16 %v1569
    %v1687 = vunpack.c.l.b16 %v1570
    %v1688 = vunpack.c.h.b16 %v1570
    %v1689 = vunpack.c.l.b16 %v1571
    %v1690 = vunpack.c.l.b16 %v1572
    %v1691 = vunpack.c.h.b16 %v1572
    %v1692 = vunpack.c.l.b16 %v1573
    %v1693 = vunpack.c.l.b16 %v1574
    %v1694 = vunpack.c.h.b16 %v1574
    %v1695 = vunpack.c.l.b16 %v1575
    %v1696 = vunpack.c.l.b16 %v1576
    %v1697 = vunpack.c.h.b16 %v1576
    %v1698 = vunpack.c.l.b16 %v1577
    %v1699 = vpack.c.b16 %v1654, %v1651
    %v1700 = vpack.c.b16 %v1655, %v1652
    %v1701 = vpack.c.b16 %v1656, %v1653
    %v1702 = vpack.c.b16 %v1660, %v1657
    %v1703 = vpack.c.b16 %v1661, %v1658
    %v1704 = vpack.c.b16 %v1662, %v1659
    %v1705 = vpack.c.b16 %v1666, %v1663
    %v1706 = vpack.c.b16 %v1667, %v1664
    %v1707 = vpack.c.b16 %v1668, %v1665
    %v1708 = vpack.c.b16 %v1672, %v1669
    %v1709 = vpack.c.b16 %v1673, %v1670
    %v1710 = vpack.c.b16 %v1674, %v1671
    %v1711 = vpack.c.b16 %v1678, %v1675
    %v1712 = vpack.c.b16 %v1679, %v1676
    %v1713 = vpack.c.b16 %v1680, %v1677
    %v1714 = vpack.c.b16 %v1684, %v1681
    %v1715 = vpack.c.b16 %v1685, %v1682
    %v1716 = vpack.c.b16 %v1686, %v1683
    %v1717 = vpack.c.b16 %v1690, %v1687
    %v1718 = vpack.c.b16 %v1691, %v1688
    %v1719 = vpack.c.b16 %v1692, %v1689
    %v1720 = vpack.c.b16 %v1696, %v1693
    %v1721 = vpack.c.b16 %v1697, %v1694
    %v1722 = vpack.c.b16 %v1698, %v1695
    %1747 = vmatprep.subr.bf16.mxu0 %v1700
    %1748 = vmatpush1.bf16.msra.mxu0 %v1699
    %1749 = vmatprep.subr.bf16.mxu0 %v1703
    %1750 = vmatpush1.bf16.msra.mxu0 %v1702
    %1751 = vmatprep.subr.bf16.mxu0 %v1706
    %1752 = vmatpush1.bf16.msra.mxu0 %v1705
    %1753 = vmatprep.subr.bf16.mxu0 %v1709
    %1754 = vmatpush1.bf16.msra.mxu0 %v1708
    %1755 = vmatprep.subr.bf16.mxu0 %v1712
    %1756 = vmatpush1.bf16.msra.mxu0 %v1711
    %1757 = vmatprep.subr.bf16.mxu0 %v1715
    %1758 = vmatpush1.bf16.msra.mxu0 %v1714
    %1759 = vmatprep.subr.bf16.mxu0 %v1718
    %1760 = vmatpush1.bf16.msra.mxu0 %v1717
    %1761 = vmatprep.subr.bf16.mxu0 %v1721
    %1762 = vmatpush1.bf16.msra.mxu0 %v1720
    %1763 = vmatprep.subr.bf16.mxu0 0
    %1764 = vmatpush1.bf16.msra.mxu0 0
    %1765 = vmatprep.subr.bf16.mxu0 0
    %1766 = vmatpush1.bf16.msra.mxu0 0
    %1767 = vmatprep.subr.bf16.mxu0 0
    %1768 = vmatpush1.bf16.msra.mxu0 0
    %1769 = vmatprep.subr.bf16.mxu0 0
    %1770 = vmatpush1.bf16.msra.mxu0 0
    %1771 = vmatprep.subr.bf16.mxu0 0
    %1772 = vmatpush1.bf16.msra.mxu0 0
    %1773 = vmatprep.subr.bf16.mxu0 0
    %1774 = vmatpush1.bf16.msra.mxu0 0
    %1775 = vmatprep.subr.bf16.mxu0 0
    %1776 = vmatpush1.bf16.msra.mxu0 0
    %1777 = vmatprep.subr.bf16.mxu0 0
    %1778 = vmatpush1.bf16.msra.mxu0 0
    %1779 = vmatprep.mubr.bf16.mxu0 0
    %1780 = vmatmul.mubr.bf16.gmra.mrb[0].mxu0 %v1611
    %v1781 = vpop.f32.mrb[0].mxu0
    %v1782 = vadd.f32 %v1583, %v1781
    %v1783 = vpop.f32.mrb[0].mxu0
    %v1784 = vadd.f32 %v1587, %v1783
    %v1785 = vpop.f32.mrb[0].mxu0
    %v1786 = vadd.f32 %v1583, %v1785
    %v1787 = vpop.f32.mrb[0].mxu0
    %v1788 = vadd.f32 %v1587, %v1787
    %1789 = vmatprep.mubr.bf16.mxu0 0
    %1790 = vmatmul.mubr.bf16.gmra.mrb[0].mxu0 %v1612
    %v1791 = vpop.f32.mrb[0].mxu0
    %v1792 = vadd.f32 %v1583, %v1791
    %v1793 = vpop.f32.mrb[0].mxu0
    %v1794 = vadd.f32 %v1587, %v1793
    %v1795 = vpop.f32.mrb[0].mxu0
    %v1796 = vadd.f32 %v1583, %v1795
    %v1797 = vpop.f32.mrb[0].mxu0
    %v1798 = vadd.f32 %v1587, %v1797
    %1799 = vmatprep.mubr.bf16.mxu0 0
    %1800 = vmatmul.mubr.bf16.gmra.mrb[0].mxu0 %v1613
    %v1801 = vpop.f32.mrb[0].mxu0
    %v1802 = vadd.f32 %v1583, %v1801
    %v1803 = vpop.f32.mrb[0].mxu0
    %v1804 = vadd.f32 %v1587, %v1803
    %v1805 = vpop.f32.mrb[0].mxu0
    %v1806 = vadd.f32 %v1583, %v1805
    %v1807 = vpop.f32.mrb[0].mxu0
    %v1808 = vadd.f32 %v1587, %v1807
    %1809 = vmatprep.mubr.bf16.mxu0 0
    %1810 = vmatmul.mubr.bf16.gmra.mrb[0].mxu0 %v1614
    %v1811 = vpop.f32.mrb[0].mxu0
    %v1812 = vadd.f32 %v1583, %v1811
    %v1813 = vpop.f32.mrb[0].mxu0
    %v1814 = vadd.f32 %v1587, %v1813
    %v1815 = vpop.f32.mrb[0].mxu0
    %v1816 = vadd.f32 %v1583, %v1815
    %v1817 = vpop.f32.mrb[0].mxu0
    %v1818 = vadd.f32 %v1587, %v1817
    %1819 = vdwg.mxu0
    %1820 = vmatprep.subr.bf16.mxu0 0
    %1821 = vmatpush1.bf16.msra.mxu0 %v1701
    %1822 = vmatprep.subr.bf16.mxu0 0
    %1823 = vmatpush1.bf16.msra.mxu0 %v1704
    %1824 = vmatprep.subr.bf16.mxu0 0
    %1825 = vmatpush1.bf16.msra.mxu0 %v1707
    %1826 = vmatprep.subr.bf16.mxu0 0
    %1827 = vmatpush1.bf16.msra.mxu0 %v1710
    %1828 = vmatprep.subr.bf16.mxu0 0
    %1829 = vmatpush1.bf16.msra.mxu0 %v1713
    %1830 = vmatprep.subr.bf16.mxu0 0
    %1831 = vmatpush1.bf16.msra.mxu0 %v1716
    %1832 = vmatprep.subr.bf16.mxu0 0
    %1833 = vmatpush1.bf16.msra.mxu0 %v1719
    %1834 = vmatprep.subr.bf16.mxu0 0
    %1835 = vmatpush1.bf16.msra.mxu0 %v1722
    %1836 = vmatprep.subr.bf16.mxu0 0
    %1837 = vmatpush1.bf16.msra.mxu0 0
    %1838 = vmatprep.subr.bf16.mxu0 0
    %1839 = vmatpush1.bf16.msra.mxu0 0
    %1840 = vmatprep.subr.bf16.mxu0 0
    %1841 = vmatpush1.bf16.msra.mxu0 0
    %1842 = vmatprep.subr.bf16.mxu0 0
    %1843 = vmatpush1.bf16.msra.mxu0 0
    %1844 = vmatprep.subr.bf16.mxu0 0
    %1845 = vmatpush1.bf16.msra.mxu0 0
    %1846 = vmatprep.subr.bf16.mxu0 0
    %1847 = vmatpush1.bf16.msra.mxu0 0
    %1848 = vmatprep.subr.bf16.mxu0 0
    %1849 = vmatpush1.bf16.msra.mxu0 0
    %1850 = vmatprep.subr.bf16.mxu0 0
    %1851 = vmatpush1.bf16.msra.mxu0 0
    %1852 = vmatprep.mubr.bf16.mxu0 0
    %1853 = vmatmul.mubr.bf16.gmra.mrb[0].mxu0 %v1611
    %v1854 = vpop.f32.mrb[0].mxu0
    %v1855 = vadd.f32 %v1591, %v1854
    %v1856 = vpop.f32.mrb[0].mxu0
    %v1857 = vpop.f32.mrb[0].mxu0
    %v1858 = vadd.f32 %v1591, %v1857
    %v1859 = vpop.f32.mrb[0].mxu0
    %1860 = vmatprep.mubr.bf16.mxu0 0
    %1861 = vmatmul.mubr.bf16.gmra.mrb[0].mxu0 %v1612
    %v1862 = vpop.f32.mrb[0].mxu0
    %v1863 = vadd.f32 %v1591, %v1862
    %v1864 = vpop.f32.mrb[0].mxu0
    %v1865 = vpop.f32.mrb[0].mxu0
    %v1866 = vadd.f32 %v1591, %v1865
    %v1867 = vpop.f32.mrb[0].mxu0
    %1868 = vmatprep.mubr.bf16.mxu0 0
    %1869 = vmatmul.mubr.bf16.gmra.mrb[0].mxu0 %v1613
    %v1870 = vpop.f32.mrb[0].mxu0
    %v1871 = vadd.f32 %v1591, %v1870
    %v1872 = vpop.f32.mrb[0].mxu0
    %v1873 = vpop.f32.mrb[0].mxu0
    %v1874 = vadd.f32 %v1591, %v1873
    %v1875 = vpop.f32.mrb[0].mxu0
    %1876 = vmatprep.mubr.bf16.mxu0 0
    %1877 = vmatmul.mubr.bf16.gmra.mrb[0].mxu0 %v1614
    %v1878 = vpop.f32.mrb[0].mxu0
    %v1879 = vadd.f32 %v1591, %v1878
    %v1880 = vpop.f32.mrb[0].mxu0
    %v1881 = vpop.f32.mrb[0].mxu0
    %v1882 = vadd.f32 %v1591, %v1881
    %v1883 = vpop.f32.mrb[0].mxu0
    %1884 = vdwg.mxu0
    %1885 = vst [vmem:[#allocation4] sm:$0xff] %v1782
    %1886 = vst [vmem:[#allocation4 + $0x8] sm:$0xff] %v1784
    %1887 = vst [vmem:[#allocation4 + $0x10] sm:$0xff] %v1855
    %1888 = vst [vmem:[#allocation4 + $0x18] sm:$0xff] %v1786
    %1889 = vst [vmem:[#allocation4 + $0x20] sm:$0xff] %v1788
    %1890 = vst [vmem:[#allocation4 + $0x28] sm:$0xff] %v1858
    %1891 = vst [vmem:[#allocation4 + $0x30] sm:$0xff] %v1792
    %1892 = vst [vmem:[#allocation4 + $0x38] sm:$0xff] %v1794
    %1893 = vst [vmem:[#allocation4 + $0x40] sm:$0xff] %v1863
    %1894 = vst [vmem:[#allocation4 + $0x48] sm:$0xff] %v1796
    %1895 = vst [vmem:[#allocation4 + $0x50] sm:$0xff] %v1798
    %1896 = vst [vmem:[#allocation4 + $0x58] sm:$0xff] %v1866
    %1897 = vst [vmem:[#allocation4 + $0x60] sm:$0xff] %v1802
    %1898 = vst [vmem:[#allocation4 + $0x68] sm:$0xff] %v1804
    %1899 = vst [vmem:[#allocation4 + $0x70] sm:$0xff] %v1871
    %1900 = vst [vmem:[#allocation4 + $0x78] sm:$0xff] %v1806
    %1901 = vst [vmem:[#allocation4 + $0x80] sm:$0xff] %v1808
    %1902 = vst [vmem:[#allocation4 + $0x88] sm:$0xff] %v1874
    %1903 = vst [vmem:[#allocation4 + $0x90] sm:$0xff] %v1812
    %1904 = vst [vmem:[#allocation4 + $0x98] sm:$0xff] %v1814
    %1905 = vst [vmem:[#allocation4 + $0xa0] sm:$0xff] %v1879
    %1906 = vst [vmem:[#allocation4 + $0xa8] sm:$0xff] %v1816
    %1907 = vst [vmem:[#allocation4 + $0xb0] sm:$0xff] %v1818
    %1908 = vst [vmem:[#allocation4 + $0xb8] sm:$0xff] %v1882
    %v1909 = vld [vmem:[#allocation14] sm:$0xff]
    %v1910 = vld [vmem:[#allocation14 + $0x8] sm:$0xf]
    %v1911 = vld [vmem:[#allocation14 + $0xc] sm:$0xff]
    %v1912 = vld [vmem:[#allocation14 + $0x14] sm:$0xf]
    %v1913 = vld [vmem:[#allocation14 + $0x18] sm:$0xff]
    %v1914 = vld [vmem:[#allocation14 + $0x20] sm:$0xf]
    %v1915 = vld [vmem:[#allocation14 + $0x24] sm:$0xff]
    %v1916 = vld [vmem:[#allocation14 + $0x2c] sm:$0xf]
    %v1917 = vld [vmem:[#allocation14 + $0x30] sm:$0xff]
    %v1918 = vld [vmem:[#allocation14 + $0x38] sm:$0xf]
    %v1919 = vld [vmem:[#allocation14 + $0x3c] sm:$0xff]
    %v1920 = vld [vmem:[#allocation14 + $0x44] sm:$0xf]
    %v1921 = vld [vmem:[#allocation14 + $0x48] sm:$0xff]
    %v1922 = vld [vmem:[#allocation14 + $0x50] sm:$0xf]
    %v1923 = vld [vmem:[#allocation14 + $0x54] sm:$0xff]
    %v1924 = vld [vmem:[#allocation14 + $0x5c] sm:$0xf]
    %v1925 = vld [vmem:[#allocation14 + $0x60] sm:$0xff]
    %v1926 = vld [vmem:[#allocation14 + $0x68] sm:$0xf]
    %v1927 = vld [vmem:[#allocation14 + $0x6c] sm:$0xff]
    %v1928 = vld [vmem:[#allocation14 + $0x74] sm:$0xf]
    %v1929 = vld [vmem:[#allocation14 + $0x78] sm:$0xff]
    %v1930 = vld [vmem:[#allocation14 + $0x80] sm:$0xf]
    %v1931 = vld [vmem:[#allocation14 + $0x84] sm:$0xff]
    %v1932 = vld [vmem:[#allocation14 + $0x8c] sm:$0xf]
    %v1933 = vld [vmem:[#allocation14 + $0x90] sm:$0xff]
    %v1934 = vld [vmem:[#allocation14 + $0x98] sm:$0xf]
    %v1935 = vld [vmem:[#allocation14 + $0x9c] sm:$0xff]
    %v1936 = vld [vmem:[#allocation14 + $0xa4] sm:$0xf]
    %v1937 = vld [vmem:[#allocation14 + $0xa8] sm:$0xff]
    %v1938 = vld [vmem:[#allocation14 + $0xb0] sm:$0xf]
    %v1939 = vld [vmem:[#allocation14 + $0xb4] sm:$0xff]
    %v1940 = vld [vmem:[#allocation14 + $0xbc] sm:$0xf]
    %v1941 = vld [vmem:[%s8] sm:$0x1]
    %v1942 = vld [vmem:[#allocation4] sm:$0xff]
    %v1943 = vld [vmem:[#allocation4 + $0x8] sm:$0xff]
    %v1944 = vld [vmem:[#allocation4 + $0x10] sm:$0xff]
    %v1977 = vunpack.c.l.b16 %v1909
    %v1978 = vunpack.c.h.b16 %v1909
    %v1979 = vunpack.c.l.b16 %v1910
    %v1980 = vunpack.c.l.b16 %v1911
    %v1981 = vunpack.c.h.b16 %v1911
    %v1982 = vunpack.c.l.b16 %v1912
    %v1983 = vunpack.c.l.b16 %v1913
    %v1984 = vunpack.c.h.b16 %v1913
    %v1985 = vunpack.c.l.b16 %v1914
    %v1986 = vunpack.c.l.b16 %v1915
    %v1987 = vunpack.c.h.b16 %v1915
    %v1988 = vunpack.c.l.b16 %v1916
    %v1989 = vunpack.c.l.b16 %v1917
    %v1990 = vunpack.c.h.b16 %v1917
    %v1991 = vunpack.c.l.b16 %v1918
    %v1992 = vunpack.c.l.b16 %v1919
    %v1993 = vunpack.c.h.b16 %v1919
    %v1994 = vunpack.c.l.b16 %v1920
    %v1995 = vunpack.c.l.b16 %v1921
    %v1996 = vunpack.c.h.b16 %v1921
    %v1997 = vunpack.c.l.b16 %v1922
    %v1998 = vunpack.c.l.b16 %v1923
    %v1999 = vunpack.c.h.b16 %v1923
    %v2000 = vunpack.c.l.b16 %v1924
    %v2001 = vunpack.c.l.b16 %v1925
    %v2002 = vunpack.c.h.b16 %v1925
    %v2003 = vunpack.c.l.b16 %v1926
    %v2004 = vunpack.c.l.b16 %v1927
    %v2005 = vunpack.c.h.b16 %v1927
    %v2006 = vunpack.c.l.b16 %v1928
    %v2007 = vunpack.c.l.b16 %v1929
    %v2008 = vunpack.c.h.b16 %v1929
    %v2009 = vunpack.c.l.b16 %v1930
    %v2010 = vunpack.c.l.b16 %v1931
    %v2011 = vunpack.c.h.b16 %v1931
    %v2012 = vunpack.c.l.b16 %v1932
    %v2013 = vunpack.c.l.b16 %v1933
    %v2014 = vunpack.c.h.b16 %v1933
    %v2015 = vunpack.c.l.b16 %v1934
    %v2016 = vunpack.c.l.b16 %v1935
    %v2017 = vunpack.c.h.b16 %v1935
    %v2018 = vunpack.c.l.b16 %v1936
    %v2019 = vunpack.c.l.b16 %v1937
    %v2020 = vunpack.c.h.b16 %v1937
    %v2021 = vunpack.c.l.b16 %v1938
    %v2022 = vunpack.c.l.b16 %v1939
    %v2023 = vunpack.c.h.b16 %v1939
    %v2024 = vunpack.c.l.b16 %v1940
    %v2025 = vpack.c.b16 %v1980, %v1977
    %v2026 = vpack.c.b16 %v1981, %v1978
    %v2027 = vpack.c.b16 %v1982, %v1979
    %v2028 = vpack.c.b16 %v1986, %v1983
    %v2029 = vpack.c.b16 %v1987, %v1984
    %v2030 = vpack.c.b16 %v1988, %v1985
    %v2031 = vpack.c.b16 %v1992, %v1989
    %v2032 = vpack.c.b16 %v1993, %v1990
    %v2033 = vpack.c.b16 %v1994, %v1991
    %v2034 = vpack.c.b16 %v1998, %v1995
    %v2035 = vpack.c.b16 %v1999, %v1996
    %v2036 = vpack.c.b16 %v2000, %v1997
    %v2037 = vpack.c.b16 %v2004, %v2001
    %v2038 = vpack.c.b16 %v2005, %v2002
    %v2039 = vpack.c.b16 %v2006, %v2003
    %v2040 = vpack.c.b16 %v2010, %v2007
    %v2041 = vpack.c.b16 %v2011, %v2008
    %v2042 = vpack.c.b16 %v2012, %v2009
    %v2043 = vpack.c.b16 %v2016, %v2013
    %v2044 = vpack.c.b16 %v2017, %v2014
    %v2045 = vpack.c.b16 %v2018, %v2015
    %v2046 = vpack.c.b16 %v2022, %v2019
    %v2047 = vpack.c.b16 %v2023, %v2020
    %v2048 = vpack.c.b16 %v2024, %v2021
    %2073 = vmatprep.subr.bf16.mxu0 %v2026
    %2074 = vmatpush1.bf16.msra.mxu0 %v2025
    %2075 = vmatprep.subr.bf16.mxu0 %v2029
    %2076 = vmatpush1.bf16.msra.mxu0 %v2028
    %2077 = vmatprep.subr.bf16.mxu0 %v2032
    %2078 = vmatpush1.bf16.msra.mxu0 %v2031
    %2079 = vmatprep.subr.bf16.mxu0 %v2035
    %2080 = vmatpush1.bf16.msra.mxu0 %v2034
    %2081 = vmatprep.subr.bf16.mxu0 %v2038
    %2082 = vmatpush1.bf16.msra.mxu0 %v2037
    %2083 = vmatprep.subr.bf16.mxu0 %v2041
    %2084 = vmatpush1.bf16.msra.mxu0 %v2040
    %2085 = vmatprep.subr.bf16.mxu0 %v2044
    %2086 = vmatpush1.bf16.msra.mxu0 %v2043
    %2087 = vmatprep.subr.bf16.mxu0 %v2047
    %2088 = vmatpush1.bf16.msra.mxu0 %v2046
    %2089 = vmatprep.subr.bf16.mxu0 0
    %2090 = vmatpush1.bf16.msra.mxu0 0
    %2091 = vmatprep.subr.bf16.mxu0 0
    %2092 = vmatpush1.bf16.msra.mxu0 0
    %2093 = vmatprep.subr.bf16.mxu0 0
    %2094 = vmatpush1.bf16.msra.mxu0 0
    %2095 = vmatprep.subr.bf16.mxu0 0
    %2096 = vmatpush1.bf16.msra.mxu0 0
    %2097 = vmatprep.subr.bf16.mxu0 0
    %2098 = vmatpush1.bf16.msra.mxu0 0
    %2099 = vmatprep.subr.bf16.mxu0 0
    %2100 = vmatpush1.bf16.msra.mxu0 0
    %2101 = vmatprep.subr.bf16.mxu0 0
    %2102 = vmatpush1.bf16.msra.mxu0 0
    %2103 = vmatprep.subr.bf16.mxu0 0
    %2104 = vmatpush1.bf16.msra.mxu0 0
    %2105 = vmatprep.mubr.bf16.mxu0 0
    %2106 = vmatmul.mubr.bf16.gmra.mrb[0].mxu0 0
    %v2107 = vpop.f32.mrb[0].mxu0
    %v2108 = vadd.f32 0.0, %v2107
    %v2109 = vpop.f32.mrb[0].mxu0
    %v2110 = vadd.f32 0.0, %v2109
    %v2111 = vpop.f32.mrb[0].mxu0
    %v2112 = vpop.f32.mrb[0].mxu0
    %2113 = vdwg.mxu0
    %2114 = vmatprep.subr.bf16.mxu0 0
    %2115 = vmatpush1.bf16.msra.mxu0 %v2027
    %2116 = vmatprep.subr.bf16.mxu0 0
    %2117 = vmatpush1.bf16.msra.mxu0 %v2030
    %2118 = vmatprep.subr.bf16.mxu0 0
    %2119 = vmatpush1.bf16.msra.mxu0 %v2033
    %2120 = vmatprep.subr.bf16.mxu0 0
    %2121 = vmatpush1.bf16.msra.mxu0 %v2036
    %2122 = vmatprep.subr.bf16.mxu0 0
    %2123 = vmatpush1.bf16.msra.mxu0 %v2039
    %2124 = vmatprep.subr.bf16.mxu0 0
    %2125 = vmatpush1.bf16.msra.mxu0 %v2042
    %2126 = vmatprep.subr.bf16.mxu0 0
    %2127 = vmatpush1.bf16.msra.mxu0 %v2045
    %2128 = vmatprep.subr.bf16.mxu0 0
    %2129 = vmatpush1.bf16.msra.mxu0 %v2048
    %2130 = vmatprep.subr.bf16.mxu0 0
    %2131 = vmatpush1.bf16.msra.mxu0 0
    %2132 = vmatprep.subr.bf16.mxu0 0
    %2133 = vmatpush1.bf16.msra.mxu0 0
    %2134 = vmatprep.subr.bf16.mxu0 0
    %2135 = vmatpush1.bf16.msra.mxu0 0
    %2136 = vmatprep.subr.bf16.mxu0 0
    %2137 = vmatpush1.bf16.msra.mxu0 0
    %2138 = vmatprep.subr.bf16.mxu0 0
    %2139 = vmatpush1.bf16.msra.mxu0 0
    %2140 = vmatprep.subr.bf16.mxu0 0
    %2141 = vmatpush1.bf16.msra.mxu0 0
    %2142 = vmatprep.subr.bf16.mxu0 0
    %2143 = vmatpush1.bf16.msra.mxu0 0
    %2144 = vmatprep.subr.bf16.mxu0 0
    %2145 = vmatpush1.bf16.msra.mxu0 0
    %2146 = vmatprep.mubr.bf16.mxu0 0
    %2147 = vmatmul.mubr.bf16.gmra.mrb[0].mxu0 0
    %v2148 = vpop.f32.mrb[0].mxu0
    %v2149 = vadd.f32 0.0, %v2148
    %v2150 = vpop.f32.mrb[0].mxu0
    %v2151 = vpop.f32.mrb[0].mxu0
    %v2152 = vpop.f32.mrb[0].mxu0
    %2153 = vdwg.mxu0
    %v2154 = vadd.f32 %v1942, %v2108
    %v2155 = vxor.u32 %v2154, 2147483648
    %v2156 = vmul.f32 %v2155, 1.442695
    %v2157 = vpow.pop %v2156
    %v2158 = vadd.f32 %v2157, 1.0
    %v2159 = vrcp.pop %v2158
    %v2160 = vmul.f32 1.0, %v2159
    %v2161 = vadd.f32 %v1943, %v2110
    %v2162 = vxor.u32 %v2161, 2147483648
    %v2163 = vmul.f32 %v2162, 1.442695
    %v2164 = vpow.pop %v2163
    %v2165 = vadd.f32 %v2164, 1.0
    %v2166 = vrcp.pop %v2165
    %v2167 = vmul.f32 1.0, %v2166
    %v2169 = vlaneseq
    %v2170 = vshrl.u32 %v2169, 7
    %v2171 = vsub.s32 0, %v2170
    %v2172 = vrot.slane %v1941, %v2171
    %v2174 = vadd.f32 %v2149, %v2172
    %v2175 = vmul.f32 %v2160, %v2174
    %v2176 = vadd.f32 %v1944, %v2175
    %v2177 = vtanh.pop %v2176
    %v2178 = vsub.f32 1.0, %v2167
    %v2179 = vmul.f32 %v2178, %v2177
    %v2180 = vmul.f32 %v2167, 0.0
    %v2181 = vadd.f32 %v2179, %v2180
    %v2182 = vpack.c.bf16 %v2181, %v2181
    %2183 = vst [vmem:[#allocation5] sm:$0xf] %v2182
    %s2184 = scalar_lea.vmem [#allocation4], 24
    %v2185 = vld [vmem:[%s2184] sm:$0xff]
    %v2186 = vld [vmem:[%s2184 + $0x8] sm:$0xff]
    %v2187 = vld [vmem:[%s2184 + $0x10] sm:$0xff]
    %2188 = vmatprep.subr.bf16.mxu0 %v2026
    %2189 = vmatpush1.bf16.msra.mxu0 %v2025
    %2190 = vmatprep.subr.bf16.mxu0 %v2029
    %2191 = vmatpush1.bf16.msra.mxu0 %v2028
    %2192 = vmatprep.subr.bf16.mxu0 %v2032
    %2193 = vmatpush1.bf16.msra.mxu0 %v2031
    %2194 = vmatprep.subr.bf16.mxu0 %v2035
    %2195 = vmatpush1.bf16.msra.mxu0 %v2034
    %2196 = vmatprep.subr.bf16.mxu0 %v2038
    %2197 = vmatpush1.bf16.msra.mxu0 %v2037
    %2198 = vmatprep.subr.bf16.mxu0 %v2041
    %2199 = vmatpush1.bf16.msra.mxu0 %v2040
    %2200 = vmatprep.subr.bf16.mxu0 %v2044
    %2201 = vmatpush1.bf16.msra.mxu0 %v2043
    %2202 = vmatprep.subr.bf16.mxu0 %v2047
    %2203 = vmatpush1.bf16.msra.mxu0 %v2046
    %2204 = vmatprep.subr.bf16.mxu0 0
    %2205 = vmatpush1.bf16.msra.mxu0 0
    %2206 = vmatprep.subr.bf16.mxu0 0
    %2207 = vmatpush1.bf16.msra.mxu0 0
    %2208 = vmatprep.subr.bf16.mxu0 0
    %2209 = vmatpush1.bf16.msra.mxu0 0
    %2210 = vmatprep.subr.bf16.mxu0 0
    %2211 = vmatpush1.bf16.msra.mxu0 0
    %2212 = vmatprep.subr.bf16.mxu0 0
    %2213 = vmatpush1.bf16.msra.mxu0 0
    %2214 = vmatprep.subr.bf16.mxu0 0
    %2215 = vmatpush1.bf16.msra.mxu0 0
    %2216 = vmatprep.subr.bf16.mxu0 0
    %2217 = vmatpush1.bf16.msra.mxu0 0
    %2218 = vmatprep.subr.bf16.mxu0 0
    %2219 = vmatpush1.bf16.msra.mxu0 0
    %2220 = vmatprep.mubr.bf16.mxu0 0
    %2221 = vmatmul.mubr.bf16.gmra.mrb[0].mxu0 %v2182
    %v2222 = vpop.f32.mrb[0].mxu0
    %v2223 = vadd.f32 0.0, %v2222
    %v2224 = vpop.f32.mrb[0].mxu0
    %v2225 = vadd.f32 0.0, %v2224
    %v2226 = vpop.f32.mrb[0].mxu0
    %v2227 = vpop.f32.mrb[0].mxu0
    %2228 = vdwg.mxu0
    %2229 = vmatprep.subr.bf16.mxu0 0
    %2230 = vmatpush1.bf16.msra.mxu0 %v2027
    %2231 = vmatprep.subr.bf16.mxu0 0
    %2232 = vmatpush1.bf16.msra.mxu0 %v2030
    %2233 = vmatprep.subr.bf16.mxu0 0
    %2234 = vmatpush1.bf16.msra.mxu0 %v2033
    %2235 = vmatprep.subr.bf16.mxu0 0
    %2236 = vmatpush1.bf16.msra.mxu0 %v2036
    %2237 = vmatprep.subr.bf16.mxu0 0
    %2238 = vmatpush1.bf16.msra.mxu0 %v2039
    %2239 = vmatprep.subr.bf16.mxu0 0
    %2240 = vmatpush1.bf16.msra.mxu0 %v2042
    %2241 = vmatprep.subr.bf16.mxu0 0
    %2242 = vmatpush1.bf16.msra.mxu0 %v2045
    %2243 = vmatprep.subr.bf16.mxu0 0
    %2244 = vmatpush1.bf16.msra.mxu0 %v2048
    %2245 = vmatprep.subr.bf16.mxu0 0
    %2246 = vmatpush1.bf16.msra.mxu0 0
    %2247 = vmatprep.subr.bf16.mxu0 0
    %2248 = vmatpush1.bf16.msra.mxu0 0
    %2249 = vmatprep.subr.bf16.mxu0 0
    %2250 = vmatpush1.bf16.msra.mxu0 0
    %2251 = vmatprep.subr.bf16.mxu0 0
    %2252 = vmatpush1.bf16.msra.mxu0 0
    %2253 = vmatprep.subr.bf16.mxu0 0
    %2254 = vmatpush1.bf16.msra.mxu0 0
    %2255 = vmatprep.subr.bf16.mxu0 0
    %2256 = vmatpush1.bf16.msra.mxu0 0
    %2257 = vmatprep.subr.bf16.mxu0 0
    %2258 = vmatpush1.bf16.msra.mxu0 0
    %2259 = vmatprep.subr.bf16.mxu0 0
    %2260 = vmatpush1.bf16.msra.mxu0 0
    %2261 = vmatprep.mubr.bf16.mxu0 0
    %2262 = vmatmul.mubr.bf16.gmra.mrb[0].mxu0 %v2182
    %v2263 = vpop.f32.mrb[0].mxu0
    %v2264 = vadd.f32 0.0, %v2263
    %v2265 = vpop.f32.mrb[0].mxu0
    %v2266 = vpop.f32.mrb[0].mxu0
    %v2267 = vpop.f32.mrb[0].mxu0
    %2268 = vdwg.mxu0
    %v2269 = vadd.f32 %v2185, %v2223
    %v2270 = vxor.u32 %v2269, 2147483648
    %v2271 = vmul.f32 %v2270, 1.442695
    %v2272 = vpow.pop %v2271
    %v2273 = vadd.f32 %v2272, 1.0
    %v2274 = vrcp.pop %v2273
    %v2275 = vmul.f32 1.0, %v2274
    %v2276 = vadd.f32 %v2186, %v2225
    %v2277 = vxor.u32 %v2276, 2147483648
    %v2278 = vmul.f32 %v2277, 1.442695
    %v2279 = vpow.pop %v2278
    %v2280 = vadd.f32 %v2279, 1.0
    %v2281 = vrcp.pop %v2280
    %v2282 = vmul.f32 1.0, %v2281
    %v2283 = vadd.f32 %v2264, %v2172
    %v2284 = vmul.f32 %v2275, %v2283
    %v2285 = vadd.f32 %v2187, %v2284
    %v2286 = vtanh.pop %v2285
    %v2287 = vsub.f32 1.0, %v2282
    %v2288 = vmul.f32 %v2287, %v2286
    %v2289 = vmul.f32 %v2282, %v2181
    %v2290 = vadd.f32 %v2288, %v2289
    %v2291 = vpack.c.bf16 %v2290, %v2290
    %s2292 = scalar_lea.vmem [#allocation5], 4
    %2293 = vst [vmem:[%s2292] sm:$0xf] %v2291
    %s2294 = scalar_lea.vmem [#allocation4], 48
    %v2295 = vld [vmem:[%s2294] sm:$0xff]
    %v2296 = vld [vmem:[%s2294 + $0x8] sm:$0xff]
    %v2297 = vld [vmem:[%s2294 + $0x10] sm:$0xff]
    %2298 = vmatprep.subr.bf16.mxu0 %v2026
    %2299 = vmatpush1.bf16.msra.mxu0 %v2025
    %2300 = vmatprep.subr.bf16.mxu0 %v2029
    %2301 = vmatpush1.bf16.msra.mxu0 %v2028
    %2302 = vmatprep.subr.bf16.mxu0 %v2032
    %2303 = vmatpush1.bf16.msra.mxu0 %v2031
    %2304 = vmatprep.subr.bf16.mxu0 %v2035
    %2305 = vmatpush1.bf16.msra.mxu0 %v2034
    %2306 = vmatprep.subr.bf16.mxu0 %v2038
    %2307 = vmatpush1.bf16.msra.mxu0 %v2037
    %2308 = vmatprep.subr.bf16.mxu0 %v2041
    %2309 = vmatpush1.bf16.msra.mxu0 %v2040
    %2310 = vmatprep.subr.bf16.mxu0 %v2044
    %2311 = vmatpush1.bf16.msra.mxu0 %v2043
    %2312 = vmatprep.subr.bf16.mxu0 %v2047
    %2313 = vmatpush1.bf16.msra.mxu0 %v2046
    %2314 = vmatprep.subr.bf16.mxu0 0
    %2315 = vmatpush1.bf16.msra.mxu0 0
    %2316 = vmatprep.subr.bf16.mxu0 0
    %2317 = vmatpush1.bf16.msra.mxu0 0
    %2318 = vmatprep.subr.bf16.mxu0 0
    %2319 = vmatpush1.bf16.msra.mxu0 0
    %2320 = vmatprep.subr.bf16.mxu0 0
    %2321 = vmatpush1.bf16.msra.mxu0 0
    %2322 = vmatprep.subr.bf16.mxu0 0
    %2323 = vmatpush1.bf16.msra.mxu0 0
    %2324 = vmatprep.subr.bf16.mxu0 0
    %2325 = vmatpush1.bf16.msra.mxu0 0
    %2326 = vmatprep.subr.bf16.mxu0 0
    %2327 = vmatpush1.bf16.msra.mxu0 0
    %2328 = vmatprep.subr.bf16.mxu0 0
    %2329 = vmatpush1.bf16.msra.mxu0 0
    %2330 = vmatprep.mubr.bf16.mxu0 0
    %2331 = vmatmul.mubr.bf16.gmra.mrb[0].mxu0 %v2291
    %v2332 = vpop.f32.mrb[0].mxu0
    %v2333 = vadd.f32 0.0, %v2332
    %v2334 = vpop.f32.mrb[0].mxu0
    %v2335 = vadd.f32 0.0, %v2334
    %v2336 = vpop.f32.mrb[0].mxu0
    %v2337 = vpop.f32.mrb[0].mxu0
    %2338 = vdwg.mxu0
    %2339 = vmatprep.subr.bf16.mxu0 0
    %2340 = vmatpush1.bf16.msra.mxu0 %v2027
    %2341 = vmatprep.subr.bf16.mxu0 0
    %2342 = vmatpush1.bf16.msra.mxu0 %v2030
    %2343 = vmatprep.subr.bf16.mxu0 0
    %2344 = vmatpush1.bf16.msra.mxu0 %v2033
    %2345 = vmatprep.subr.bf16.mxu0 0
    %2346 = vmatpush1.bf16.msra.mxu0 %v2036
    %2347 = vmatprep.subr.bf16.mxu0 0
    %2348 = vmatpush1.bf16.msra.mxu0 %v2039
    %2349 = vmatprep.subr.bf16.mxu0 0
    %2350 = vmatpush1.bf16.msra.mxu0 %v2042
    %2351 = vmatprep.subr.bf16.mxu0 0
    %2352 = vmatpush1.bf16.msra.mxu0 %v2045
    %2353 = vmatprep.subr.bf16.mxu0 0
    %2354 = vmatpush1.bf16.msra.mxu0 %v2048
    %2355 = vmatprep.subr.bf16.mxu0 0
    %2356 = vmatpush1.bf16.msra.mxu0 0
    %2357 = vmatprep.subr.bf16.mxu0 0
    %2358 = vmatpush1.bf16.msra.mxu0 0
    %2359 = vmatprep.subr.bf16.mxu0 0
    %2360 = vmatpush1.bf16.msra.mxu0 0
    %2361 = vmatprep.subr.bf16.mxu0 0
    %2362 = vmatpush1.bf16.msra.mxu0 0
    %2363 = vmatprep.subr.bf16.mxu0 0
    %2364 = vmatpush1.bf16.msra.mxu0 0
    %2365 = vmatprep.subr.bf16.mxu0 0
    %2366 = vmatpush1.bf16.msra.mxu0 0
    %2367 = vmatprep.subr.bf16.mxu0 0
    %2368 = vmatpush1.bf16.msra.mxu0 0
    %2369 = vmatprep.subr.bf16.mxu0 0
    %2370 = vmatpush1.bf16.msra.mxu0 0
    %2371 = vmatprep.mubr.bf16.mxu0 0
    %2372 = vmatmul.mubr.bf16.gmra.mrb[0].mxu0 %v2291
    %v2373 = vpop.f32.mrb[0].mxu0
    %v2374 = vadd.f32 0.0, %v2373
    %v2375 = vpop.f32.mrb[0].mxu0
    %v2376 = vpop.f32.mrb[0].mxu0
    %v2377 = vpop.f32.mrb[0].mxu0
    %2378 = vdwg.mxu0
    %v2379 = vadd.f32 %v2295, %v2333
    %v2380 = vxor.u32 %v2379, 2147483648
    %v2381 = vmul.f32 %v2380, 1.442695
    %v2382 = vpow.pop %v2381
    %v2383 = vadd.f32 %v2382, 1.0
    %v2384 = vrcp.pop %v2383
    %v2385 = vmul.f32 1.0, %v2384
    %v2386 = vadd.f32 %v2296, %v2335
    %v2387 = vxor.u32 %v2386, 2147483648
    %v2388 = vmul.f32 %v2387, 1.442695
    %v2389 = vpow.pop %v2388
    %v2390 = vadd.f32 %v2389, 1.0
    %v2391 = vrcp.pop %v2390
    %v2392 = vmul.f32 1.0, %v2391
    %v2393 = vadd.f32 %v2374, %v2172
    %v2394 = vmul.f32 %v2385, %v2393
    %v2395 = vadd.f32 %v2297, %v2394
    %v2396 = vtanh.pop %v2395
    %v2397 = vsub.f32 1.0, %v2392
    %v2398 = vmul.f32 %v2397, %v2396
    %v2399 = vmul.f32 %v2392, %v2290
    %v2400 = vadd.f32 %v2398, %v2399
    %v2401 = vpack.c.bf16 %v2400, %v2400
    %s2402 = scalar_lea.vmem [#allocation5], 8
    %2403 = vst [vmem:[%s2402] sm:$0xf] %v2401
    %s2404 = scalar_lea.vmem [#allocation4], 72
    %v2405 = vld [vmem:[%s2404] sm:$0xff]
    %v2406 = vld [vmem:[%s2404 + $0x8] sm:$0xff]
    %v2407 = vld [vmem:[%s2404 + $0x10] sm:$0xff]
    %2408 = vmatprep.subr.bf16.mxu0 %v2026
    %2409 = vmatpush1.bf16.msra.mxu0 %v2025
    %2410 = vmatprep.subr.bf16.mxu0 %v2029
    %2411 = vmatpush1.bf16.msra.mxu0 %v2028
    %2412 = vmatprep.subr.bf16.mxu0 %v2032
    %2413 = vmatpush1.bf16.msra.mxu0 %v2031
    %2414 = vmatprep.subr.bf16.mxu0 %v2035
    %2415 = vmatpush1.bf16.msra.mxu0 %v2034
    %2416 = vmatprep.subr.bf16.mxu0 %v2038
    %2417 = vmatpush1.bf16.msra.mxu0 %v2037
    %2418 = vmatprep.subr.bf16.mxu0 %v2041
    %2419 = vmatpush1.bf16.msra.mxu0 %v2040
    %2420 = vmatprep.subr.bf16.mxu0 %v2044
    %2421 = vmatpush1.bf16.msra.mxu0 %v2043
    %2422 = vmatprep.subr.bf16.mxu0 %v2047
    %2423 = vmatpush1.bf16.msra.mxu0 %v2046
    %2424 = vmatprep.subr.bf16.mxu0 0
    %2425 = vmatpush1.bf16.msra.mxu0 0
    %2426 = vmatprep.subr.bf16.mxu0 0
    %2427 = vmatpush1.bf16.msra.mxu0 0
    %2428 = vmatprep.subr.bf16.mxu0 0
    %2429 = vmatpush1.bf16.msra.mxu0 0
    %2430 = vmatprep.subr.bf16.mxu0 0
    %2431 = vmatpush1.bf16.msra.mxu0 0
    %2432 = vmatprep.subr.bf16.mxu0 0
    %2433 = vmatpush1.bf16.msra.mxu0 0
    %2434 = vmatprep.subr.bf16.mxu0 0
    %2435 = vmatpush1.bf16.msra.mxu0 0
    %2436 = vmatprep.subr.bf16.mxu0 0
    %2437 = vmatpush1.bf16.msra.mxu0 0
    %2438 = vmatprep.subr.bf16.mxu0 0
    %2439 = vmatpush1.bf16.msra.mxu0 0
    %2440 = vmatprep.mubr.bf16.mxu0 0
    %2441 = vmatmul.mubr.bf16.gmra.mrb[0].mxu0 %v2401
    %v2442 = vpop.f32.mrb[0].mxu0
    %v2443 = vadd.f32 0.0, %v2442
    %v2444 = vpop.f32.mrb[0].mxu0
    %v2445 = vadd.f32 0.0, %v2444
    %v2446 = vpop.f32.mrb[0].mxu0
    %v2447 = vpop.f32.mrb[0].mxu0
    %2448 = vdwg.mxu0
    %2449 = vmatprep.subr.bf16.mxu0 0
    %2450 = vmatpush1.bf16.msra.mxu0 %v2027
    %2451 = vmatprep.subr.bf16.mxu0 0
    %2452 = vmatpush1.bf16.msra.mxu0 %v2030
    %2453 = vmatprep.subr.bf16.mxu0 0
    %2454 = vmatpush1.bf16.msra.mxu0 %v2033
    %2455 = vmatprep.subr.bf16.mxu0 0
    %2456 = vmatpush1.bf16.msra.mxu0 %v2036
    %2457 = vmatprep.subr.bf16.mxu0 0
    %2458 = vmatpush1.bf16.msra.mxu0 %v2039
    %2459 = vmatprep.subr.bf16.mxu0 0
    %2460 = vmatpush1.bf16.msra.mxu0 %v2042
    %2461 = vmatprep.subr.bf16.mxu0 0
    %2462 = vmatpush1.bf16.msra.mxu0 %v2045
    %2463 = vmatprep.subr.bf16.mxu0 0
    %2464 = vmatpush1.bf16.msra.mxu0 %v2048
    %2465 = vmatprep.subr.bf16.mxu0 0
    %2466 = vmatpush1.bf16.msra.mxu0 0
    %2467 = vmatprep.subr.bf16.mxu0 0
    %2468 = vmatpush1.bf16.msra.mxu0 0
    %2469 = vmatprep.subr.bf16.mxu0 0
    %2470 = vmatpush1.bf16.msra.mxu0 0
    %2471 = vmatprep.subr.bf16.mxu0 0
    %2472 = vmatpush1.bf16.msra.mxu0 0
    %2473 = vmatprep.subr.bf16.mxu0 0
    %2474 = vmatpush1.bf16.msra.mxu0 0
    %2475 = vmatprep.subr.bf16.mxu0 0
    %2476 = vmatpush1.bf16.msra.mxu0 0
    %2477 = vmatprep.subr.bf16.mxu0 0
    %2478 = vmatpush1.bf16.msra.mxu0 0
    %2479 = vmatprep.subr.bf16.mxu0 0
    %2480 = vmatpush1.bf16.msra.mxu0 0
    %2481 = vmatprep.mubr.bf16.mxu0 0
    %2482 = vmatmul.mubr.bf16.gmra.mrb[0].mxu0 %v2401
    %v2483 = vpop.f32.mrb[0].mxu0
    %v2484 = vadd.f32 0.0, %v2483
    %v2485 = vpop.f32.mrb[0].mxu0
    %v2486 = vpop.f32.mrb[0].mxu0
    %v2487 = vpop.f32.mrb[0].mxu0
    %2488 = vdwg.mxu0
    %v2489 = vadd.f32 %v2405, %v2443
    %v2490 = vxor.u32 %v2489, 2147483648
    %v2491 = vmul.f32 %v2490, 1.442695
    %v2492 = vpow.pop %v2491
    %v2493 = vadd.f32 %v2492, 1.0
    %v2494 = vrcp.pop %v2493
    %v2495 = vmul.f32 1.0, %v2494
    %v2496 = vadd.f32 %v2406, %v2445
    %v2497 = vxor.u32 %v2496, 2147483648
    %v2498 = vmul.f32 %v2497, 1.442695
    %v2499 = vpow.pop %v2498
    %v2500 = vadd.f32 %v2499, 1.0
    %v2501 = vrcp.pop %v2500
    %v2502 = vmul.f32 1.0, %v2501
    %v2503 = vadd.f32 %v2484, %v2172
    %v2504 = vmul.f32 %v2495, %v2503
    %v2505 = vadd.f32 %v2407, %v2504
    %v2506 = vtanh.pop %v2505
    %v2507 = vsub.f32 1.0, %v2502
    %v2508 = vmul.f32 %v2507, %v2506
    %v2509 = vmul.f32 %v2502, %v2400
    %v2510 = vadd.f32 %v2508, %v2509
    %v2511 = vpack.c.bf16 %v2510, %v2510
    %s2512 = scalar_lea.vmem [#allocation5], 12
    %2513 = vst [vmem:[%s2512] sm:$0xf] %v2511
    %s2514 = scalar_lea.vmem [#allocation4], 96
    %v2515 = vld [vmem:[%s2514] sm:$0xff]
    %v2516 = vld [vmem:[%s2514 + $0x8] sm:$0xff]
    %v2517 = vld [vmem:[%s2514 + $0x10] sm:$0xff]
    %2518 = vmatprep.subr.bf16.mxu0 %v2026
    %2519 = vmatpush1.bf16.msra.mxu0 %v2025
    %2520 = vmatprep.subr.bf16.mxu0 %v2029
    %2521 = vmatpush1.bf16.msra.mxu0 %v2028
    %2522 = vmatprep.subr.bf16.mxu0 %v2032
    %2523 = vmatpush1.bf16.msra.mxu0 %v2031
    %2524 = vmatprep.subr.bf16.mxu0 %v2035
    %2525 = vmatpush1.bf16.msra.mxu0 %v2034
    %2526 = vmatprep.subr.bf16.mxu0 %v2038
    %2527 = vmatpush1.bf16.msra.mxu0 %v2037
    %2528 = vmatprep.subr.bf16.mxu0 %v2041
    %2529 = vmatpush1.bf16.msra.mxu0 %v2040
    %2530 = vmatprep.subr.bf16.mxu0 %v2044
    %2531 = vmatpush1.bf16.msra.mxu0 %v2043
    %2532 = vmatprep.subr.bf16.mxu0 %v2047
    %2533 = vmatpush1.bf16.msra.mxu0 %v2046
    %2534 = vmatprep.subr.bf16.mxu0 0
    %2535 = vmatpush1.bf16.msra.mxu0 0
    %2536 = vmatprep.subr.bf16.mxu0 0
    %2537 = vmatpush1.bf16.msra.mxu0 0
    %2538 = vmatprep.subr.bf16.mxu0 0
    %2539 = vmatpush1.bf16.msra.mxu0 0
    %2540 = vmatprep.subr.bf16.mxu0 0
    %2541 = vmatpush1.bf16.msra.mxu0 0
    %2542 = vmatprep.subr.bf16.mxu0 0
    %2543 = vmatpush1.bf16.msra.mxu0 0
    %2544 = vmatprep.subr.bf16.mxu0 0
    %2545 = vmatpush1.bf16.msra.mxu0 0
    %2546 = vmatprep.subr.bf16.mxu0 0
    %2547 = vmatpush1.bf16.msra.mxu0 0
    %2548 = vmatprep.subr.bf16.mxu0 0
    %2549 = vmatpush1.bf16.msra.mxu0 0
    %2550 = vmatprep.mubr.bf16.mxu0 0
    %2551 = vmatmul.mubr.bf16.gmra.mrb[0].mxu0 %v2511
    %v2552 = vpop.f32.mrb[0].mxu0
    %v2553 = vadd.f32 0.0, %v2552
    %v2554 = vpop.f32.mrb[0].mxu0
    %v2555 = vadd.f32 0.0, %v2554
    %v2556 = vpop.f32.mrb[0].mxu0
    %v2557 = vpop.f32.mrb[0].mxu0
    %2558 = vdwg.mxu0
    %2559 = vmatprep.subr.bf16.mxu0 0
    %2560 = vmatpush1.bf16.msra.mxu0 %v2027
    %2561 = vmatprep.subr.bf16.mxu0 0
    %2562 = vmatpush1.bf16.msra.mxu0 %v2030
    %2563 = vmatprep.subr.bf16.mxu0 0
    %2564 = vmatpush1.bf16.msra.mxu0 %v2033
    %2565 = vmatprep.subr.bf16.mxu0 0
    %2566 = vmatpush1.bf16.msra.mxu0 %v2036
    %2567 = vmatprep.subr.bf16.mxu0 0
    %2568 = vmatpush1.bf16.msra.mxu0 %v2039
    %2569 = vmatprep.subr.bf16.mxu0 0
    %2570 = vmatpush1.bf16.msra.mxu0 %v2042
    %2571 = vmatprep.subr.bf16.mxu0 0
    %2572 = vmatpush1.bf16.msra.mxu0 %v2045
    %2573 = vmatprep.subr.bf16.mxu0 0
    %2574 = vmatpush1.bf16.msra.mxu0 %v2048
    %2575 = vmatprep.subr.bf16.mxu0 0
    %2576 = vmatpush1.bf16.msra.mxu0 0
    %2577 = vmatprep.subr.bf16.mxu0 0
    %2578 = vmatpush1.bf16.msra.mxu0 0
    %2579 = vmatprep.subr.bf16.mxu0 0
    %2580 = vmatpush1.bf16.msra.mxu0 0
    %2581 = vmatprep.subr.bf16.mxu0 0
    %2582 = vmatpush1.bf16.msra.mxu0 0
    %2583 = vmatprep.subr.bf16.mxu0 0
    %2584 = vmatpush1.bf16.msra.mxu0 0
    %2585 = vmatprep.subr.bf16.mxu0 0
    %2586 = vmatpush1.bf16.msra.mxu0 0
    %2587 = vmatprep.subr.bf16.mxu0 0
    %2588 = vmatpush1.bf16.msra.mxu0 0
    %2589 = vmatprep.subr.bf16.mxu0 0
    %2590 = vmatpush1.bf16.msra.mxu0 0
    %2591 = vmatprep.mubr.bf16.mxu0 0
    %2592 = vmatmul.mubr.bf16.gmra.mrb[0].mxu0 %v2511
    %v2593 = vpop.f32.mrb[0].mxu0
    %v2594 = vadd.f32 0.0, %v2593
    %v2595 = vpop.f32.mrb[0].mxu0
    %v2596 = vpop.f32.mrb[0].mxu0
    %v2597 = vpop.f32.mrb[0].mxu0
    %2598 = vdwg.mxu0
    %v2599 = vadd.f32 %v2515, %v2553
    %v2600 = vxor.u32 %v2599, 2147483648
    %v2601 = vmul.f32 %v2600, 1.442695
    %v2602 = vpow.pop %v2601
    %v2603 = vadd.f32 %v2602, 1.0
    %v2604 = vrcp.pop %v2603
    %v2605 = vmul.f32 1.0, %v2604
    %v2606 = vadd.f32 %v2516, %v2555
    %v2607 = vxor.u32 %v2606, 2147483648
    %v2608 = vmul.f32 %v2607, 1.442695
    %v2609 = vpow.pop %v2608
    %v2610 = vadd.f32 %v2609, 1.0
    %v2611 = vrcp.pop %v2610
    %v2612 = vmul.f32 1.0, %v2611
    %v2613 = vadd.f32 %v2594, %v2172
    %v2614 = vmul.f32 %v2605, %v2613
    %v2615 = vadd.f32 %v2517, %v2614
    %v2616 = vtanh.pop %v2615
    %v2617 = vsub.f32 1.0, %v2612
    %v2618 = vmul.f32 %v2617, %v2616
    %v2619 = vmul.f32 %v2612, %v2510
    %v2620 = vadd.f32 %v2618, %v2619
    %v2621 = vpack.c.bf16 %v2620, %v2620
    %s2622 = scalar_lea.vmem [#allocation5], 16
    %2623 = vst [vmem:[%s2622] sm:$0xf] %v2621
    %s2624 = scalar_lea.vmem [#allocation4], 120
    %v2625 = vld [vmem:[%s2624] sm:$0xff]
    %v2626 = vld [vmem:[%s2624 + $0x8] sm:$0xff]
    %v2627 = vld [vmem:[%s2624 + $0x10] sm:$0xff]
    %2628 = vmatprep.subr.bf16.mxu0 %v2026
    %2629 = vmatpush1.bf16.msra.mxu0 %v2025
    %2630 = vmatprep.subr.bf16.mxu0 %v2029
    %2631 = vmatpush1.bf16.msra.mxu0 %v2028
    %2632 = vmatprep.subr.bf16.mxu0 %v2032
    %2633 = vmatpush1.bf16.msra.mxu0 %v2031
    %2634 = vmatprep.subr.bf16.mxu0 %v2035
    %2635 = vmatpush1.bf16.msra.mxu0 %v2034
    %2636 = vmatprep.subr.bf16.mxu0 %v2038
    %2637 = vmatpush1.bf16.msra.mxu0 %v2037
    %2638 = vmatprep.subr.bf16.mxu0 %v2041
    %2639 = vmatpush1.bf16.msra.mxu0 %v2040
    %2640 = vmatprep.subr.bf16.mxu0 %v2044
    %2641 = vmatpush1.bf16.msra.mxu0 %v2043
    %2642 = vmatprep.subr.bf16.mxu0 %v2047
    %2643 = vmatpush1.bf16.msra.mxu0 %v2046
    %2644 = vmatprep.subr.bf16.mxu0 0
    %2645 = vmatpush1.bf16.msra.mxu0 0
    %2646 = vmatprep.subr.bf16.mxu0 0
    %2647 = vmatpush1.bf16.msra.mxu0 0
    %2648 = vmatprep.subr.bf16.mxu0 0
    %2649 = vmatpush1.bf16.msra.mxu0 0
    %2650 = vmatprep.subr.bf16.mxu0 0
    %2651 = vmatpush1.bf16.msra.mxu0 0
    %2652 = vmatprep.subr.bf16.mxu0 0
    %2653 = vmatpush1.bf16.msra.mxu0 0
    %2654 = vmatprep.subr.bf16.mxu0 0
    %2655 = vmatpush1.bf16.msra.mxu0 0
    %2656 = vmatprep.subr.bf16.mxu0 0
    %2657 = vmatpush1.bf16.msra.mxu0 0
    %2658 = vmatprep.subr.bf16.mxu0 0
    %2659 = vmatpush1.bf16.msra.mxu0 0
    %2660 = vmatprep.mubr.bf16.mxu0 0
    %2661 = vmatmul.mubr.bf16.gmra.mrb[0].mxu0 %v2621
    %v2662 = vpop.f32.mrb[0].mxu0
    %v2663 = vadd.f32 0.0, %v2662
    %v2664 = vpop.f32.mrb[0].mxu0
    %v2665 = vadd.f32 0.0, %v2664
    %v2666 = vpop.f32.mrb[0].mxu0
    %v2667 = vpop.f32.mrb[0].mxu0
    %2668 = vdwg.mxu0
    %2669 = vmatprep.subr.bf16.mxu0 0
    %2670 = vmatpush1.bf16.msra.mxu0 %v2027
    %2671 = vmatprep.subr.bf16.mxu0 0
    %2672 = vmatpush1.bf16.msra.mxu0 %v2030
    %2673 = vmatprep.subr.bf16.mxu0 0
    %2674 = vmatpush1.bf16.msra.mxu0 %v2033
    %2675 = vmatprep.subr.bf16.mxu0 0
    %2676 = vmatpush1.bf16.msra.mxu0 %v2036
    %2677 = vmatprep.subr.bf16.mxu0 0
    %2678 = vmatpush1.bf16.msra.mxu0 %v2039
    %2679 = vmatprep.subr.bf16.mxu0 0
    %2680 = vmatpush1.bf16.msra.mxu0 %v2042
    %2681 = vmatprep.subr.bf16.mxu0 0
    %2682 = vmatpush1.bf16.msra.mxu0 %v2045
    %2683 = vmatprep.subr.bf16.mxu0 0
    %2684 = vmatpush1.bf16.msra.mxu0 %v2048
    %2685 = vmatprep.subr.bf16.mxu0 0
    %2686 = vmatpush1.bf16.msra.mxu0 0
    %2687 = vmatprep.subr.bf16.mxu0 0
    %2688 = vmatpush1.bf16.msra.mxu0 0
    %2689 = vmatprep.subr.bf16.mxu0 0
    %2690 = vmatpush1.bf16.msra.mxu0 0
    %2691 = vmatprep.subr.bf16.mxu0 0
    %2692 = vmatpush1.bf16.msra.mxu0 0
    %2693 = vmatprep.subr.bf16.mxu0 0
    %2694 = vmatpush1.bf16.msra.mxu0 0
    %2695 = vmatprep.subr.bf16.mxu0 0
    %2696 = vmatpush1.bf16.msra.mxu0 0
    %2697 = vmatprep.subr.bf16.mxu0 0
    %2698 = vmatpush1.bf16.msra.mxu0 0
    %2699 = vmatprep.subr.bf16.mxu0 0
    %2700 = vmatpush1.bf16.msra.mxu0 0
    %2701 = vmatprep.mubr.bf16.mxu0 0
    %2702 = vmatmul.mubr.bf16.gmra.mrb[0].mxu0 %v2621
    %v2703 = vpop.f32.mrb[0].mxu0
    %v2704 = vadd.f32 0.0, %v2703
    %v2705 = vpop.f32.mrb[0].mxu0
    %v2706 = vpop.f32.mrb[0].mxu0
    %v2707 = vpop.f32.mrb[0].mxu0
    %2708 = vdwg.mxu0
    %v2709 = vadd.f32 %v2625, %v2663
    %v2710 = vxor.u32 %v2709, 2147483648
    %v2711 = vmul.f32 %v2710, 1.442695
    %v2712 = vpow.pop %v2711
    %v2713 = vadd.f32 %v2712, 1.0
    %v2714 = vrcp.pop %v2713
    %v2715 = vmul.f32 1.0, %v2714
    %v2716 = vadd.f32 %v2626, %v2665
    %v2717 = vxor.u32 %v2716, 2147483648
    %v2718 = vmul.f32 %v2717, 1.442695
    %v2719 = vpow.pop %v2718
    %v2720 = vadd.f32 %v2719, 1.0
    %v2721 = vrcp.pop %v2720
    %v2722 = vmul.f32 1.0, %v2721
    %v2723 = vadd.f32 %v2704, %v2172
    %v2724 = vmul.f32 %v2715, %v2723
    %v2725 = vadd.f32 %v2627, %v2724
    %v2726 = vtanh.pop %v2725
    %v2727 = vsub.f32 1.0, %v2722
    %v2728 = vmul.f32 %v2727, %v2726
    %v2729 = vmul.f32 %v2722, %v2620
    %v2730 = vadd.f32 %v2728, %v2729
    %v2731 = vpack.c.bf16 %v2730, %v2730
    %s2732 = scalar_lea.vmem [#allocation5], 20
    %2733 = vst [vmem:[%s2732] sm:$0xf] %v2731
    %s2734 = scalar_lea.vmem [#allocation4], 144
    %v2735 = vld [vmem:[%s2734] sm:$0xff]
    %v2736 = vld [vmem:[%s2734 + $0x8] sm:$0xff]
    %v2737 = vld [vmem:[%s2734 + $0x10] sm:$0xff]
    %2738 = vmatprep.subr.bf16.mxu0 %v2026
    %2739 = vmatpush1.bf16.msra.mxu0 %v2025
    %2740 = vmatprep.subr.bf16.mxu0 %v2029
    %2741 = vmatpush1.bf16.msra.mxu0 %v2028
    %2742 = vmatprep.subr.bf16.mxu0 %v2032
    %2743 = vmatpush1.bf16.msra.mxu0 %v2031
    %2744 = vmatprep.subr.bf16.mxu0 %v2035
    %2745 = vmatpush1.bf16.msra.mxu0 %v2034
    %2746 = vmatprep.subr.bf16.mxu0 %v2038
    %2747 = vmatpush1.bf16.msra.mxu0 %v2037
    %2748 = vmatprep.subr.bf16.mxu0 %v2041
    %2749 = vmatpush1.bf16.msra.mxu0 %v2040
    %2750 = vmatprep.subr.bf16.mxu0 %v2044
    %2751 = vmatpush1.bf16.msra.mxu0 %v2043
    %2752 = vmatprep.subr.bf16.mxu0 %v2047
    %2753 = vmatpush1.bf16.msra.mxu0 %v2046
    %2754 = vmatprep.subr.bf16.mxu0 0
    %2755 = vmatpush1.bf16.msra.mxu0 0
    %2756 = vmatprep.subr.bf16.mxu0 0
    %2757 = vmatpush1.bf16.msra.mxu0 0
    %2758 = vmatprep.subr.bf16.mxu0 0
    %2759 = vmatpush1.bf16.msra.mxu0 0
    %2760 = vmatprep.subr.bf16.mxu0 0
    %2761 = vmatpush1.bf16.msra.mxu0 0
    %2762 = vmatprep.subr.bf16.mxu0 0
    %2763 = vmatpush1.bf16.msra.mxu0 0
    %2764 = vmatprep.subr.bf16.mxu0 0
    %2765 = vmatpush1.bf16.msra.mxu0 0
    %2766 = vmatprep.subr.bf16.mxu0 0
    %2767 = vmatpush1.bf16.msra.mxu0 0
    %2768 = vmatprep.subr.bf16.mxu0 0
    %2769 = vmatpush1.bf16.msra.mxu0 0
    %2770 = vmatprep.mubr.bf16.mxu0 0
    %2771 = vmatmul.mubr.bf16.gmra.mrb[0].mxu0 %v2731
    %v2772 = vpop.f32.mrb[0].mxu0
    %v2773 = vadd.f32 0.0, %v2772
    %v2774 = vpop.f32.mrb[0].mxu0
    %v2775 = vadd.f32 0.0, %v2774
    %v2776 = vpop.f32.mrb[0].mxu0
    %v2777 = vpop.f32.mrb[0].mxu0
    %2778 = vdwg.mxu0
    %2779 = vmatprep.subr.bf16.mxu0 0
    %2780 = vmatpush1.bf16.msra.mxu0 %v2027
    %2781 = vmatprep.subr.bf16.mxu0 0
    %2782 = vmatpush1.bf16.msra.mxu0 %v2030
    %2783 = vmatprep.subr.bf16.mxu0 0
    %2784 = vmatpush1.bf16.msra.mxu0 %v2033
    %2785 = vmatprep.subr.bf16.mxu0 0
    %2786 = vmatpush1.bf16.msra.mxu0 %v2036
    %2787 = vmatprep.subr.bf16.mxu0 0
    %2788 = vmatpush1.bf16.msra.mxu0 %v2039
    %2789 = vmatprep.subr.bf16.mxu0 0
    %2790 = vmatpush1.bf16.msra.mxu0 %v2042
    %2791 = vmatprep.subr.bf16.mxu0 0
    %2792 = vmatpush1.bf16.msra.mxu0 %v2045
    %2793 = vmatprep.subr.bf16.mxu0 0
    %2794 = vmatpush1.bf16.msra.mxu0 %v2048
    %2795 = vmatprep.subr.bf16.mxu0 0
    %2796 = vmatpush1.bf16.msra.mxu0 0
    %2797 = vmatprep.subr.bf16.mxu0 0
    %2798 = vmatpush1.bf16.msra.mxu0 0
    %2799 = vmatprep.subr.bf16.mxu0 0
    %2800 = vmatpush1.bf16.msra.mxu0 0
    %2801 = vmatprep.subr.bf16.mxu0 0
    %2802 = vmatpush1.bf16.msra.mxu0 0
    %2803 = vmatprep.subr.bf16.mxu0 0
    %2804 = vmatpush1.bf16.msra.mxu0 0
    %2805 = vmatprep.subr.bf16.mxu0 0
    %2806 = vmatpush1.bf16.msra.mxu0 0
    %2807 = vmatprep.subr.bf16.mxu0 0
    %2808 = vmatpush1.bf16.msra.mxu0 0
    %2809 = vmatprep.subr.bf16.mxu0 0
    %2810 = vmatpush1.bf16.msra.mxu0 0
    %2811 = vmatprep.mubr.bf16.mxu0 0
    %2812 = vmatmul.mubr.bf16.gmra.mrb[0].mxu0 %v2731
    %v2813 = vpop.f32.mrb[0].mxu0
    %v2814 = vadd.f32 0.0, %v2813
    %v2815 = vpop.f32.mrb[0].mxu0
    %v2816 = vpop.f32.mrb[0].mxu0
    %v2817 = vpop.f32.mrb[0].mxu0
    %2818 = vdwg.mxu0
    %v2819 = vadd.f32 %v2735, %v2773
    %v2820 = vxor.u32 %v2819, 2147483648
    %v2821 = vmul.f32 %v2820, 1.442695
    %v2822 = vpow.pop %v2821
    %v2823 = vadd.f32 %v2822, 1.0
    %v2824 = vrcp.pop %v2823
    %v2825 = vmul.f32 1.0, %v2824
    %v2826 = vadd.f32 %v2736, %v2775
    %v2827 = vxor.u32 %v2826, 2147483648
    %v2828 = vmul.f32 %v2827, 1.442695
    %v2829 = vpow.pop %v2828
    %v2830 = vadd.f32 %v2829, 1.0
    %v2831 = vrcp.pop %v2830
    %v2832 = vmul.f32 1.0, %v2831
    %v2833 = vadd.f32 %v2814, %v2172
    %v2834 = vmul.f32 %v2825, %v2833
    %v2835 = vadd.f32 %v2737, %v2834
    %v2836 = vtanh.pop %v2835
    %v2837 = vsub.f32 1.0, %v2832
    %v2838 = vmul.f32 %v2837, %v2836
    %v2839 = vmul.f32 %v2832, %v2730
    %v2840 = vadd.f32 %v2838, %v2839
    %v2841 = vpack.c.bf16 %v2840, %v2840
    %s2842 = scalar_lea.vmem [#allocation5], 24
    %2843 = vst [vmem:[%s2842] sm:$0xf] %v2841
    %s2844 = scalar_lea.vmem [#allocation4], 168
    %v2845 = vld [vmem:[%s2844] sm:$0xff]
    %v2846 = vld [vmem:[%s2844 + $0x8] sm:$0xff]
    %v2847 = vld [vmem:[%s2844 + $0x10] sm:$0xff]
    %2848 = vmatprep.subr.bf16.mxu0 %v2026
    %2849 = vmatpush1.bf16.msra.mxu0 %v2025
    %2850 = vmatprep.subr.bf16.mxu0 %v2029
    %2851 = vmatpush1.bf16.msra.mxu0 %v2028
    %2852 = vmatprep.subr.bf16.mxu0 %v2032
    %2853 = vmatpush1.bf16.msra.mxu0 %v2031
    %2854 = vmatprep.subr.bf16.mxu0 %v2035
    %2855 = vmatpush1.bf16.msra.mxu0 %v2034
    %2856 = vmatprep.subr.bf16.mxu0 %v2038
    %2857 = vmatpush1.bf16.msra.mxu0 %v2037
    %2858 = vmatprep.subr.bf16.mxu0 %v2041
    %2859 = vmatpush1.bf16.msra.mxu0 %v2040
    %2860 = vmatprep.subr.bf16.mxu0 %v2044
    %2861 = vmatpush1.bf16.msra.mxu0 %v2043
    %2862 = vmatprep.subr.bf16.mxu0 %v2047
    %2863 = vmatpush1.bf16.msra.mxu0 %v2046
    %2864 = vmatprep.subr.bf16.mxu0 0
    %2865 = vmatpush1.bf16.msra.mxu0 0
    %2866 = vmatprep.subr.bf16.mxu0 0
    %2867 = vmatpush1.bf16.msra.mxu0 0
    %2868 = vmatprep.subr.bf16.mxu0 0
    %2869 = vmatpush1.bf16.msra.mxu0 0
    %2870 = vmatprep.subr.bf16.mxu0 0
    %2871 = vmatpush1.bf16.msra.mxu0 0
    %2872 = vmatprep.subr.bf16.mxu0 0
    %2873 = vmatpush1.bf16.msra.mxu0 0
    %2874 = vmatprep.subr.bf16.mxu0 0
    %2875 = vmatpush1.bf16.msra.mxu0 0
    %2876 = vmatprep.subr.bf16.mxu0 0
    %2877 = vmatpush1.bf16.msra.mxu0 0
    %2878 = vmatprep.subr.bf16.mxu0 0
    %2879 = vmatpush1.bf16.msra.mxu0 0
    %2880 = vmatprep.mubr.bf16.mxu0 0
    %2881 = vmatmul.mubr.bf16.gmra.mrb[0].mxu0 %v2841
    %v2882 = vpop.f32.mrb[0].mxu0
    %v2883 = vadd.f32 0.0, %v2882
    %v2884 = vpop.f32.mrb[0].mxu0
    %v2885 = vadd.f32 0.0, %v2884
    %v2886 = vpop.f32.mrb[0].mxu0
    %v2887 = vpop.f32.mrb[0].mxu0
    %2888 = vdwg.mxu0
    %2889 = vmatprep.subr.bf16.mxu0 0
    %2890 = vmatpush1.bf16.msra.mxu0 %v2027
    %2891 = vmatprep.subr.bf16.mxu0 0
    %2892 = vmatpush1.bf16.msra.mxu0 %v2030
    %2893 = vmatprep.subr.bf16.mxu0 0
    %2894 = vmatpush1.bf16.msra.mxu0 %v2033
    %2895 = vmatprep.subr.bf16.mxu0 0
    %2896 = vmatpush1.bf16.msra.mxu0 %v2036
    %2897 = vmatprep.subr.bf16.mxu0 0
    %2898 = vmatpush1.bf16.msra.mxu0 %v2039
    %2899 = vmatprep.subr.bf16.mxu0 0
    %2900 = vmatpush1.bf16.msra.mxu0 %v2042
    %2901 = vmatprep.subr.bf16.mxu0 0
    %2902 = vmatpush1.bf16.msra.mxu0 %v2045
    %2903 = vmatprep.subr.bf16.mxu0 0
    %2904 = vmatpush1.bf16.msra.mxu0 %v2048
    %2905 = vmatprep.subr.bf16.mxu0 0
    %2906 = vmatpush1.bf16.msra.mxu0 0
    %2907 = vmatprep.subr.bf16.mxu0 0
    %2908 = vmatpush1.bf16.msra.mxu0 0
    %2909 = vmatprep.subr.bf16.mxu0 0
    %2910 = vmatpush1.bf16.msra.mxu0 0
    %2911 = vmatprep.subr.bf16.mxu0 0
    %2912 = vmatpush1.bf16.msra.mxu0 0
    %2913 = vmatprep.subr.bf16.mxu0 0
    %2914 = vmatpush1.bf16.msra.mxu0 0
    %2915 = vmatprep.subr.bf16.mxu0 0
    %2916 = vmatpush1.bf16.msra.mxu0 0
    %2917 = vmatprep.subr.bf16.mxu0 0
    %2918 = vmatpush1.bf16.msra.mxu0 0
    %2919 = vmatprep.subr.bf16.mxu0 0
    %2920 = vmatpush1.bf16.msra.mxu0 0
    %2921 = vmatprep.mubr.bf16.mxu0 0
    %2922 = vmatmul.mubr.bf16.gmra.mrb[0].mxu0 %v2841
    %v2923 = vpop.f32.mrb[0].mxu0
    %v2924 = vadd.f32 0.0, %v2923
    %v2925 = vpop.f32.mrb[0].mxu0
    %v2926 = vpop.f32.mrb[0].mxu0
    %v2927 = vpop.f32.mrb[0].mxu0
    %2928 = vdwg.mxu0
    %v2929 = vadd.f32 %v2845, %v2883
    %v2930 = vxor.u32 %v2929, 2147483648
    %v2931 = vmul.f32 %v2930, 1.442695
    %v2932 = vpow.pop %v2931
    %v2933 = vadd.f32 %v2932, 1.0
    %v2934 = vrcp.pop %v2933
    %v2935 = vmul.f32 1.0, %v2934
    %v2936 = vadd.f32 %v2846, %v2885
    %v2937 = vxor.u32 %v2936, 2147483648
    %v2938 = vmul.f32 %v2937, 1.442695
    %v2939 = vpow.pop %v2938
    %v2940 = vadd.f32 %v2939, 1.0
    %v2941 = vrcp.pop %v2940
    %v2942 = vmul.f32 1.0, %v2941
    %v2943 = vadd.f32 %v2924, %v2172
    %v2944 = vmul.f32 %v2935, %v2943
    %v2945 = vadd.f32 %v2847, %v2944
    %v2946 = vtanh.pop %v2945
    %v2947 = vsub.f32 1.0, %v2942
    %v2948 = vmul.f32 %v2947, %v2946
    %v2949 = vmul.f32 %v2942, %v2840
    %v2950 = vadd.f32 %v2948, %v2949
    %v2951 = vpack.c.bf16 %v2950, %v2950
    %s2952 = scalar_lea.vmem [#allocation5], 28
    %2953 = vst [vmem:[%s2952] sm:$0xf] %v2951
    %v2954 = vld [vmem:[#allocation5] sm:$0xf]
    %v2955 = vld [vmem:[#allocation5 + $0x4] sm:$0xf]
    %v2956 = vld [vmem:[#allocation5 + $0x8] sm:$0xf]
    %v2957 = vld [vmem:[#allocation5 + $0xc] sm:$0xf]
    %v2958 = vld [vmem:[#allocation5 + $0x10] sm:$0xf]
    %v2959 = vld [vmem:[#allocation5 + $0x14] sm:$0xf]
    %v2960 = vld [vmem:[#allocation5 + $0x18] sm:$0xf]
    %v2961 = vld [vmem:[#allocation5 + $0x1c] sm:$0xf]
    %v2962 = vld [vmem:[#allocation15] sm:$0xf]
    %v2963 = vld [vmem:[#allocation15 + $0x4] sm:$0xf]
    %v2964 = vld [vmem:[#allocation15 + $0x8] sm:$0xf]
    %v2965 = vld [vmem:[#allocation15 + $0xc] sm:$0xf]
    %v2966 = vld [vmem:[#allocation15 + $0x10] sm:$0xf]
    %v2967 = vld [vmem:[#allocation15 + $0x14] sm:$0xf]
    %v2968 = vld [vmem:[#allocation15 + $0x18] sm:$0xf]
    %v2969 = vld [vmem:[#allocation15 + $0x1c] sm:$0xf]
    %v2970 = vld [vmem:[#allocation15 + $0x20] sm:$0xf]
    %v2971 = vld [vmem:[#allocation15 + $0x24] sm:$0xf]
    %v2972 = vld [vmem:[#allocation15 + $0x28] sm:$0xf]
    %v2973 = vld [vmem:[#allocation15 + $0x2c] sm:$0xf]
    %v2974 = vld [vmem:[#allocation15 + $0x30] sm:$0xf]
    %v2975 = vld [vmem:[#allocation15 + $0x34] sm:$0xf]
    %v2976 = vld [vmem:[#allocation15 + $0x38] sm:$0xf]
    %v2977 = vld [vmem:[#allocation15 + $0x3c] sm:$0xf]
    %v2978 = vld [vmem:[%s10] sm:$0x1]
    %v2980 = vlaneseq
    %v2981 = vshrl.u32 %v2980, 7
    %v2982 = vsub.s32 0, %v2981
    %v2983 = vrot.slane %v2978, %v2982
    %v2993 = vunpack.c.l.b16 %v2954
    %v2994 = vunpack.c.l.b16 %v2955
    %v2995 = vunpack.c.l.b16 %v2956
    %v2996 = vunpack.c.l.b16 %v2957
    %v2997 = vunpack.c.l.b16 %v2958
    %v2998 = vunpack.c.l.b16 %v2959
    %v2999 = vunpack.c.l.b16 %v2960
    %v3000 = vunpack.c.l.b16 %v2961
    %v3001 = vpack.c.b16 %v2994, %v2993
    %v3002 = vpack.c.b16 %v2996, %v2995
    %v3003 = vpack.c.b16 %v2998, %v2997
    %v3004 = vpack.c.b16 %v3000, %v2999
    %v3025 = vunpack.c.l.b16 %v2962
    %v3026 = vunpack.c.l.b16 %v2963
    %v3027 = vunpack.c.l.b16 %v2964
    %v3028 = vunpack.c.l.b16 %v2965
    %v3029 = vunpack.c.l.b16 %v2966
    %v3030 = vunpack.c.l.b16 %v2967
    %v3031 = vunpack.c.l.b16 %v2968
    %v3032 = vunpack.c.l.b16 %v2969
    %v3033 = vunpack.c.l.b16 %v2970
    %v3034 = vunpack.c.l.b16 %v2971
    %v3035 = vunpack.c.l.b16 %v2972
    %v3036 = vunpack.c.l.b16 %v2973
    %v3037 = vunpack.c.l.b16 %v2974
    %v3038 = vunpack.c.l.b16 %v2975
    %v3039 = vunpack.c.l.b16 %v2976
    %v3040 = vunpack.c.l.b16 %v2977
    %v3041 = vpack.c.b16 %v3026, %v3025
    %v3042 = vpack.c.b16 %v3028, %v3027
    %v3043 = vpack.c.b16 %v3030, %v3029
    %v3044 = vpack.c.b16 %v3032, %v3031
    %v3045 = vpack.c.b16 %v3034, %v3033
    %v3046 = vpack.c.b16 %v3036, %v3035
    %v3047 = vpack.c.b16 %v3038, %v3037
    %v3048 = vpack.c.b16 %v3040, %v3039
    %3057 = vmatprep.subr.bf16.mxu0 0
    %3058 = vmatpush1.bf16.msra.mxu0 %v3041
    %3059 = vmatprep.subr.bf16.mxu0 0
    %3060 = vmatpush1.bf16.msra.mxu0 %v3042
    %3061 = vmatprep.subr.bf16.mxu0 0
    %3062 = vmatpush1.bf16.msra.mxu0 %v3043
    %3063 = vmatprep.subr.bf16.mxu0 0
    %3064 = vmatpush1.bf16.msra.mxu0 %v3044
    %3065 = vmatprep.subr.bf16.mxu0 0
    %3066 = vmatpush1.bf16.msra.mxu0 %v3045
    %3067 = vmatprep.subr.bf16.mxu0 0
    %3068 = vmatpush1.bf16.msra.mxu0 %v3046
    %3069 = vmatprep.subr.bf16.mxu0 0
    %3070 = vmatpush1.bf16.msra.mxu0 %v3047
    %3071 = vmatprep.subr.bf16.mxu0 0
    %3072 = vmatpush1.bf16.msra.mxu0 %v3048
    %3073 = vmatprep.subr.bf16.mxu0 0
    %3074 = vmatpush1.bf16.msra.mxu0 0
    %3075 = vmatprep.subr.bf16.mxu0 0
    %3076 = vmatpush1.bf16.msra.mxu0 0
    %3077 = vmatprep.subr.bf16.mxu0 0
    %3078 = vmatpush1.bf16.msra.mxu0 0
    %3079 = vmatprep.subr.bf16.mxu0 0
    %3080 = vmatpush1.bf16.msra.mxu0 0
    %3081 = vmatprep.subr.bf16.mxu0 0
    %3082 = vmatpush1.bf16.msra.mxu0 0
    %3083 = vmatprep.subr.bf16.mxu0 0
    %3084 = vmatpush1.bf16.msra.mxu0 0
    %3085 = vmatprep.subr.bf16.mxu0 0
    %3086 = vmatpush1.bf16.msra.mxu0 0
    %3087 = vmatprep.subr.bf16.mxu0 0
    %3088 = vmatpush1.bf16.msra.mxu0 0
    %3089 = vmatprep.mubr.bf16.mxu0 0
    %3090 = vmatmul.mubr.bf16.gmra.mrb[0].mxu0 %v3001
    %v3091 = vpop.f32.mrb[0].mxu0
    %v3092 = vadd.f32 %v2983, %v3091
    %v3093 = vpop.f32.mrb[0].mxu0
    %v3094 = vpop.f32.mrb[0].mxu0
    %v3095 = vadd.f32 %v2983, %v3094
    %v3096 = vpop.f32.mrb[0].mxu0
    %3097 = vmatprep.mubr.bf16.mxu0 0
    %3098 = vmatmul.mubr.bf16.gmra.mrb[0].mxu0 %v3002
    %v3099 = vpop.f32.mrb[0].mxu0
    %v3100 = vadd.f32 %v2983, %v3099
    %v3101 = vpop.f32.mrb[0].mxu0
    %v3102 = vpop.f32.mrb[0].mxu0
    %v3103 = vadd.f32 %v2983, %v3102
    %v3104 = vpop.f32.mrb[0].mxu0
    %3105 = vmatprep.mubr.bf16.mxu0 0
    %3106 = vmatmul.mubr.bf16.gmra.mrb[0].mxu0 %v3003
    %v3107 = vpop.f32.mrb[0].mxu0
    %v3108 = vadd.f32 %v2983, %v3107
    %v3109 = vpop.f32.mrb[0].mxu0
    %v3110 = vpop.f32.mrb[0].mxu0
    %v3111 = vadd.f32 %v2983, %v3110
    %v3112 = vpop.f32.mrb[0].mxu0
    %3113 = vmatprep.mubr.bf16.mxu0 0
    %3114 = vmatmul.mubr.bf16.gmra.mrb[0].mxu0 %v3004
    %v3115 = vpop.f32.mrb[0].mxu0
    %v3116 = vadd.f32 %v2983, %v3115
    %v3117 = vpop.f32.mrb[0].mxu0
    %v3118 = vpop.f32.mrb[0].mxu0
    %v3119 = vadd.f32 %v2983, %v3118
    %v3120 = vpop.f32.mrb[0].mxu0
    %3121 = vdwg.mxu0
    %3122 = vst [vmem:[#allocation17] sm:$0xff] %v3092
    %3123 = vst [vmem:[#allocation17 + $0x8] sm:$0xff] %v3095
    %3124 = vst [vmem:[#allocation17 + $0x10] sm:$0xff] %v3100
    %3125 = vst [vmem:[#allocation17 + $0x18] sm:$0xff] %v3103
    %3126 = vst [vmem:[#allocation17 + $0x20] sm:$0xff] %v3108
    %3127 = vst [vmem:[#allocation17 + $0x28] sm:$0xff] %v3111
    %3128 = vst [vmem:[#allocation17 + $0x30] sm:$0xff] %v3116
    %3129 = vst [vmem:[#allocation17 + $0x38] sm:$0xff] %v3119
    // Predicated region
    $region70: #{tpu_custom_call.1} parent=1 // pred_check
      _
    $region71: #{tpu_custom_call.1} parent=1 // pred_check_branch
      %3131 = sbr.rel (0) target = $region73
    $region72: #{tpu_custom_call.1} parent=1 // pred_region
      %s3133 = ssub.s32 1024, 1024
      %3134 = vsyncadd [#allocation8], %s3133
      %s3135 = sshll.u32 [#allocation17], 4
      %s3136 = int_to_ptr.vmem [resolvable:$true] %s3135
      %3141 = dma.vmem_to_hbm [thread:$0]  %s3136, 1024, %s11, [#allocation8], 128, 128, 8
    $region73: #{tpu_custom_call.1} parent=1 // pred_fallthru
      _
    // Predicated region
    $region74: #{tpu_custom_call.1} parent=1 // pred_check
      _
    $region75: #{tpu_custom_call.1} parent=1 // pred_check_branch
      %3143 = sbr.rel (0) target = $region77
    $region76: #{tpu_custom_call.1} parent=1 // pred_region
      %3144 = dma.done [#allocation8], 1024
    $region77: #{tpu_custom_call.1} parent=1 // pred_fallthru
      _
    %3145 = vsyncpa [#allocation7], 1
    %3146 = vsyncpa [#allocation10], 1
    %3147 = vsyncpa [#allocation13], 1
    %3148 = vsyncpa [#allocation16], 1
    %3149 = vsyncpa [#allocation8], 1

</llo_original>
